<compile_context>
chip_gen: v7x
topology: tpu7x:2x2x1
jax: 0.10.0
libtpu: 0.0.40
codegen_flags: <defaults>
</compile_context>

<pallas_src>
import functools
import math

import jax
import jax.numpy as jnp
from jax.experimental import pallas as pl
from jax.experimental.pallas import tpu as pltpu

# ----------------------------- small GPT-2 config ----------------------------
VOCAB = 64      # vocab size (after hypothetical resize_token_embeddings)
N_POS = 32      # max positions
N_EMBD = 32     # hidden size (n_embd)
N_HEAD = 4
N_LAYER = 2
HEAD_DIM = N_EMBD // N_HEAD
LN_EPS = 1e-5
NEG_INF = -1e9
MATMUL_DTYPE = jnp.bfloat16   # MXU operand dtype (bf16 on v5e/v6e/v7x)

# canonical ordering of weight arguments fed to the fused kernel
W_ORDER = (
    "ln1_g", "ln1_b", "attn_w", "attn_b", "attn_proj_w", "attn_proj_b",
    "ln2_g", "ln2_b", "fc_w", "fc_b", "mlp_proj_w", "mlp_proj_b",
    "lnf_g", "lnf_b", "head_w", "head_b",
)


# ----------------------------- in-kernel helpers ------------------------------
def _ln(x, g, b):
    """LayerNorm over the last dim; stats in f32."""
    mean = jnp.mean(x, axis=-1, keepdims=True)
    xc = x - mean
    var = jnp.mean(xc * xc, axis=-1, keepdims=True)
    return xc * jax.lax.rsqrt(var + LN_EPS) * g + b


def _gelu_new(x):
    """GPT-2 'new' gelu (tanh approximation), computed in f32 on the VPU/EUP."""
    c = math.sqrt(2.0 / math.pi)
    return 0.5 * x * (1.0 + jnp.tanh(c * (x + 0.044715 * x * x * x)))


# --------------------------------- fused kernel -------------------------------
def _fused_forward_kernel(mask_ref, h0_ref,
                          ln1_g_ref, ln1_b_ref, attn_w_ref, attn_b_ref,
                          attn_pw_ref, attn_pb_ref, ln2_g_ref, ln2_b_ref,
                          fc_w_ref, fc_b_ref, mlp_pw_ref, mlp_pb_ref,
                          lnf_g_ref, lnf_b_ref, head_w_ref, head_b_ref,
                          out_ref, *, apply_sigmoid):
    Bb, S, D = h0_ref.shape                             # batch block, seq, hidden
    T = Bb * S
    H, Dh = N_HEAD, HEAD_DIM
    mdt = MATMUL_DTYPE
    scale = 1.0 / math.sqrt(Dh)

    h = h0_ref[...].astype(jnp.float32)                 # (Bb, S, D) hidden state
    mask = mask_ref[...].astype(jnp.float32)            # (Bb, 1, S) padding mask

    # Additive attention bias built once in-register: causal (iota) + padding.
    row = jax.lax.broadcasted_iota(jnp.int32, (S, S), 0)
    col = jax.lax.broadcasted_iota(jnp.int32, (S, S), 1)
    causal = jnp.where(col <= row, 0.0, NEG_INF)        # (S, S)
    bias = causal[None, :, :] + (1.0 - mask) * NEG_INF  # (Bb, S, S)

    for l in range(N_LAYER):
        # -------- attention sub-block --------
        x = _ln(h, ln1_g_ref[l], ln1_b_ref[l])                       # (Bb, S, D) f32
        x2 = x.reshape(T, D).astype(mdt)                             # (T, D) bf16
        qkv = (jnp.dot(x2, attn_w_ref[l],
                       preferred_element_type=jnp.float32)
               + attn_b_ref[l])                                      # (T, 3D) f32
        qkv3 = qkv.reshape(Bb, S, 3 * D)

        head_outs = []
        for hh in range(H):
            lo = hh * Dh
            qh = qkv3[:, :, lo:lo + Dh].astype(mdt)                  # (Bb, S, Dh)
            kh = qkv3[:, :, D + lo:D + lo + Dh].astype(mdt)
            vh = qkv3[:, :, 2 * D + lo:2 * D + lo + Dh].astype(mdt)
            # scores / softmax batched over the Bb batch elements at once
            s = jnp.einsum('bqd,bkd->bqk', qh, kh,
                           preferred_element_type=jnp.float32) * scale + bias
            s = s - jnp.max(s, axis=-1, keepdims=True)
            p = jnp.exp(s)
            p = p * pl.reciprocal(jnp.sum(p, axis=-1, keepdims=True), approx=True)
            head_outs.append(jnp.einsum('bqk,bkd->bqd', p.astype(mdt), vh,
                                        preferred_element_type=jnp.float32))
        o = jnp.concatenate(head_outs, axis=-1)                      # (Bb, S, D) f32
        # head merge fused into a single (T, D) @ (D, D) output projection
        attn = (jnp.dot(o.reshape(T, D).astype(mdt), attn_pw_ref[l],
                        preferred_element_type=jnp.float32)
                + attn_pb_ref[l])                                    # (T, D) f32
        h = h + attn.reshape(Bb, S, D)                               # residual fused

        # -------- MLP sub-block --------
        x = _ln(h, ln2_g_ref[l], ln2_b_ref[l])
        f = (jnp.dot(x.reshape(T, D).astype(mdt), fc_w_ref[l],
                     preferred_element_type=jnp.float32) + fc_b_ref[l])   # (T, 4D)
        f = _gelu_new(f)
        m = (jnp.dot(f.astype(mdt), mlp_pw_ref[l],
                     preferred_element_type=jnp.float32) + mlp_pb_ref[l]) # (T, D)
        h = h + m.reshape(Bb, S, D)

    # -------- final LN + mean pool + regression head (+ optional sigmoid) -----
    h = _ln(h, lnf_g_ref[...], lnf_b_ref[...])
    pooled = jnp.mean(h, axis=1)                        # (Bb, D)  == torch.mean(dim=1)
    # TODO(synk): nn.Dropout(0.1) is identity in eval mode; training-mode dropout
    # (pltpu.prng_random_bits-based) not implemented.
    logit = (jnp.dot(pooled, head_w_ref[...],
                     preferred_element_type=jnp.float32)
             + head_b_ref[...])                         # (Bb, 1)
    if apply_sigmoid:
        logit = jax.nn.sigmoid(logit)
    out_ref[0] = logit.T.astype(out_ref.dtype)          # lane-dense (1, Bb) store


# ------------------------------- forward wrapper -------------------------------
def gpt2_reward_forward(params, input_ids, attention_mask=None,
                        apply_sigmoid=False, num_batch_blocks=None):
    B, S = input_ids.shape
    if num_batch_blocks is None:
        # One grid step batches the whole (small) batch; use 2 steps only when
        # the batch is big enough that a v7x chip can feed its 2nd TensorCore.
        num_batch_blocks = 2 if B >= 4 else 1
    num_batch_blocks = min(num_batch_blocks, B)
    Bb = pl.cdiv(B, num_batch_blocks)
    Bpad = Bb * num_batch_blocks

    # token + position embedding gather (plain-JAX glue, one-time op)
    h0 = (params["wte"][input_ids]
          + params["wpe"][jnp.arange(S)][None, :, :]).astype(jnp.float32)   # (B, S, D)

    if attention_mask is None:
        mask = jnp.ones((B, 1, S), jnp.float32)
    else:
        mask = attention_mask.astype(jnp.float32).reshape(B, 1, S)

    if Bpad != B:   # pad batch so it splits evenly into blocks (padded rows discarded)
        h0 = jnp.pad(h0, ((0, Bpad - B), (0, 0), (0, 0)))
        mask = jnp.pad(mask, ((0, Bpad - B), (0, 0), (0, 0)))

    weights = tuple(params[name] for name in W_ORDER)

    def weight_spec(a):
        nd = a.ndim
        # constant index map + single buffering: weight stack stays VMEM-resident
        return pl.BlockSpec(a.shape, lambda g, _nd=nd: (0,) * _nd,
                            pipeline_mode=pl.Buffered(1))

    kernel = functools.partial(_fused_forward_kernel, apply_sigmoid=apply_sigmoid)
    out = pl.pallas_call(
        kernel,
        out_shape=jax.ShapeDtypeStruct((num_batch_blocks, 1, Bb), jnp.float32),
        grid=(num_batch_blocks,),
        in_specs=[
            pl.BlockSpec((Bb, 1, S), lambda g: (g, 0, 0)),        # attention mask block
            pl.BlockSpec((Bb, S, N_EMBD), lambda g: (g, 0, 0)),   # embedded tokens block
        ] + [weight_spec(w) for w in weights],                    # weights, VMEM-resident
        out_specs=pl.BlockSpec((1, 1, Bb), lambda g: (g, 0, 0)),  # lane-dense logits
        compiler_params=pltpu.CompilerParams(
            dimension_semantics=("parallel",),                    # megacore over blocks
            vmem_limit_bytes=32 * 1024 * 1024),
    )(mask, h0, *weights)
    return out.reshape(-1)[:B]                                    # .squeeze(-1)


# ------------------------------- parameter init --------------------------------
def init_params(key):
    def nrm(k, shape, scale=0.02, dtype=jnp.float32):
        return (scale * jax.random.normal(k, shape)).astype(dtype)

    ks = iter(jax.random.split(key, 16))
    D, L = N_EMBD, N_LAYER
    mdt = MATMUL_DTYPE
    params = {
        "wte": nrm(next(ks), (VOCAB, D)),
        "wpe": nrm(next(ks), (N_POS, D), 0.01),
        # per-layer weights stacked along leading layer axis (Conv1D: x @ W + b)
        "ln1_g": jnp.ones((L, 1, D), jnp.float32),
        "ln1_b": jnp.zeros((L, 1, D), jnp.float32),
        "attn_w": nrm(next(ks), (L, D, 3 * D), dtype=mdt),
        "attn_b": jnp.zeros((L, 1, 3 * D), jnp.float32),
        "attn_proj_w": nrm(next(ks), (L, D, D), dtype=mdt),
        "attn_proj_b": jnp.zeros((L, 1, D), jnp.float32),
        "ln2_g": jnp.ones((L, 1, D), jnp.float32),
        "ln2_b": jnp.zeros((L, 1, D), jnp.float32),
        "fc_w": nrm(next(ks), (L, D, 4 * D), dtype=mdt),
        "fc_b": jnp.zeros((L, 1, 4 * D), jnp.float32),
        "mlp_proj_w": nrm(next(ks), (L, 4 * D, D), dtype=mdt),
        "mlp_proj_b": jnp.zeros((L, 1, D), jnp.float32),
        "lnf_g": jnp.ones((1, D), jnp.float32),
        "lnf_b": jnp.zeros((1, D), jnp.float32),
    }
    # regression_head: nn.Linear(n_embd, 1), xavier_uniform weight, zero bias
    limit = math.sqrt(6.0 / (D + 1))
    params["head_w"] = jax.random.uniform(
        next(ks), (D, 1), minval=-limit, maxval=limit).astype(jnp.float32)
    params["head_b"] = jnp.zeros((1, 1), jnp.float32)
    return params


# ------------------------------------ main --------------------------------------
if __name__ == "__main__":
    key = jax.random.PRNGKey(0)
    pkey, ikey = jax.random.split(key)
    params = init_params(pkey)

    B, S = 2, 8
    input_ids = jax.random.randint(ikey, (B, S), 0, VOCAB, dtype=jnp.int32)
    attention_mask = jnp.ones((B, S), dtype=jnp.int32)

    logits = gpt2_reward_forward(params, input_ids, attention_mask,
                                 apply_sigmoid=False)
    logits = jax.block_until_ready(logits)
    assert logits.shape == (B,)
    assert bool(jnp.all(jnp.isfinite(logits)))

    probs = gpt2_reward_forward(params, input_ids, attention_mask,
                                apply_sigmoid=True)
    probs = jax.block_until_ready(probs)
    assert probs.shape == (B,)
    assert bool(jnp.all((probs >= 0.0) & (probs <= 1.0)))

    print("KERNEL_OK")
</pallas_src>

<mosaic_0001>
module attributes {stable_mosaic.version = 11 : i64} {
  func.func @_fused_forward_kernel(%arg0: i32, %arg1: memref<2x1x8xf32, #tpu.memory_space<vmem>>, %arg2: memref<2x8x32xf32, #tpu.memory_space<vmem>>, %arg3: memref<2x1x32xf32, #tpu.memory_space<vmem>>, %arg4: memref<2x1x32xf32, #tpu.memory_space<vmem>>, %arg5: memref<2x32x96xbf16, #tpu.memory_space<vmem>>, %arg6: memref<2x1x96xf32, #tpu.memory_space<vmem>>, %arg7: memref<2x32x32xbf16, #tpu.memory_space<vmem>>, %arg8: memref<2x1x32xf32, #tpu.memory_space<vmem>>, %arg9: memref<2x1x32xf32, #tpu.memory_space<vmem>>, %arg10: memref<2x1x32xf32, #tpu.memory_space<vmem>>, %arg11: memref<2x32x128xbf16, #tpu.memory_space<vmem>>, %arg12: memref<2x1x128xf32, #tpu.memory_space<vmem>>, %arg13: memref<2x128x32xbf16, #tpu.memory_space<vmem>>, %arg14: memref<2x1x32xf32, #tpu.memory_space<vmem>>, %arg15: memref<1x32xf32, #tpu.memory_space<vmem>>, %arg16: memref<1x32xf32, #tpu.memory_space<vmem>>, %arg17: memref<32x1xf32, #tpu.memory_space<vmem>>, %arg18: memref<1x1xf32, #tpu.memory_space<vmem>>, %arg19: memref<1x1x2xf32, #tpu.memory_space<vmem>>) attributes {dimension_semantics = [#tpu.dimension_semantics<parallel>], iteration_bounds = array<i64: 1>, scalar_prefetch = 0 : i64, scratch_operands = 0 : i64, tpu.core_type = #tpu.core_type<tc>, window_params = [{transform_indices = @transform_0, window_bounds = array<i64: 2, 1, 8>}, {transform_indices = @transform_1, window_bounds = array<i64: 2, 8, 32>}, {pipeline_mode = #tpu.pipeline_mode<synchronous>, transform_indices = @transform_2, window_bounds = array<i64: 2, 1, 32>}, {pipeline_mode = #tpu.pipeline_mode<synchronous>, transform_indices = @transform_3, window_bounds = array<i64: 2, 1, 32>}, {pipeline_mode = #tpu.pipeline_mode<synchronous>, transform_indices = @transform_4, window_bounds = array<i64: 2, 32, 96>}, {pipeline_mode = #tpu.pipeline_mode<synchronous>, transform_indices = @transform_5, window_bounds = array<i64: 2, 1, 96>}, {pipeline_mode = #tpu.pipeline_mode<synchronous>, transform_indices = @transform_6, window_bounds = array<i64: 2, 32, 32>}, {pipeline_mode = #tpu.pipeline_mode<synchronous>, transform_indices = @transform_7, window_bounds = array<i64: 2, 1, 32>}, {pipeline_mode = #tpu.pipeline_mode<synchronous>, transform_indices = @transform_8, window_bounds = array<i64: 2, 1, 32>}, {pipeline_mode = #tpu.pipeline_mode<synchronous>, transform_indices = @transform_9, window_bounds = array<i64: 2, 1, 32>}, {pipeline_mode = #tpu.pipeline_mode<synchronous>, transform_indices = @transform_10, window_bounds = array<i64: 2, 32, 128>}, {pipeline_mode = #tpu.pipeline_mode<synchronous>, transform_indices = @transform_11, window_bounds = array<i64: 2, 1, 128>}, {pipeline_mode = #tpu.pipeline_mode<synchronous>, transform_indices = @transform_12, window_bounds = array<i64: 2, 128, 32>}, {pipeline_mode = #tpu.pipeline_mode<synchronous>, transform_indices = @transform_13, window_bounds = array<i64: 2, 1, 32>}, {pipeline_mode = #tpu.pipeline_mode<synchronous>, transform_indices = @transform_14, window_bounds = array<i64: 1, 32>}, {pipeline_mode = #tpu.pipeline_mode<synchronous>, transform_indices = @transform_15, window_bounds = array<i64: 1, 32>}, {pipeline_mode = #tpu.pipeline_mode<synchronous>, transform_indices = @transform_16, window_bounds = array<i64: 32, 1>}, {pipeline_mode = #tpu.pipeline_mode<synchronous>, transform_indices = @transform_17, window_bounds = array<i64: 1, 1>}, {transform_indices = @transform_18, window_bounds = array<i64: 1, 1, 2>}]} {
    %c0 = arith.constant 0 : index
    %c0_0 = arith.constant 0 : index
    %c0_1 = arith.constant 0 : index
    %0 = vector.load %arg2[%c0, %c0_0, %c0_1] : memref<2x8x32xf32, #tpu.memory_space<vmem>>, vector<2x8x32xf32>
    %c0_2 = arith.constant 0 : index
    %c0_3 = arith.constant 0 : index
    %c0_4 = arith.constant 0 : index
    %1 = vector.load %arg1[%c0_2, %c0_3, %c0_4] : memref<2x1x8xf32, #tpu.memory_space<vmem>>, vector<2x1x8xf32>
    %2 = tpu.iota {dimensions = array<i32: 0>} : vector<8x8xi32>
    %3 = tpu.iota {dimensions = array<i32: 1>} : vector<8x8xi32>
    %4 = arith.cmpi sle, %3, %2 : vector<8x8xi32>
    %cst = arith.constant 0.000000e+00 : f32
    %cst_5 = arith.constant -1.000000e+09 : f32
    %5 = vector.broadcast %cst : f32 to vector<8x8xf32>
    %6 = vector.broadcast %cst_5 : f32 to vector<8x8xf32>
    %7 = arith.select %4, %5, %6 : vector<8x8xi1>, vector<8x8xf32>
    %8 = vector.shape_cast %7 : vector<8x8xf32> to vector<1x8x8xf32>
    %cst_6 = arith.constant 1.000000e+00 : f32
    %9 = vector.broadcast %cst_6 : f32 to vector<2x1x8xf32>
    %10 = arith.subf %9, %1 : vector<2x1x8xf32>
    %cst_7 = arith.constant -1.000000e+09 : f32
    %11 = vector.broadcast %cst_7 : f32 to vector<2x1x8xf32>
    %12 = arith.mulf %10, %11 : vector<2x1x8xf32>
    %13 = vector.broadcast %8 : vector<1x8x8xf32> to vector<2x8x8xf32>
    %14 = vector.broadcast %12 : vector<2x1x8xf32> to vector<2x8x8xf32>
    %15 = arith.addf %13, %14 : vector<2x8x8xf32>
    %c0_8 = arith.constant 0 : index
    %c0_9 = arith.constant 0 : index
    %c0_10 = arith.constant 0 : index
    %16 = vector.load %arg3[%c0_8, %c0_9, %c0_10] : memref<2x1x32xf32, #tpu.memory_space<vmem>>, vector<1x1x32xf32>
    %17 = vector.shape_cast %16 : vector<1x1x32xf32> to vector<1x32xf32>
    %c0_11 = arith.constant 0 : index
    %c0_12 = arith.constant 0 : index
    %c0_13 = arith.constant 0 : index
    %18 = vector.load %arg4[%c0_11, %c0_12, %c0_13] : memref<2x1x32xf32, #tpu.memory_space<vmem>>, vector<1x1x32xf32>
    %19 = vector.shape_cast %18 : vector<1x1x32xf32> to vector<1x32xf32>
    %cst_14 = arith.constant dense<0.000000e+00> : vector<2x8xf32>
    %20 = vector.multi_reduction <add>, %0, %cst_14 [2] : vector<2x8x32xf32> to vector<2x8xf32>
    %21 = vector.shape_cast %20 : vector<2x8xf32> to vector<2x8x1xf32>
    %cst_15 = arith.constant 3.200000e+01 : f32
    %22 = vector.broadcast %cst_15 : f32 to vector<2x8x1xf32>
    %23 = arith.divf %21, %22 : vector<2x8x1xf32>
    %24 = vector.broadcast %23 : vector<2x8x1xf32> to vector<2x8x32xf32>
    %25 = arith.subf %0, %24 : vector<2x8x32xf32>
    %26 = arith.mulf %25, %25 : vector<2x8x32xf32>
    %cst_16 = arith.constant dense<0.000000e+00> : vector<2x8xf32>
    %27 = vector.multi_reduction <add>, %26, %cst_16 [2] : vector<2x8x32xf32> to vector<2x8xf32>
    %28 = vector.shape_cast %27 : vector<2x8xf32> to vector<2x8x1xf32>
    %cst_17 = arith.constant 3.200000e+01 : f32
    %29 = vector.broadcast %cst_17 : f32 to vector<2x8x1xf32>
    %30 = arith.divf %28, %29 : vector<2x8x1xf32>
    %cst_18 = arith.constant 9.99999974E-6 : f32
    %31 = vector.broadcast %cst_18 : f32 to vector<2x8x1xf32>
    %32 = arith.addf %30, %31 : vector<2x8x1xf32>
    %33 = math.rsqrt %32 : vector<2x8x1xf32>
    %34 = vector.broadcast %33 : vector<2x8x1xf32> to vector<2x8x32xf32>
    %35 = arith.mulf %25, %34 : vector<2x8x32xf32>
    %36 = vector.shape_cast %17 : vector<1x32xf32> to vector<1x1x32xf32>
    %37 = vector.broadcast %36 : vector<1x1x32xf32> to vector<2x8x32xf32>
    %38 = arith.mulf %35, %37 : vector<2x8x32xf32>
    %39 = vector.shape_cast %19 : vector<1x32xf32> to vector<1x1x32xf32>
    %40 = vector.broadcast %39 : vector<1x1x32xf32> to vector<2x8x32xf32>
    %41 = arith.addf %38, %40 : vector<2x8x32xf32>
    %42 = vector.shape_cast %41 : vector<2x8x32xf32> to vector<16x32xf32>
    %43 = arith.truncf %42 : vector<16x32xf32> to vector<16x32xbf16>
    %c0_19 = arith.constant 0 : index
    %c0_20 = arith.constant 0 : index
    %c0_21 = arith.constant 0 : index
    %44 = vector.load %arg5[%c0_19, %c0_20, %c0_21] : memref<2x32x96xbf16, #tpu.memory_space<vmem>>, vector<1x32x96xbf16>
    %45 = vector.shape_cast %44 : vector<1x32x96xbf16> to vector<32x96xbf16>
    %cst_22 = arith.constant dense<0.000000e+00> : vector<16x96xf32>
    %46 = tpu.matmul %43, %45, %cst_22 {dimension_numbers = #tpu.dot_dimension_numbers<[1], [0], [0], [1], [0, 0, 1, 1], [], []>} : vector<16x32xbf16>, vector<32x96xbf16>, vector<16x96xf32> -> vector<16x96xf32>
    %c0_23 = arith.constant 0 : index
    %c0_24 = arith.constant 0 : index
    %c0_25 = arith.constant 0 : index
    %47 = vector.load %arg6[%c0_23, %c0_24, %c0_25] : memref<2x1x96xf32, #tpu.memory_space<vmem>>, vector<1x1x96xf32>
    %48 = vector.shape_cast %47 : vector<1x1x96xf32> to vector<1x96xf32>
    %49 = vector.broadcast %48 : vector<1x96xf32> to vector<16x96xf32>
    %50 = arith.addf %46, %49 : vector<16x96xf32>
    %51 = vector.shape_cast %50 : vector<16x96xf32> to vector<2x8x96xf32>
    %52 = vector.extract_strided_slice %51 {offsets = [0, 0, 0], sizes = [2, 8, 8], strides = [1, 1, 1]} : vector<2x8x96xf32> to vector<2x8x8xf32>
    %53 = arith.truncf %52 : vector<2x8x8xf32> to vector<2x8x8xbf16>
    %54 = vector.extract_strided_slice %51 {offsets = [0, 0, 32], sizes = [2, 8, 8], strides = [1, 1, 1]} : vector<2x8x96xf32> to vector<2x8x8xf32>
    %55 = arith.truncf %54 : vector<2x8x8xf32> to vector<2x8x8xbf16>
    %56 = vector.extract_strided_slice %51 {offsets = [0, 0, 64], sizes = [2, 8, 8], strides = [1, 1, 1]} : vector<2x8x96xf32> to vector<2x8x8xf32>
    %57 = arith.truncf %56 : vector<2x8x8xf32> to vector<2x8x8xbf16>
    "tpu.trace_start"() <{level = 10 : i32, message = "bqd,bkd->bqk"}> : () -> ()
    %cst_26 = arith.constant dense<0.000000e+00> : vector<2x8x8xf32>
    %58 = tpu.matmul %53, %55, %cst_26 {dimension_numbers = #tpu.dot_dimension_numbers<[2], [2], [1], [1], [0, 0, 0, 1, 1, 1], [0], [0]>} : vector<2x8x8xbf16>, vector<2x8x8xbf16>, vector<2x8x8xf32> -> vector<2x8x8xf32>
    "tpu.trace_stop"() : () -> ()
    %cst_27 = arith.constant 0.353553385 : f32
    %59 = vector.broadcast %cst_27 : f32 to vector<2x8x8xf32>
    %60 = arith.mulf %58, %59 : vector<2x8x8xf32>
    %61 = arith.addf %60, %15 : vector<2x8x8xf32>
    %cst_28 = arith.constant dense<0xFF800000> : vector<2x8xf32>
    %62 = vector.multi_reduction <maximumf>, %61, %cst_28 [2] : vector<2x8x8xf32> to vector<2x8xf32>
    %63 = vector.shape_cast %62 : vector<2x8xf32> to vector<2x8x1xf32>
    %64 = vector.broadcast %63 : vector<2x8x1xf32> to vector<2x8x8xf32>
    %65 = arith.subf %61, %64 : vector<2x8x8xf32>
    %66 = math.exp %65 : vector<2x8x8xf32>
    %cst_29 = arith.constant dense<0.000000e+00> : vector<2x8xf32>
    %67 = vector.multi_reduction <add>, %66, %cst_29 [2] : vector<2x8x8xf32> to vector<2x8xf32>
    %68 = vector.shape_cast %67 : vector<2x8xf32> to vector<2x8x1xf32>
    %69 = tpu.reciprocal %68 {approx = true} : vector<2x8x1xf32> -> vector<2x8x1xf32>
    %70 = vector.broadcast %69 : vector<2x8x1xf32> to vector<2x8x8xf32>
    %71 = arith.mulf %66, %70 : vector<2x8x8xf32>
    %72 = arith.truncf %71 : vector<2x8x8xf32> to vector<2x8x8xbf16>
    "tpu.trace_start"() <{level = 10 : i32, message = "bqk,bkd->bqd"}> : () -> ()
    %cst_30 = arith.constant dense<0.000000e+00> : vector<2x8x8xf32>
    %73 = tpu.matmul %72, %57, %cst_30 {dimension_numbers = #tpu.dot_dimension_numbers<[2], [1], [1], [2], [0, 0, 0, 1, 1, 2], [0], [0]>} : vector<2x8x8xbf16>, vector<2x8x8xbf16>, vector<2x8x8xf32> -> vector<2x8x8xf32>
    "tpu.trace_stop"() : () -> ()
    %74 = vector.extract_strided_slice %51 {offsets = [0, 0, 8], sizes = [2, 8, 8], strides = [1, 1, 1]} : vector<2x8x96xf32> to vector<2x8x8xf32>
    %75 = arith.truncf %74 : vector<2x8x8xf32> to vector<2x8x8xbf16>
    %76 = vector.extract_strided_slice %51 {offsets = [0, 0, 40], sizes = [2, 8, 8], strides = [1, 1, 1]} : vector<2x8x96xf32> to vector<2x8x8xf32>
    %77 = arith.truncf %76 : vector<2x8x8xf32> to vector<2x8x8xbf16>
    %78 = vector.extract_strided_slice %51 {offsets = [0, 0, 72], sizes = [2, 8, 8], strides = [1, 1, 1]} : vector<2x8x96xf32> to vector<2x8x8xf32>
    %79 = arith.truncf %78 : vector<2x8x8xf32> to vector<2x8x8xbf16>
    "tpu.trace_start"() <{level = 10 : i32, message = "bqd,bkd->bqk"}> : () -> ()
    %cst_31 = arith.constant dense<0.000000e+00> : vector<2x8x8xf32>
    %80 = tpu.matmul %75, %77, %cst_31 {dimension_numbers = #tpu.dot_dimension_numbers<[2], [2], [1], [1], [0, 0, 0, 1, 1, 1], [0], [0]>} : vector<2x8x8xbf16>, vector<2x8x8xbf16>, vector<2x8x8xf32> -> vector<2x8x8xf32>
    "tpu.trace_stop"() : () -> ()
    %cst_32 = arith.constant 0.353553385 : f32
    %81 = vector.broadcast %cst_32 : f32 to vector<2x8x8xf32>
    %82 = arith.mulf %80, %81 : vector<2x8x8xf32>
    %83 = arith.addf %82, %15 : vector<2x8x8xf32>
    %cst_33 = arith.constant dense<0xFF800000> : vector<2x8xf32>
    %84 = vector.multi_reduction <maximumf>, %83, %cst_33 [2] : vector<2x8x8xf32> to vector<2x8xf32>
    %85 = vector.shape_cast %84 : vector<2x8xf32> to vector<2x8x1xf32>
    %86 = vector.broadcast %85 : vector<2x8x1xf32> to vector<2x8x8xf32>
    %87 = arith.subf %83, %86 : vector<2x8x8xf32>
    %88 = math.exp %87 : vector<2x8x8xf32>
    %cst_34 = arith.constant dense<0.000000e+00> : vector<2x8xf32>
    %89 = vector.multi_reduction <add>, %88, %cst_34 [2] : vector<2x8x8xf32> to vector<2x8xf32>
    %90 = vector.shape_cast %89 : vector<2x8xf32> to vector<2x8x1xf32>
    %91 = tpu.reciprocal %90 {approx = true} : vector<2x8x1xf32> -> vector<2x8x1xf32>
    %92 = vector.broadcast %91 : vector<2x8x1xf32> to vector<2x8x8xf32>
    %93 = arith.mulf %88, %92 : vector<2x8x8xf32>
    %94 = arith.truncf %93 : vector<2x8x8xf32> to vector<2x8x8xbf16>
    "tpu.trace_start"() <{level = 10 : i32, message = "bqk,bkd->bqd"}> : () -> ()
    %cst_35 = arith.constant dense<0.000000e+00> : vector<2x8x8xf32>
    %95 = tpu.matmul %94, %79, %cst_35 {dimension_numbers = #tpu.dot_dimension_numbers<[2], [1], [1], [2], [0, 0, 0, 1, 1, 2], [0], [0]>} : vector<2x8x8xbf16>, vector<2x8x8xbf16>, vector<2x8x8xf32> -> vector<2x8x8xf32>
    "tpu.trace_stop"() : () -> ()
    %96 = vector.extract_strided_slice %51 {offsets = [0, 0, 16], sizes = [2, 8, 8], strides = [1, 1, 1]} : vector<2x8x96xf32> to vector<2x8x8xf32>
    %97 = arith.truncf %96 : vector<2x8x8xf32> to vector<2x8x8xbf16>
    %98 = vector.extract_strided_slice %51 {offsets = [0, 0, 48], sizes = [2, 8, 8], strides = [1, 1, 1]} : vector<2x8x96xf32> to vector<2x8x8xf32>
    %99 = arith.truncf %98 : vector<2x8x8xf32> to vector<2x8x8xbf16>
    %100 = vector.extract_strided_slice %51 {offsets = [0, 0, 80], sizes = [2, 8, 8], strides = [1, 1, 1]} : vector<2x8x96xf32> to vector<2x8x8xf32>
    %101 = arith.truncf %100 : vector<2x8x8xf32> to vector<2x8x8xbf16>
    "tpu.trace_start"() <{level = 10 : i32, message = "bqd,bkd->bqk"}> : () -> ()
    %cst_36 = arith.constant dense<0.000000e+00> : vector<2x8x8xf32>
    %102 = tpu.matmul %97, %99, %cst_36 {dimension_numbers = #tpu.dot_dimension_numbers<[2], [2], [1], [1], [0, 0, 0, 1, 1, 1], [0], [0]>} : vector<2x8x8xbf16>, vector<2x8x8xbf16>, vector<2x8x8xf32> -> vector<2x8x8xf32>
    "tpu.trace_stop"() : () -> ()
    %cst_37 = arith.constant 0.353553385 : f32
    %103 = vector.broadcast %cst_37 : f32 to vector<2x8x8xf32>
    %104 = arith.mulf %102, %103 : vector<2x8x8xf32>
    %105 = arith.addf %104, %15 : vector<2x8x8xf32>
    %cst_38 = arith.constant dense<0xFF800000> : vector<2x8xf32>
    %106 = vector.multi_reduction <maximumf>, %105, %cst_38 [2] : vector<2x8x8xf32> to vector<2x8xf32>
    %107 = vector.shape_cast %106 : vector<2x8xf32> to vector<2x8x1xf32>
    %108 = vector.broadcast %107 : vector<2x8x1xf32> to vector<2x8x8xf32>
    %109 = arith.subf %105, %108 : vector<2x8x8xf32>
    %110 = math.exp %109 : vector<2x8x8xf32>
    %cst_39 = arith.constant dense<0.000000e+00> : vector<2x8xf32>
    %111 = vector.multi_reduction <add>, %110, %cst_39 [2] : vector<2x8x8xf32> to vector<2x8xf32>
    %112 = vector.shape_cast %111 : vector<2x8xf32> to vector<2x8x1xf32>
    %113 = tpu.reciprocal %112 {approx = true} : vector<2x8x1xf32> -> vector<2x8x1xf32>
    %114 = vector.broadcast %113 : vector<2x8x1xf32> to vector<2x8x8xf32>
    %115 = arith.mulf %110, %114 : vector<2x8x8xf32>
    %116 = arith.truncf %115 : vector<2x8x8xf32> to vector<2x8x8xbf16>
    "tpu.trace_start"() <{level = 10 : i32, message = "bqk,bkd->bqd"}> : () -> ()
    %cst_40 = arith.constant dense<0.000000e+00> : vector<2x8x8xf32>
    %117 = tpu.matmul %116, %101, %cst_40 {dimension_numbers = #tpu.dot_dimension_numbers<[2], [1], [1], [2], [0, 0, 0, 1, 1, 2], [0], [0]>} : vector<2x8x8xbf16>, vector<2x8x8xbf16>, vector<2x8x8xf32> -> vector<2x8x8xf32>
    "tpu.trace_stop"() : () -> ()
    %118 = vector.extract_strided_slice %51 {offsets = [0, 0, 24], sizes = [2, 8, 8], strides = [1, 1, 1]} : vector<2x8x96xf32> to vector<2x8x8xf32>
    %119 = arith.truncf %118 : vector<2x8x8xf32> to vector<2x8x8xbf16>
    %120 = vector.extract_strided_slice %51 {offsets = [0, 0, 56], sizes = [2, 8, 8], strides = [1, 1, 1]} : vector<2x8x96xf32> to vector<2x8x8xf32>
    %121 = arith.truncf %120 : vector<2x8x8xf32> to vector<2x8x8xbf16>
    %122 = vector.extract_strided_slice %51 {offsets = [0, 0, 88], sizes = [2, 8, 8], strides = [1, 1, 1]} : vector<2x8x96xf32> to vector<2x8x8xf32>
    %123 = arith.truncf %122 : vector<2x8x8xf32> to vector<2x8x8xbf16>
    "tpu.trace_start"() <{level = 10 : i32, message = "bqd,bkd->bqk"}> : () -> ()
    %cst_41 = arith.constant dense<0.000000e+00> : vector<2x8x8xf32>
    %124 = tpu.matmul %119, %121, %cst_41 {dimension_numbers = #tpu.dot_dimension_numbers<[2], [2], [1], [1], [0, 0, 0, 1, 1, 1], [0], [0]>} : vector<2x8x8xbf16>, vector<2x8x8xbf16>, vector<2x8x8xf32> -> vector<2x8x8xf32>
    "tpu.trace_stop"() : () -> ()
    %cst_42 = arith.constant 0.353553385 : f32
    %125 = vector.broadcast %cst_42 : f32 to vector<2x8x8xf32>
    %126 = arith.mulf %124, %125 : vector<2x8x8xf32>
    %127 = arith.addf %126, %15 : vector<2x8x8xf32>
    %cst_43 = arith.constant dense<0xFF800000> : vector<2x8xf32>
    %128 = vector.multi_reduction <maximumf>, %127, %cst_43 [2] : vector<2x8x8xf32> to vector<2x8xf32>
    %129 = vector.shape_cast %128 : vector<2x8xf32> to vector<2x8x1xf32>
    %130 = vector.broadcast %129 : vector<2x8x1xf32> to vector<2x8x8xf32>
    %131 = arith.subf %127, %130 : vector<2x8x8xf32>
    %132 = math.exp %131 : vector<2x8x8xf32>
    %cst_44 = arith.constant dense<0.000000e+00> : vector<2x8xf32>
    %133 = vector.multi_reduction <add>, %132, %cst_44 [2] : vector<2x8x8xf32> to vector<2x8xf32>
    %134 = vector.shape_cast %133 : vector<2x8xf32> to vector<2x8x1xf32>
    %135 = tpu.reciprocal %134 {approx = true} : vector<2x8x1xf32> -> vector<2x8x1xf32>
    %136 = vector.broadcast %135 : vector<2x8x1xf32> to vector<2x8x8xf32>
    %137 = arith.mulf %132, %136 : vector<2x8x8xf32>
    %138 = arith.truncf %137 : vector<2x8x8xf32> to vector<2x8x8xbf16>
    "tpu.trace_start"() <{level = 10 : i32, message = "bqk,bkd->bqd"}> : () -> ()
    %cst_45 = arith.constant dense<0.000000e+00> : vector<2x8x8xf32>
    %139 = tpu.matmul %138, %123, %cst_45 {dimension_numbers = #tpu.dot_dimension_numbers<[2], [1], [1], [2], [0, 0, 0, 1, 1, 2], [0], [0]>} : vector<2x8x8xbf16>, vector<2x8x8xbf16>, vector<2x8x8xf32> -> vector<2x8x8xf32>
    "tpu.trace_stop"() : () -> ()
    %140 = tpu.concatenate %73, %95, %117, %139 in 2 : vector<2x8x8xf32>, vector<2x8x8xf32>, vector<2x8x8xf32>, vector<2x8x8xf32> -> vector<2x8x32xf32>
    %141 = vector.shape_cast %140 : vector<2x8x32xf32> to vector<16x32xf32>
    %142 = arith.truncf %141 : vector<16x32xf32> to vector<16x32xbf16>
    %c0_46 = arith.constant 0 : index
    %c0_47 = arith.constant 0 : index
    %c0_48 = arith.constant 0 : index
    %143 = vector.load %arg7[%c0_46, %c0_47, %c0_48] : memref<2x32x32xbf16, #tpu.memory_space<vmem>>, vector<1x32x32xbf16>
    %144 = vector.shape_cast %143 : vector<1x32x32xbf16> to vector<32x32xbf16>
    %cst_49 = arith.constant dense<0.000000e+00> : vector<16x32xf32>
    %145 = tpu.matmul %142, %144, %cst_49 {dimension_numbers = #tpu.dot_dimension_numbers<[1], [0], [0], [1], [0, 0, 1, 1], [], []>} : vector<16x32xbf16>, vector<32x32xbf16>, vector<16x32xf32> -> vector<16x32xf32>
    %c0_50 = arith.constant 0 : index
    %c0_51 = arith.constant 0 : index
    %c0_52 = arith.constant 0 : index
    %146 = vector.load %arg8[%c0_50, %c0_51, %c0_52] : memref<2x1x32xf32, #tpu.memory_space<vmem>>, vector<1x1x32xf32>
    %147 = vector.shape_cast %146 : vector<1x1x32xf32> to vector<1x32xf32>
    %148 = vector.broadcast %147 : vector<1x32xf32> to vector<16x32xf32>
    %149 = arith.addf %145, %148 : vector<16x32xf32>
    %150 = vector.shape_cast %149 : vector<16x32xf32> to vector<2x8x32xf32>
    %151 = arith.addf %0, %150 : vector<2x8x32xf32>
    %c0_53 = arith.constant 0 : index
    %c0_54 = arith.constant 0 : index
    %c0_55 = arith.constant 0 : index
    %152 = vector.load %arg9[%c0_53, %c0_54, %c0_55] : memref<2x1x32xf32, #tpu.memory_space<vmem>>, vector<1x1x32xf32>
    %153 = vector.shape_cast %152 : vector<1x1x32xf32> to vector<1x32xf32>
    %c0_56 = arith.constant 0 : index
    %c0_57 = arith.constant 0 : index
    %c0_58 = arith.constant 0 : index
    %154 = vector.load %arg10[%c0_56, %c0_57, %c0_58] : memref<2x1x32xf32, #tpu.memory_space<vmem>>, vector<1x1x32xf32>
    %155 = vector.shape_cast %154 : vector<1x1x32xf32> to vector<1x32xf32>
    %cst_59 = arith.constant dense<0.000000e+00> : vector<2x8xf32>
    %156 = vector.multi_reduction <add>, %151, %cst_59 [2] : vector<2x8x32xf32> to vector<2x8xf32>
    %157 = vector.shape_cast %156 : vector<2x8xf32> to vector<2x8x1xf32>
    %cst_60 = arith.constant 3.200000e+01 : f32
    %158 = vector.broadcast %cst_60 : f32 to vector<2x8x1xf32>
    %159 = arith.divf %157, %158 : vector<2x8x1xf32>
    %160 = vector.broadcast %159 : vector<2x8x1xf32> to vector<2x8x32xf32>
    %161 = arith.subf %151, %160 : vector<2x8x32xf32>
    %162 = arith.mulf %161, %161 : vector<2x8x32xf32>
    %cst_61 = arith.constant dense<0.000000e+00> : vector<2x8xf32>
    %163 = vector.multi_reduction <add>, %162, %cst_61 [2] : vector<2x8x32xf32> to vector<2x8xf32>
    %164 = vector.shape_cast %163 : vector<2x8xf32> to vector<2x8x1xf32>
    %cst_62 = arith.constant 3.200000e+01 : f32
    %165 = vector.broadcast %cst_62 : f32 to vector<2x8x1xf32>
    %166 = arith.divf %164, %165 : vector<2x8x1xf32>
    %cst_63 = arith.constant 9.99999974E-6 : f32
    %167 = vector.broadcast %cst_63 : f32 to vector<2x8x1xf32>
    %168 = arith.addf %166, %167 : vector<2x8x1xf32>
    %169 = math.rsqrt %168 : vector<2x8x1xf32>
    %170 = vector.broadcast %169 : vector<2x8x1xf32> to vector<2x8x32xf32>
    %171 = arith.mulf %161, %170 : vector<2x8x32xf32>
    %172 = vector.shape_cast %153 : vector<1x32xf32> to vector<1x1x32xf32>
    %173 = vector.broadcast %172 : vector<1x1x32xf32> to vector<2x8x32xf32>
    %174 = arith.mulf %171, %173 : vector<2x8x32xf32>
    %175 = vector.shape_cast %155 : vector<1x32xf32> to vector<1x1x32xf32>
    %176 = vector.broadcast %175 : vector<1x1x32xf32> to vector<2x8x32xf32>
    %177 = arith.addf %174, %176 : vector<2x8x32xf32>
    %178 = vector.shape_cast %177 : vector<2x8x32xf32> to vector<16x32xf32>
    %179 = arith.truncf %178 : vector<16x32xf32> to vector<16x32xbf16>
    %c0_64 = arith.constant 0 : index
    %c0_65 = arith.constant 0 : index
    %c0_66 = arith.constant 0 : index
    %180 = vector.load %arg11[%c0_64, %c0_65, %c0_66] : memref<2x32x128xbf16, #tpu.memory_space<vmem>>, vector<1x32x128xbf16>
    %181 = vector.shape_cast %180 : vector<1x32x128xbf16> to vector<32x128xbf16>
    %cst_67 = arith.constant dense<0.000000e+00> : vector<16x128xf32>
    %182 = tpu.matmul %179, %181, %cst_67 {dimension_numbers = #tpu.dot_dimension_numbers<[1], [0], [0], [1], [0, 0, 1, 1], [], []>} : vector<16x32xbf16>, vector<32x128xbf16>, vector<16x128xf32> -> vector<16x128xf32>
    %c0_68 = arith.constant 0 : index
    %c0_69 = arith.constant 0 : index
    %c0_70 = arith.constant 0 : index
    %183 = vector.load %arg12[%c0_68, %c0_69, %c0_70] : memref<2x1x128xf32, #tpu.memory_space<vmem>>, vector<1x1x128xf32>
    %184 = vector.shape_cast %183 : vector<1x1x128xf32> to vector<1x128xf32>
    %185 = vector.broadcast %184 : vector<1x128xf32> to vector<16x128xf32>
    %186 = arith.addf %182, %185 : vector<16x128xf32>
    %cst_71 = arith.constant 5.000000e-01 : f32
    %187 = vector.broadcast %cst_71 : f32 to vector<16x128xf32>
    %188 = arith.mulf %187, %186 : vector<16x128xf32>
    %cst_72 = arith.constant 4.471500e-02 : f32
    %189 = vector.broadcast %cst_72 : f32 to vector<16x128xf32>
    %190 = arith.mulf %189, %186 : vector<16x128xf32>
    %191 = arith.mulf %190, %186 : vector<16x128xf32>
    %192 = arith.mulf %191, %186 : vector<16x128xf32>
    %193 = arith.addf %186, %192 : vector<16x128xf32>
    %cst_73 = arith.constant 0.797884583 : f32
    %194 = vector.broadcast %cst_73 : f32 to vector<16x128xf32>
    %195 = arith.mulf %194, %193 : vector<16x128xf32>
    %196 = math.tanh %195 : vector<16x128xf32>
    %cst_74 = arith.constant 1.000000e+00 : f32
    %197 = vector.broadcast %cst_74 : f32 to vector<16x128xf32>
    %198 = arith.addf %197, %196 : vector<16x128xf32>
    %199 = arith.mulf %188, %198 : vector<16x128xf32>
    %200 = arith.truncf %199 : vector<16x128xf32> to vector<16x128xbf16>
    %c0_75 = arith.constant 0 : index
    %c0_76 = arith.constant 0 : index
    %c0_77 = arith.constant 0 : index
    %201 = vector.load %arg13[%c0_75, %c0_76, %c0_77] : memref<2x128x32xbf16, #tpu.memory_space<vmem>>, vector<1x128x32xbf16>
    %202 = vector.shape_cast %201 : vector<1x128x32xbf16> to vector<128x32xbf16>
    %cst_78 = arith.constant dense<0.000000e+00> : vector<16x32xf32>
    %203 = tpu.matmul %200, %202, %cst_78 {dimension_numbers = #tpu.dot_dimension_numbers<[1], [0], [0], [1], [0, 0, 1, 1], [], []>} : vector<16x128xbf16>, vector<128x32xbf16>, vector<16x32xf32> -> vector<16x32xf32>
    %c0_79 = arith.constant 0 : index
    %c0_80 = arith.constant 0 : index
    %c0_81 = arith.constant 0 : index
    %204 = vector.load %arg14[%c0_79, %c0_80, %c0_81] : memref<2x1x32xf32, #tpu.memory_space<vmem>>, vector<1x1x32xf32>
    %205 = vector.shape_cast %204 : vector<1x1x32xf32> to vector<1x32xf32>
    %206 = vector.broadcast %205 : vector<1x32xf32> to vector<16x32xf32>
    %207 = arith.addf %203, %206 : vector<16x32xf32>
    %208 = vector.shape_cast %207 : vector<16x32xf32> to vector<2x8x32xf32>
    %209 = arith.addf %151, %208 : vector<2x8x32xf32>
    %c1 = arith.constant 1 : index
    %c0_82 = arith.constant 0 : index
    %c0_83 = arith.constant 0 : index
    %210 = vector.load %arg3[%c1, %c0_82, %c0_83] : memref<2x1x32xf32, #tpu.memory_space<vmem>>, vector<1x1x32xf32>
    %211 = vector.shape_cast %210 : vector<1x1x32xf32> to vector<1x32xf32>
    %c1_84 = arith.constant 1 : index
    %c0_85 = arith.constant 0 : index
    %c0_86 = arith.constant 0 : index
    %212 = vector.load %arg4[%c1_84, %c0_85, %c0_86] : memref<2x1x32xf32, #tpu.memory_space<vmem>>, vector<1x1x32xf32>
    %213 = vector.shape_cast %212 : vector<1x1x32xf32> to vector<1x32xf32>
    %cst_87 = arith.constant dense<0.000000e+00> : vector<2x8xf32>
    %214 = vector.multi_reduction <add>, %209, %cst_87 [2] : vector<2x8x32xf32> to vector<2x8xf32>
    %215 = vector.shape_cast %214 : vector<2x8xf32> to vector<2x8x1xf32>
    %cst_88 = arith.constant 3.200000e+01 : f32
    %216 = vector.broadcast %cst_88 : f32 to vector<2x8x1xf32>
    %217 = arith.divf %215, %216 : vector<2x8x1xf32>
    %218 = vector.broadcast %217 : vector<2x8x1xf32> to vector<2x8x32xf32>
    %219 = arith.subf %209, %218 : vector<2x8x32xf32>
    %220 = arith.mulf %219, %219 : vector<2x8x32xf32>
    %cst_89 = arith.constant dense<0.000000e+00> : vector<2x8xf32>
    %221 = vector.multi_reduction <add>, %220, %cst_89 [2] : vector<2x8x32xf32> to vector<2x8xf32>
    %222 = vector.shape_cast %221 : vector<2x8xf32> to vector<2x8x1xf32>
    %cst_90 = arith.constant 3.200000e+01 : f32
    %223 = vector.broadcast %cst_90 : f32 to vector<2x8x1xf32>
    %224 = arith.divf %222, %223 : vector<2x8x1xf32>
    %cst_91 = arith.constant 9.99999974E-6 : f32
    %225 = vector.broadcast %cst_91 : f32 to vector<2x8x1xf32>
    %226 = arith.addf %224, %225 : vector<2x8x1xf32>
    %227 = math.rsqrt %226 : vector<2x8x1xf32>
    %228 = vector.broadcast %227 : vector<2x8x1xf32> to vector<2x8x32xf32>
    %229 = arith.mulf %219, %228 : vector<2x8x32xf32>
    %230 = vector.shape_cast %211 : vector<1x32xf32> to vector<1x1x32xf32>
    %231 = vector.broadcast %230 : vector<1x1x32xf32> to vector<2x8x32xf32>
    %232 = arith.mulf %229, %231 : vector<2x8x32xf32>
    %233 = vector.shape_cast %213 : vector<1x32xf32> to vector<1x1x32xf32>
    %234 = vector.broadcast %233 : vector<1x1x32xf32> to vector<2x8x32xf32>
    %235 = arith.addf %232, %234 : vector<2x8x32xf32>
    %236 = vector.shape_cast %235 : vector<2x8x32xf32> to vector<16x32xf32>
    %237 = arith.truncf %236 : vector<16x32xf32> to vector<16x32xbf16>
    %c1_92 = arith.constant 1 : index
    %c0_93 = arith.constant 0 : index
    %c0_94 = arith.constant 0 : index
    %238 = vector.load %arg5[%c1_92, %c0_93, %c0_94] : memref<2x32x96xbf16, #tpu.memory_space<vmem>>, vector<1x32x96xbf16>
    %239 = vector.shape_cast %238 : vector<1x32x96xbf16> to vector<32x96xbf16>
    %cst_95 = arith.constant dense<0.000000e+00> : vector<16x96xf32>
    %240 = tpu.matmul %237, %239, %cst_95 {dimension_numbers = #tpu.dot_dimension_numbers<[1], [0], [0], [1], [0, 0, 1, 1], [], []>} : vector<16x32xbf16>, vector<32x96xbf16>, vector<16x96xf32> -> vector<16x96xf32>
    %c1_96 = arith.constant 1 : index
    %c0_97 = arith.constant 0 : index
    %c0_98 = arith.constant 0 : index
    %241 = vector.load %arg6[%c1_96, %c0_97, %c0_98] : memref<2x1x96xf32, #tpu.memory_space<vmem>>, vector<1x1x96xf32>
    %242 = vector.shape_cast %241 : vector<1x1x96xf32> to vector<1x96xf32>
    %243 = vector.broadcast %242 : vector<1x96xf32> to vector<16x96xf32>
    %244 = arith.addf %240, %243 : vector<16x96xf32>
    %245 = vector.shape_cast %244 : vector<16x96xf32> to vector<2x8x96xf32>
    %246 = vector.extract_strided_slice %245 {offsets = [0, 0, 0], sizes = [2, 8, 8], strides = [1, 1, 1]} : vector<2x8x96xf32> to vector<2x8x8xf32>
    %247 = arith.truncf %246 : vector<2x8x8xf32> to vector<2x8x8xbf16>
    %248 = vector.extract_strided_slice %245 {offsets = [0, 0, 32], sizes = [2, 8, 8], strides = [1, 1, 1]} : vector<2x8x96xf32> to vector<2x8x8xf32>
    %249 = arith.truncf %248 : vector<2x8x8xf32> to vector<2x8x8xbf16>
    %250 = vector.extract_strided_slice %245 {offsets = [0, 0, 64], sizes = [2, 8, 8], strides = [1, 1, 1]} : vector<2x8x96xf32> to vector<2x8x8xf32>
    %251 = arith.truncf %250 : vector<2x8x8xf32> to vector<2x8x8xbf16>
    "tpu.trace_start"() <{level = 10 : i32, message = "bqd,bkd->bqk"}> : () -> ()
    %cst_99 = arith.constant dense<0.000000e+00> : vector<2x8x8xf32>
    %252 = tpu.matmul %247, %249, %cst_99 {dimension_numbers = #tpu.dot_dimension_numbers<[2], [2], [1], [1], [0, 0, 0, 1, 1, 1], [0], [0]>} : vector<2x8x8xbf16>, vector<2x8x8xbf16>, vector<2x8x8xf32> -> vector<2x8x8xf32>
    "tpu.trace_stop"() : () -> ()
    %cst_100 = arith.constant 0.353553385 : f32
    %253 = vector.broadcast %cst_100 : f32 to vector<2x8x8xf32>
    %254 = arith.mulf %252, %253 : vector<2x8x8xf32>
    %255 = arith.addf %254, %15 : vector<2x8x8xf32>
    %cst_101 = arith.constant dense<0xFF800000> : vector<2x8xf32>
    %256 = vector.multi_reduction <maximumf>, %255, %cst_101 [2] : vector<2x8x8xf32> to vector<2x8xf32>
    %257 = vector.shape_cast %256 : vector<2x8xf32> to vector<2x8x1xf32>
    %258 = vector.broadcast %257 : vector<2x8x1xf32> to vector<2x8x8xf32>
    %259 = arith.subf %255, %258 : vector<2x8x8xf32>
    %260 = math.exp %259 : vector<2x8x8xf32>
    %cst_102 = arith.constant dense<0.000000e+00> : vector<2x8xf32>
    %261 = vector.multi_reduction <add>, %260, %cst_102 [2] : vector<2x8x8xf32> to vector<2x8xf32>
    %262 = vector.shape_cast %261 : vector<2x8xf32> to vector<2x8x1xf32>
    %263 = tpu.reciprocal %262 {approx = true} : vector<2x8x1xf32> -> vector<2x8x1xf32>
    %264 = vector.broadcast %263 : vector<2x8x1xf32> to vector<2x8x8xf32>
    %265 = arith.mulf %260, %264 : vector<2x8x8xf32>
    %266 = arith.truncf %265 : vector<2x8x8xf32> to vector<2x8x8xbf16>
    "tpu.trace_start"() <{level = 10 : i32, message = "bqk,bkd->bqd"}> : () -> ()
    %cst_103 = arith.constant dense<0.000000e+00> : vector<2x8x8xf32>
    %267 = tpu.matmul %266, %251, %cst_103 {dimension_numbers = #tpu.dot_dimension_numbers<[2], [1], [1], [2], [0, 0, 0, 1, 1, 2], [0], [0]>} : vector<2x8x8xbf16>, vector<2x8x8xbf16>, vector<2x8x8xf32> -> vector<2x8x8xf32>
    "tpu.trace_stop"() : () -> ()
    %268 = vector.extract_strided_slice %245 {offsets = [0, 0, 8], sizes = [2, 8, 8], strides = [1, 1, 1]} : vector<2x8x96xf32> to vector<2x8x8xf32>
    %269 = arith.truncf %268 : vector<2x8x8xf32> to vector<2x8x8xbf16>
    %270 = vector.extract_strided_slice %245 {offsets = [0, 0, 40], sizes = [2, 8, 8], strides = [1, 1, 1]} : vector<2x8x96xf32> to vector<2x8x8xf32>
    %271 = arith.truncf %270 : vector<2x8x8xf32> to vector<2x8x8xbf16>
    %272 = vector.extract_strided_slice %245 {offsets = [0, 0, 72], sizes = [2, 8, 8], strides = [1, 1, 1]} : vector<2x8x96xf32> to vector<2x8x8xf32>
    %273 = arith.truncf %272 : vector<2x8x8xf32> to vector<2x8x8xbf16>
    "tpu.trace_start"() <{level = 10 : i32, message = "bqd,bkd->bqk"}> : () -> ()
    %cst_104 = arith.constant dense<0.000000e+00> : vector<2x8x8xf32>
    %274 = tpu.matmul %269, %271, %cst_104 {dimension_numbers = #tpu.dot_dimension_numbers<[2], [2], [1], [1], [0, 0, 0, 1, 1, 1], [0], [0]>} : vector<2x8x8xbf16>, vector<2x8x8xbf16>, vector<2x8x8xf32> -> vector<2x8x8xf32>
    "tpu.trace_stop"() : () -> ()
    %cst_105 = arith.constant 0.353553385 : f32
    %275 = vector.broadcast %cst_105 : f32 to vector<2x8x8xf32>
    %276 = arith.mulf %274, %275 : vector<2x8x8xf32>
    %277 = arith.addf %276, %15 : vector<2x8x8xf32>
    %cst_106 = arith.constant dense<0xFF800000> : vector<2x8xf32>
    %278 = vector.multi_reduction <maximumf>, %277, %cst_106 [2] : vector<2x8x8xf32> to vector<2x8xf32>
    %279 = vector.shape_cast %278 : vector<2x8xf32> to vector<2x8x1xf32>
    %280 = vector.broadcast %279 : vector<2x8x1xf32> to vector<2x8x8xf32>
    %281 = arith.subf %277, %280 : vector<2x8x8xf32>
    %282 = math.exp %281 : vector<2x8x8xf32>
    %cst_107 = arith.constant dense<0.000000e+00> : vector<2x8xf32>
    %283 = vector.multi_reduction <add>, %282, %cst_107 [2] : vector<2x8x8xf32> to vector<2x8xf32>
    %284 = vector.shape_cast %283 : vector<2x8xf32> to vector<2x8x1xf32>
    %285 = tpu.reciprocal %284 {approx = true} : vector<2x8x1xf32> -> vector<2x8x1xf32>
    %286 = vector.broadcast %285 : vector<2x8x1xf32> to vector<2x8x8xf32>
    %287 = arith.mulf %282, %286 : vector<2x8x8xf32>
    %288 = arith.truncf %287 : vector<2x8x8xf32> to vector<2x8x8xbf16>
    "tpu.trace_start"() <{level = 10 : i32, message = "bqk,bkd->bqd"}> : () -> ()
    %cst_108 = arith.constant dense<0.000000e+00> : vector<2x8x8xf32>
    %289 = tpu.matmul %288, %273, %cst_108 {dimension_numbers = #tpu.dot_dimension_numbers<[2], [1], [1], [2], [0, 0, 0, 1, 1, 2], [0], [0]>} : vector<2x8x8xbf16>, vector<2x8x8xbf16>, vector<2x8x8xf32> -> vector<2x8x8xf32>
    "tpu.trace_stop"() : () -> ()
    %290 = vector.extract_strided_slice %245 {offsets = [0, 0, 16], sizes = [2, 8, 8], strides = [1, 1, 1]} : vector<2x8x96xf32> to vector<2x8x8xf32>
    %291 = arith.truncf %290 : vector<2x8x8xf32> to vector<2x8x8xbf16>
    %292 = vector.extract_strided_slice %245 {offsets = [0, 0, 48], sizes = [2, 8, 8], strides = [1, 1, 1]} : vector<2x8x96xf32> to vector<2x8x8xf32>
    %293 = arith.truncf %292 : vector<2x8x8xf32> to vector<2x8x8xbf16>
    %294 = vector.extract_strided_slice %245 {offsets = [0, 0, 80], sizes = [2, 8, 8], strides = [1, 1, 1]} : vector<2x8x96xf32> to vector<2x8x8xf32>
    %295 = arith.truncf %294 : vector<2x8x8xf32> to vector<2x8x8xbf16>
    "tpu.trace_start"() <{level = 10 : i32, message = "bqd,bkd->bqk"}> : () -> ()
    %cst_109 = arith.constant dense<0.000000e+00> : vector<2x8x8xf32>
    %296 = tpu.matmul %291, %293, %cst_109 {dimension_numbers = #tpu.dot_dimension_numbers<[2], [2], [1], [1], [0, 0, 0, 1, 1, 1], [0], [0]>} : vector<2x8x8xbf16>, vector<2x8x8xbf16>, vector<2x8x8xf32> -> vector<2x8x8xf32>
    "tpu.trace_stop"() : () -> ()
    %cst_110 = arith.constant 0.353553385 : f32
    %297 = vector.broadcast %cst_110 : f32 to vector<2x8x8xf32>
    %298 = arith.mulf %296, %297 : vector<2x8x8xf32>
    %299 = arith.addf %298, %15 : vector<2x8x8xf32>
    %cst_111 = arith.constant dense<0xFF800000> : vector<2x8xf32>
    %300 = vector.multi_reduction <maximumf>, %299, %cst_111 [2] : vector<2x8x8xf32> to vector<2x8xf32>
    %301 = vector.shape_cast %300 : vector<2x8xf32> to vector<2x8x1xf32>
    %302 = vector.broadcast %301 : vector<2x8x1xf32> to vector<2x8x8xf32>
    %303 = arith.subf %299, %302 : vector<2x8x8xf32>
    %304 = math.exp %303 : vector<2x8x8xf32>
    %cst_112 = arith.constant dense<0.000000e+00> : vector<2x8xf32>
    %305 = vector.multi_reduction <add>, %304, %cst_112 [2] : vector<2x8x8xf32> to vector<2x8xf32>
    %306 = vector.shape_cast %305 : vector<2x8xf32> to vector<2x8x1xf32>
    %307 = tpu.reciprocal %306 {approx = true} : vector<2x8x1xf32> -> vector<2x8x1xf32>
    %308 = vector.broadcast %307 : vector<2x8x1xf32> to vector<2x8x8xf32>
    %309 = arith.mulf %304, %308 : vector<2x8x8xf32>
    %310 = arith.truncf %309 : vector<2x8x8xf32> to vector<2x8x8xbf16>
    "tpu.trace_start"() <{level = 10 : i32, message = "bqk,bkd->bqd"}> : () -> ()
    %cst_113 = arith.constant dense<0.000000e+00> : vector<2x8x8xf32>
    %311 = tpu.matmul %310, %295, %cst_113 {dimension_numbers = #tpu.dot_dimension_numbers<[2], [1], [1], [2], [0, 0, 0, 1, 1, 2], [0], [0]>} : vector<2x8x8xbf16>, vector<2x8x8xbf16>, vector<2x8x8xf32> -> vector<2x8x8xf32>
    "tpu.trace_stop"() : () -> ()
    %312 = vector.extract_strided_slice %245 {offsets = [0, 0, 24], sizes = [2, 8, 8], strides = [1, 1, 1]} : vector<2x8x96xf32> to vector<2x8x8xf32>
    %313 = arith.truncf %312 : vector<2x8x8xf32> to vector<2x8x8xbf16>
    %314 = vector.extract_strided_slice %245 {offsets = [0, 0, 56], sizes = [2, 8, 8], strides = [1, 1, 1]} : vector<2x8x96xf32> to vector<2x8x8xf32>
    %315 = arith.truncf %314 : vector<2x8x8xf32> to vector<2x8x8xbf16>
    %316 = vector.extract_strided_slice %245 {offsets = [0, 0, 88], sizes = [2, 8, 8], strides = [1, 1, 1]} : vector<2x8x96xf32> to vector<2x8x8xf32>
    %317 = arith.truncf %316 : vector<2x8x8xf32> to vector<2x8x8xbf16>
    "tpu.trace_start"() <{level = 10 : i32, message = "bqd,bkd->bqk"}> : () -> ()
    %cst_114 = arith.constant dense<0.000000e+00> : vector<2x8x8xf32>
    %318 = tpu.matmul %313, %315, %cst_114 {dimension_numbers = #tpu.dot_dimension_numbers<[2], [2], [1], [1], [0, 0, 0, 1, 1, 1], [0], [0]>} : vector<2x8x8xbf16>, vector<2x8x8xbf16>, vector<2x8x8xf32> -> vector<2x8x8xf32>
    "tpu.trace_stop"() : () -> ()
    %cst_115 = arith.constant 0.353553385 : f32
    %319 = vector.broadcast %cst_115 : f32 to vector<2x8x8xf32>
    %320 = arith.mulf %318, %319 : vector<2x8x8xf32>
    %321 = arith.addf %320, %15 : vector<2x8x8xf32>
    %cst_116 = arith.constant dense<0xFF800000> : vector<2x8xf32>
    %322 = vector.multi_reduction <maximumf>, %321, %cst_116 [2] : vector<2x8x8xf32> to vector<2x8xf32>
    %323 = vector.shape_cast %322 : vector<2x8xf32> to vector<2x8x1xf32>
    %324 = vector.broadcast %323 : vector<2x8x1xf32> to vector<2x8x8xf32>
    %325 = arith.subf %321, %324 : vector<2x8x8xf32>
    %326 = math.exp %325 : vector<2x8x8xf32>
    %cst_117 = arith.constant dense<0.000000e+00> : vector<2x8xf32>
    %327 = vector.multi_reduction <add>, %326, %cst_117 [2] : vector<2x8x8xf32> to vector<2x8xf32>
    %328 = vector.shape_cast %327 : vector<2x8xf32> to vector<2x8x1xf32>
    %329 = tpu.reciprocal %328 {approx = true} : vector<2x8x1xf32> -> vector<2x8x1xf32>
    %330 = vector.broadcast %329 : vector<2x8x1xf32> to vector<2x8x8xf32>
    %331 = arith.mulf %326, %330 : vector<2x8x8xf32>
    %332 = arith.truncf %331 : vector<2x8x8xf32> to vector<2x8x8xbf16>
    "tpu.trace_start"() <{level = 10 : i32, message = "bqk,bkd->bqd"}> : () -> ()
    %cst_118 = arith.constant dense<0.000000e+00> : vector<2x8x8xf32>
    %333 = tpu.matmul %332, %317, %cst_118 {dimension_numbers = #tpu.dot_dimension_numbers<[2], [1], [1], [2], [0, 0, 0, 1, 1, 2], [0], [0]>} : vector<2x8x8xbf16>, vector<2x8x8xbf16>, vector<2x8x8xf32> -> vector<2x8x8xf32>
    "tpu.trace_stop"() : () -> ()
    %334 = tpu.concatenate %267, %289, %311, %333 in 2 : vector<2x8x8xf32>, vector<2x8x8xf32>, vector<2x8x8xf32>, vector<2x8x8xf32> -> vector<2x8x32xf32>
    %335 = vector.shape_cast %334 : vector<2x8x32xf32> to vector<16x32xf32>
    %336 = arith.truncf %335 : vector<16x32xf32> to vector<16x32xbf16>
    %c1_119 = arith.constant 1 : index
    %c0_120 = arith.constant 0 : index
    %c0_121 = arith.constant 0 : index
    %337 = vector.load %arg7[%c1_119, %c0_120, %c0_121] : memref<2x32x32xbf16, #tpu.memory_space<vmem>>, vector<1x32x32xbf16>
    %338 = vector.shape_cast %337 : vector<1x32x32xbf16> to vector<32x32xbf16>
    %cst_122 = arith.constant dense<0.000000e+00> : vector<16x32xf32>
    %339 = tpu.matmul %336, %338, %cst_122 {dimension_numbers = #tpu.dot_dimension_numbers<[1], [0], [0], [1], [0, 0, 1, 1], [], []>} : vector<16x32xbf16>, vector<32x32xbf16>, vector<16x32xf32> -> vector<16x32xf32>
    %c1_123 = arith.constant 1 : index
    %c0_124 = arith.constant 0 : index
    %c0_125 = arith.constant 0 : index
    %340 = vector.load %arg8[%c1_123, %c0_124, %c0_125] : memref<2x1x32xf32, #tpu.memory_space<vmem>>, vector<1x1x32xf32>
    %341 = vector.shape_cast %340 : vector<1x1x32xf32> to vector<1x32xf32>
    %342 = vector.broadcast %341 : vector<1x32xf32> to vector<16x32xf32>
    %343 = arith.addf %339, %342 : vector<16x32xf32>
    %344 = vector.shape_cast %343 : vector<16x32xf32> to vector<2x8x32xf32>
    %345 = arith.addf %209, %344 : vector<2x8x32xf32>
    %c1_126 = arith.constant 1 : index
    %c0_127 = arith.constant 0 : index
    %c0_128 = arith.constant 0 : index
    %346 = vector.load %arg9[%c1_126, %c0_127, %c0_128] : memref<2x1x32xf32, #tpu.memory_space<vmem>>, vector<1x1x32xf32>
    %347 = vector.shape_cast %346 : vector<1x1x32xf32> to vector<1x32xf32>
    %c1_129 = arith.constant 1 : index
    %c0_130 = arith.constant 0 : index
    %c0_131 = arith.constant 0 : index
    %348 = vector.load %arg10[%c1_129, %c0_130, %c0_131] : memref<2x1x32xf32, #tpu.memory_space<vmem>>, vector<1x1x32xf32>
    %349 = vector.shape_cast %348 : vector<1x1x32xf32> to vector<1x32xf32>
    %cst_132 = arith.constant dense<0.000000e+00> : vector<2x8xf32>
    %350 = vector.multi_reduction <add>, %345, %cst_132 [2] : vector<2x8x32xf32> to vector<2x8xf32>
    %351 = vector.shape_cast %350 : vector<2x8xf32> to vector<2x8x1xf32>
    %cst_133 = arith.constant 3.200000e+01 : f32
    %352 = vector.broadcast %cst_133 : f32 to vector<2x8x1xf32>
    %353 = arith.divf %351, %352 : vector<2x8x1xf32>
    %354 = vector.broadcast %353 : vector<2x8x1xf32> to vector<2x8x32xf32>
    %355 = arith.subf %345, %354 : vector<2x8x32xf32>
    %356 = arith.mulf %355, %355 : vector<2x8x32xf32>
    %cst_134 = arith.constant dense<0.000000e+00> : vector<2x8xf32>
    %357 = vector.multi_reduction <add>, %356, %cst_134 [2] : vector<2x8x32xf32> to vector<2x8xf32>
    %358 = vector.shape_cast %357 : vector<2x8xf32> to vector<2x8x1xf32>
    %cst_135 = arith.constant 3.200000e+01 : f32
    %359 = vector.broadcast %cst_135 : f32 to vector<2x8x1xf32>
    %360 = arith.divf %358, %359 : vector<2x8x1xf32>
    %cst_136 = arith.constant 9.99999974E-6 : f32
    %361 = vector.broadcast %cst_136 : f32 to vector<2x8x1xf32>
    %362 = arith.addf %360, %361 : vector<2x8x1xf32>
    %363 = math.rsqrt %362 : vector<2x8x1xf32>
    %364 = vector.broadcast %363 : vector<2x8x1xf32> to vector<2x8x32xf32>
    %365 = arith.mulf %355, %364 : vector<2x8x32xf32>
    %366 = vector.shape_cast %347 : vector<1x32xf32> to vector<1x1x32xf32>
    %367 = vector.broadcast %366 : vector<1x1x32xf32> to vector<2x8x32xf32>
    %368 = arith.mulf %365, %367 : vector<2x8x32xf32>
    %369 = vector.shape_cast %349 : vector<1x32xf32> to vector<1x1x32xf32>
    %370 = vector.broadcast %369 : vector<1x1x32xf32> to vector<2x8x32xf32>
    %371 = arith.addf %368, %370 : vector<2x8x32xf32>
    %372 = vector.shape_cast %371 : vector<2x8x32xf32> to vector<16x32xf32>
    %373 = arith.truncf %372 : vector<16x32xf32> to vector<16x32xbf16>
    %c1_137 = arith.constant 1 : index
    %c0_138 = arith.constant 0 : index
    %c0_139 = arith.constant 0 : index
    %374 = vector.load %arg11[%c1_137, %c0_138, %c0_139] : memref<2x32x128xbf16, #tpu.memory_space<vmem>>, vector<1x32x128xbf16>
    %375 = vector.shape_cast %374 : vector<1x32x128xbf16> to vector<32x128xbf16>
    %cst_140 = arith.constant dense<0.000000e+00> : vector<16x128xf32>
    %376 = tpu.matmul %373, %375, %cst_140 {dimension_numbers = #tpu.dot_dimension_numbers<[1], [0], [0], [1], [0, 0, 1, 1], [], []>} : vector<16x32xbf16>, vector<32x128xbf16>, vector<16x128xf32> -> vector<16x128xf32>
    %c1_141 = arith.constant 1 : index
    %c0_142 = arith.constant 0 : index
    %c0_143 = arith.constant 0 : index
    %377 = vector.load %arg12[%c1_141, %c0_142, %c0_143] : memref<2x1x128xf32, #tpu.memory_space<vmem>>, vector<1x1x128xf32>
    %378 = vector.shape_cast %377 : vector<1x1x128xf32> to vector<1x128xf32>
    %379 = vector.broadcast %378 : vector<1x128xf32> to vector<16x128xf32>
    %380 = arith.addf %376, %379 : vector<16x128xf32>
    %cst_144 = arith.constant 5.000000e-01 : f32
    %381 = vector.broadcast %cst_144 : f32 to vector<16x128xf32>
    %382 = arith.mulf %381, %380 : vector<16x128xf32>
    %cst_145 = arith.constant 4.471500e-02 : f32
    %383 = vector.broadcast %cst_145 : f32 to vector<16x128xf32>
    %384 = arith.mulf %383, %380 : vector<16x128xf32>
    %385 = arith.mulf %384, %380 : vector<16x128xf32>
    %386 = arith.mulf %385, %380 : vector<16x128xf32>
    %387 = arith.addf %380, %386 : vector<16x128xf32>
    %cst_146 = arith.constant 0.797884583 : f32
    %388 = vector.broadcast %cst_146 : f32 to vector<16x128xf32>
    %389 = arith.mulf %388, %387 : vector<16x128xf32>
    %390 = math.tanh %389 : vector<16x128xf32>
    %cst_147 = arith.constant 1.000000e+00 : f32
    %391 = vector.broadcast %cst_147 : f32 to vector<16x128xf32>
    %392 = arith.addf %391, %390 : vector<16x128xf32>
    %393 = arith.mulf %382, %392 : vector<16x128xf32>
    %394 = arith.truncf %393 : vector<16x128xf32> to vector<16x128xbf16>
    %c1_148 = arith.constant 1 : index
    %c0_149 = arith.constant 0 : index
    %c0_150 = arith.constant 0 : index
    %395 = vector.load %arg13[%c1_148, %c0_149, %c0_150] : memref<2x128x32xbf16, #tpu.memory_space<vmem>>, vector<1x128x32xbf16>
    %396 = vector.shape_cast %395 : vector<1x128x32xbf16> to vector<128x32xbf16>
    %cst_151 = arith.constant dense<0.000000e+00> : vector<16x32xf32>
    %397 = tpu.matmul %394, %396, %cst_151 {dimension_numbers = #tpu.dot_dimension_numbers<[1], [0], [0], [1], [0, 0, 1, 1], [], []>} : vector<16x128xbf16>, vector<128x32xbf16>, vector<16x32xf32> -> vector<16x32xf32>
    %c1_152 = arith.constant 1 : index
    %c0_153 = arith.constant 0 : index
    %c0_154 = arith.constant 0 : index
    %398 = vector.load %arg14[%c1_152, %c0_153, %c0_154] : memref<2x1x32xf32, #tpu.memory_space<vmem>>, vector<1x1x32xf32>
    %399 = vector.shape_cast %398 : vector<1x1x32xf32> to vector<1x32xf32>
    %400 = vector.broadcast %399 : vector<1x32xf32> to vector<16x32xf32>
    %401 = arith.addf %397, %400 : vector<16x32xf32>
    %402 = vector.shape_cast %401 : vector<16x32xf32> to vector<2x8x32xf32>
    %403 = arith.addf %345, %402 : vector<2x8x32xf32>
    %c0_155 = arith.constant 0 : index
    %c0_156 = arith.constant 0 : index
    %404 = vector.load %arg15[%c0_155, %c0_156] : memref<1x32xf32, #tpu.memory_space<vmem>>, vector<1x32xf32>
    %c0_157 = arith.constant 0 : index
    %c0_158 = arith.constant 0 : index
    %405 = vector.load %arg16[%c0_157, %c0_158] : memref<1x32xf32, #tpu.memory_space<vmem>>, vector<1x32xf32>
    %cst_159 = arith.constant dense<0.000000e+00> : vector<2x8xf32>
    %406 = vector.multi_reduction <add>, %403, %cst_159 [2] : vector<2x8x32xf32> to vector<2x8xf32>
    %407 = vector.shape_cast %406 : vector<2x8xf32> to vector<2x8x1xf32>
    %cst_160 = arith.constant 3.200000e+01 : f32
    %408 = vector.broadcast %cst_160 : f32 to vector<2x8x1xf32>
    %409 = arith.divf %407, %408 : vector<2x8x1xf32>
    %410 = vector.broadcast %409 : vector<2x8x1xf32> to vector<2x8x32xf32>
    %411 = arith.subf %403, %410 : vector<2x8x32xf32>
    %412 = arith.mulf %411, %411 : vector<2x8x32xf32>
    %cst_161 = arith.constant dense<0.000000e+00> : vector<2x8xf32>
    %413 = vector.multi_reduction <add>, %412, %cst_161 [2] : vector<2x8x32xf32> to vector<2x8xf32>
    %414 = vector.shape_cast %413 : vector<2x8xf32> to vector<2x8x1xf32>
    %cst_162 = arith.constant 3.200000e+01 : f32
    %415 = vector.broadcast %cst_162 : f32 to vector<2x8x1xf32>
    %416 = arith.divf %414, %415 : vector<2x8x1xf32>
    %cst_163 = arith.constant 9.99999974E-6 : f32
    %417 = vector.broadcast %cst_163 : f32 to vector<2x8x1xf32>
    %418 = arith.addf %416, %417 : vector<2x8x1xf32>
    %419 = math.rsqrt %418 : vector<2x8x1xf32>
    %420 = vector.broadcast %419 : vector<2x8x1xf32> to vector<2x8x32xf32>
    %421 = arith.mulf %411, %420 : vector<2x8x32xf32>
    %422 = vector.shape_cast %404 : vector<1x32xf32> to vector<1x1x32xf32>
    %423 = vector.broadcast %422 : vector<1x1x32xf32> to vector<2x8x32xf32>
    %424 = arith.mulf %421, %423 : vector<2x8x32xf32>
    %425 = vector.shape_cast %405 : vector<1x32xf32> to vector<1x1x32xf32>
    %426 = vector.broadcast %425 : vector<1x1x32xf32> to vector<2x8x32xf32>
    %427 = arith.addf %424, %426 : vector<2x8x32xf32>
    %cst_164 = arith.constant dense<0.000000e+00> : vector<2x32xf32>
    %428 = vector.multi_reduction <add>, %427, %cst_164 [1] : vector<2x8x32xf32> to vector<2x32xf32>
    %cst_165 = arith.constant 8.000000e+00 : f32
    %429 = vector.broadcast %cst_165 : f32 to vector<2x32xf32>
    %430 = arith.divf %428, %429 : vector<2x32xf32>
    %c0_166 = arith.constant 0 : index
    %c0_167 = arith.constant 0 : index
    %431 = vector.load %arg17[%c0_166, %c0_167] : memref<32x1xf32, #tpu.memory_space<vmem>>, vector<32x1xf32>
    %cst_168 = arith.constant dense<0.000000e+00> : vector<2x1xf32>
    %432 = tpu.matmul %430, %431, %cst_168 {dimension_numbers = #tpu.dot_dimension_numbers<[1], [0], [0], [1], [0, 0, 1, 1], [], []>} : vector<2x32xf32>, vector<32x1xf32>, vector<2x1xf32> -> vector<2x1xf32>
    %c0_169 = arith.constant 0 : index
    %c0_170 = arith.constant 0 : index
    %433 = vector.load %arg18[%c0_169, %c0_170] : memref<1x1xf32, #tpu.memory_space<vmem>>, vector<1x1xf32>
    %434 = vector.broadcast %433 : vector<1x1xf32> to vector<2x1xf32>
    %435 = arith.addf %432, %434 : vector<2x1xf32>
    %436 = tpu.transpose %435, [1, 0] : vector<2x1xf32> -> vector<1x2xf32>
    %c0_171 = arith.constant 0 : index
    %c0_172 = arith.constant 0 : index
    %c0_173 = arith.constant 0 : index
    %437 = vector.load %arg19[%c0_171, %c0_172, %c0_173] : memref<1x1x2xf32, #tpu.memory_space<vmem>>, vector<1x1x2xf32>
    %438 = vector.shape_cast %437 : vector<1x1x2xf32> to vector<1x2xf32>
    %439 = vector.shape_cast %436 : vector<1x2xf32> to vector<1x1x2xf32>
    tpu.vector_store %arg19[%c0_171, %c0_172, %c0_173], %439 {strides = array<i32>} : memref<1x1x2xf32, #tpu.memory_space<vmem>>, vector<1x1x2xf32>,
    return
  }
  func.func @transform_0(%arg0: i32) -> (i32, i32, i32) {
    %c0_i32 = arith.constant 0 : i32
    %c0_i32_0 = arith.constant 0 : i32
    %c0_i32_1 = arith.constant 0 : i32
    return %arg0, %c0_i32, %c0_i32_0 : i32, i32, i32
  }
  func.func @transform_1(%arg0: i32) -> (i32, i32, i32) {
    %c0_i32 = arith.constant 0 : i32
    %c0_i32_0 = arith.constant 0 : i32
    %c0_i32_1 = arith.constant 0 : i32
    return %arg0, %c0_i32, %c0_i32_0 : i32, i32, i32
  }
  func.func @transform_2(%arg0: i32) -> (i32, i32, i32) {
    %c0_i32 = arith.constant 0 : i32
    %c0_i32_0 = arith.constant 0 : i32
    %c0_i32_1 = arith.constant 0 : i32
    %c0_i32_2 = arith.constant 0 : i32
    return %c0_i32, %c0_i32_0, %c0_i32_1 : i32, i32, i32
  }
  func.func @transform_3(%arg0: i32) -> (i32, i32, i32) {
    %c0_i32 = arith.constant 0 : i32
    %c0_i32_0 = arith.constant 0 : i32
    %c0_i32_1 = arith.constant 0 : i32
    %c0_i32_2 = arith.constant 0 : i32
    return %c0_i32, %c0_i32_0, %c0_i32_1 : i32, i32, i32
  }
  func.func @transform_4(%arg0: i32) -> (i32, i32, i32) {
    %c0_i32 = arith.constant 0 : i32
    %c0_i32_0 = arith.constant 0 : i32
    %c0_i32_1 = arith.constant 0 : i32
    %c0_i32_2 = arith.constant 0 : i32
    return %c0_i32, %c0_i32_0, %c0_i32_1 : i32, i32, i32
  }
  func.func @transform_5(%arg0: i32) -> (i32, i32, i32) {
    %c0_i32 = arith.constant 0 : i32
    %c0_i32_0 = arith.constant 0 : i32
    %c0_i32_1 = arith.constant 0 : i32
    %c0_i32_2 = arith.constant 0 : i32
    return %c0_i32, %c0_i32_0, %c0_i32_1 : i32, i32, i32
  }
  func.func @transform_6(%arg0: i32) -> (i32, i32, i32) {
    %c0_i32 = arith.constant 0 : i32
    %c0_i32_0 = arith.constant 0 : i32
    %c0_i32_1 = arith.constant 0 : i32
    %c0_i32_2 = arith.constant 0 : i32
    return %c0_i32, %c0_i32_0, %c0_i32_1 : i32, i32, i32
  }
  func.func @transform_7(%arg0: i32) -> (i32, i32, i32) {
    %c0_i32 = arith.constant 0 : i32
    %c0_i32_0 = arith.constant 0 : i32
    %c0_i32_1 = arith.constant 0 : i32
    %c0_i32_2 = arith.constant 0 : i32
    return %c0_i32, %c0_i32_0, %c0_i32_1 : i32, i32, i32
  }
  func.func @transform_8(%arg0: i32) -> (i32, i32, i32) {
    %c0_i32 = arith.constant 0 : i32
    %c0_i32_0 = arith.constant 0 : i32
    %c0_i32_1 = arith.constant 0 : i32
    %c0_i32_2 = arith.constant 0 : i32
    return %c0_i32, %c0_i32_0, %c0_i32_1 : i32, i32, i32
  }
  func.func @transform_9(%arg0: i32) -> (i32, i32, i32) {
    %c0_i32 = arith.constant 0 : i32
    %c0_i32_0 = arith.constant 0 : i32
    %c0_i32_1 = arith.constant 0 : i32
    %c0_i32_2 = arith.constant 0 : i32
    return %c0_i32, %c0_i32_0, %c0_i32_1 : i32, i32, i32
  }
  func.func @transform_10(%arg0: i32) -> (i32, i32, i32) {
    %c0_i32 = arith.constant 0 : i32
    %c0_i32_0 = arith.constant 0 : i32
    %c0_i32_1 = arith.constant 0 : i32
    %c0_i32_2 = arith.constant 0 : i32
    return %c0_i32, %c0_i32_0, %c0_i32_1 : i32, i32, i32
  }
  func.func @transform_11(%arg0: i32) -> (i32, i32, i32) {
    %c0_i32 = arith.constant 0 : i32
    %c0_i32_0 = arith.constant 0 : i32
    %c0_i32_1 = arith.constant 0 : i32
    %c0_i32_2 = arith.constant 0 : i32
    return %c0_i32, %c0_i32_0, %c0_i32_1 : i32, i32, i32
  }
  func.func @transform_12(%arg0: i32) -> (i32, i32, i32) {
    %c0_i32 = arith.constant 0 : i32
    %c0_i32_0 = arith.constant 0 : i32
    %c0_i32_1 = arith.constant 0 : i32
    %c0_i32_2 = arith.constant 0 : i32
    return %c0_i32, %c0_i32_0, %c0_i32_1 : i32, i32, i32
  }
  func.func @transform_13(%arg0: i32) -> (i32, i32, i32) {
    %c0_i32 = arith.constant 0 : i32
    %c0_i32_0 = arith.constant 0 : i32
    %c0_i32_1 = arith.constant 0 : i32
    %c0_i32_2 = arith.constant 0 : i32
    return %c0_i32, %c0_i32_0, %c0_i32_1 : i32, i32, i32
  }
  func.func @transform_14(%arg0: i32) -> (i32, i32) {
    %c0_i32 = arith.constant 0 : i32
    %c0_i32_0 = arith.constant 0 : i32
    %c0_i32_1 = arith.constant 0 : i32
    return %c0_i32, %c0_i32_0 : i32, i32
  }
  func.func @transform_15(%arg0: i32) -> (i32, i32) {
    %c0_i32 = arith.constant 0 : i32
    %c0_i32_0 = arith.constant 0 : i32
    %c0_i32_1 = arith.constant 0 : i32
    return %c0_i32, %c0_i32_0 : i32, i32
  }
  func.func @transform_16(%arg0: i32) -> (i32, i32) {
    %c0_i32 = arith.constant 0 : i32
    %c0_i32_0 = arith.constant 0 : i32
    %c0_i32_1 = arith.constant 0 : i32
    return %c0_i32, %c0_i32_0 : i32, i32
  }
  func.func @transform_17(%arg0: i32) -> (i32, i32) {
    %c0_i32 = arith.constant 0 : i32
    %c0_i32_0 = arith.constant 0 : i32
    %c0_i32_1 = arith.constant 0 : i32
    return %c0_i32, %c0_i32_0 : i32, i32
  }
  func.func @transform_18(%arg0: i32) -> (i32, i32, i32) {
    %c0_i32 = arith.constant 0 : i32
    %c0_i32_0 = arith.constant 0 : i32
    %c0_i32_1 = arith.constant 0 : i32
    return %arg0, %c0_i32, %c0_i32_0 : i32, i32, i32
  }
}

</mosaic_0001>

<llo_original>
// kernel: tpu_custom_call.1
$region0: #{tpu_custom_call.1}
  #allocation0 [shape = 'u32[]', space=smem, size = 0x4, offset = 0x4, fixed_abs, tag = 'smem constant byte address 0x4 - core index']
  #allocation1 [shape = 'u32[144,128]{1,0:T(1,128)}', space=vmem, size = 0x12000, scoped, tag = 'internal scratch']
  #allocation2 [shape = 'f32[1,1]{1,0:T(1,128)S(1)}', space=vmem, size = 0x200, scoped, tag = 'scoped memory for tpu_custom_call.1']
  %s0 = inlined_call_operand.vmem [shape: f32[2,1,8], index: 0, kind: input, shape index: {}]
  %s1 = inlined_call_operand.vmem [shape: f32[2,8,32], index: 1, kind: input, shape index: {}]
  %s2 = inlined_call_operand.vmem [shape: f32[2,1,32], index: 2, kind: input, shape index: {}]
  %s3 = inlined_call_operand.vmem [shape: f32[2,1,32], index: 3, kind: input, shape index: {}]
  %s4 = inlined_call_operand.vmem [shape: bf16[2,32,96], index: 4, kind: input, shape index: {}]
  %s5 = inlined_call_operand.vmem [shape: f32[2,1,96], index: 5, kind: input, shape index: {}]
  %s6 = inlined_call_operand.vmem [shape: bf16[2,32,32], index: 6, kind: input, shape index: {}]
  %s7 = inlined_call_operand.vmem [shape: f32[2,1,32], index: 7, kind: input, shape index: {}]
  %s8 = inlined_call_operand.vmem [shape: f32[2,1,32], index: 8, kind: input, shape index: {}]
  %s9 = inlined_call_operand.vmem [shape: f32[2,1,32], index: 9, kind: input, shape index: {}]
  %s10 = inlined_call_operand.vmem [shape: bf16[2,32,128], index: 10, kind: input, shape index: {}]
  %s11 = inlined_call_operand.vmem [shape: f32[2,1,128], index: 11, kind: input, shape index: {}]
  %s12 = inlined_call_operand.vmem [shape: bf16[2,128,32], index: 12, kind: input, shape index: {}]
  %s13 = inlined_call_operand.vmem [shape: f32[2,1,32], index: 13, kind: input, shape index: {}]
  %s14 = inlined_call_operand.vmem [shape: f32[1,32], index: 14, kind: input, shape index: {}]
  %s15 = inlined_call_operand.vmem [shape: f32[1,32], index: 15, kind: input, shape index: {}]
  %s16 = inlined_call_operand.vmem [shape: f32[32,1], index: 16, kind: input, shape index: {}]
  %s17 = inlined_call_operand.<no memory space> [shape: f32[1,1], index: 17, kind: input, shape index: {}]
  %s18 = inlined_call_operand.hbm [shape: f32[1,1,2], index: 18, kind: output, shape index: {}]
  %s19 = sld [smem:[#allocation0]]
  $region82: #{tpu_custom_call.1} parent=0
    _
  %s21 = ssub.s32 1, %s19
  %s22 = scalar_select 0, %s21, %s19
  %v23 = vstv %s17
  %24 = vst [vmem:[#allocation2] sm:$0x1] %v23
  $region1: #{tpu_custom_call.1} parent=0
    #allocation3 [shape = 'u8[512]{0}', space=vmem, size = 0x400, scoped, tag = 'output window, operand 0, single buffered']
    #allocation4 [shape = 's32[1]{0}', space=sflag, size = 0x4, scoped, tag = 'scoped memory for tpu_custom_call.1']
    %25 = vsyncpa [#allocation4], 0
    // Predicated region
    $region2: #{tpu_custom_call.1} parent=1 // pred_check
      _
    $region3: #{tpu_custom_call.1} parent=1 // pred_check_branch
      %27 = sbr.rel (0) target = $region5
    $region4: #{tpu_custom_call.1} parent=1 // pred_region
      _
    $region5: #{tpu_custom_call.1} parent=1 // pred_fallthru
      _
    // Predicated region
    $region6: #{tpu_custom_call.1} parent=1 // pred_check
      _
    $region7: #{tpu_custom_call.1} parent=1 // pred_check_branch
      %29 = sbr.rel (0) target = $region9
    $region8: #{tpu_custom_call.1} parent=1 // pred_region
      _
    $region9: #{tpu_custom_call.1} parent=1 // pred_fallthru
      _
    // Predicated region
    $region10: #{tpu_custom_call.1} parent=1 // pred_check
      _
    $region11: #{tpu_custom_call.1} parent=1 // pred_check_branch
      %31 = sbr.rel (0) target = $region13
    $region12: #{tpu_custom_call.1} parent=1 // pred_region
      _
    $region13: #{tpu_custom_call.1} parent=1 // pred_fallthru
      _
    // Predicated region
    $region14: #{tpu_custom_call.1} parent=1 // pred_check
      _
    $region15: #{tpu_custom_call.1} parent=1 // pred_check_branch
      %33 = sbr.rel (0) target = $region17
    $region16: #{tpu_custom_call.1} parent=1 // pred_region
      _
    $region17: #{tpu_custom_call.1} parent=1 // pred_fallthru
      _
    // Predicated region
    $region18: #{tpu_custom_call.1} parent=1 // pred_check
      _
    $region19: #{tpu_custom_call.1} parent=1 // pred_check_branch
      %35 = sbr.rel (0) target = $region21
    $region20: #{tpu_custom_call.1} parent=1 // pred_region
      _
    $region21: #{tpu_custom_call.1} parent=1 // pred_fallthru
      _
    // Predicated region
    $region22: #{tpu_custom_call.1} parent=1 // pred_check
      _
    $region23: #{tpu_custom_call.1} parent=1 // pred_check_branch
      %37 = sbr.rel (0) target = $region25
    $region24: #{tpu_custom_call.1} parent=1 // pred_region
      _
    $region25: #{tpu_custom_call.1} parent=1 // pred_fallthru
      _
    // Predicated region
    $region26: #{tpu_custom_call.1} parent=1 // pred_check
      _
    $region27: #{tpu_custom_call.1} parent=1 // pred_check_branch
      %39 = sbr.rel (0) target = $region29
    $region28: #{tpu_custom_call.1} parent=1 // pred_region
      _
    $region29: #{tpu_custom_call.1} parent=1 // pred_fallthru
      _
    // Predicated region
    $region30: #{tpu_custom_call.1} parent=1 // pred_check
      _
    $region31: #{tpu_custom_call.1} parent=1 // pred_check_branch
      %41 = sbr.rel (0) target = $region33
    $region32: #{tpu_custom_call.1} parent=1 // pred_region
      _
    $region33: #{tpu_custom_call.1} parent=1 // pred_fallthru
      _
    // Predicated region
    $region34: #{tpu_custom_call.1} parent=1 // pred_check
      _
    $region35: #{tpu_custom_call.1} parent=1 // pred_check_branch
      %43 = sbr.rel (0) target = $region37
    $region36: #{tpu_custom_call.1} parent=1 // pred_region
      _
    $region37: #{tpu_custom_call.1} parent=1 // pred_fallthru
      _
    // Predicated region
    $region38: #{tpu_custom_call.1} parent=1 // pred_check
      _
    $region39: #{tpu_custom_call.1} parent=1 // pred_check_branch
      %45 = sbr.rel (0) target = $region41
    $region40: #{tpu_custom_call.1} parent=1 // pred_region
      _
    $region41: #{tpu_custom_call.1} parent=1 // pred_fallthru
      _
    // Predicated region
    $region42: #{tpu_custom_call.1} parent=1 // pred_check
      _
    $region43: #{tpu_custom_call.1} parent=1 // pred_check_branch
      %47 = sbr.rel (0) target = $region45
    $region44: #{tpu_custom_call.1} parent=1 // pred_region
      _
    $region45: #{tpu_custom_call.1} parent=1 // pred_fallthru
      _
    // Predicated region
    $region46: #{tpu_custom_call.1} parent=1 // pred_check
      _
    $region47: #{tpu_custom_call.1} parent=1 // pred_check_branch
      %49 = sbr.rel (0) target = $region49
    $region48: #{tpu_custom_call.1} parent=1 // pred_region
      _
    $region49: #{tpu_custom_call.1} parent=1 // pred_fallthru
      _
    // Predicated region
    $region50: #{tpu_custom_call.1} parent=1 // pred_check
      _
    $region51: #{tpu_custom_call.1} parent=1 // pred_check_branch
      %51 = sbr.rel (0) target = $region53
    $region52: #{tpu_custom_call.1} parent=1 // pred_region
      _
    $region53: #{tpu_custom_call.1} parent=1 // pred_fallthru
      _
    // Predicated region
    $region54: #{tpu_custom_call.1} parent=1 // pred_check
      _
    $region55: #{tpu_custom_call.1} parent=1 // pred_check_branch
      %53 = sbr.rel (0) target = $region57
    $region56: #{tpu_custom_call.1} parent=1 // pred_region
      _
    $region57: #{tpu_custom_call.1} parent=1 // pred_fallthru
      _
    // Predicated region
    $region58: #{tpu_custom_call.1} parent=1 // pred_check
      _
    $region59: #{tpu_custom_call.1} parent=1 // pred_check_branch
      %55 = sbr.rel (0) target = $region61
    $region60: #{tpu_custom_call.1} parent=1 // pred_region
      _
    $region61: #{tpu_custom_call.1} parent=1 // pred_fallthru
      _
    // Predicated region
    $region62: #{tpu_custom_call.1} parent=1 // pred_check
      _
    $region63: #{tpu_custom_call.1} parent=1 // pred_check_branch
      %57 = sbr.rel (0) target = $region65
    $region64: #{tpu_custom_call.1} parent=1 // pred_region
      _
    $region65: #{tpu_custom_call.1} parent=1 // pred_fallthru
      _
    // Predicated region
    $region66: #{tpu_custom_call.1} parent=1 // pred_check
      _
    $region67: #{tpu_custom_call.1} parent=1 // pred_check_branch
      %59 = sbr.rel (0) target = $region69
    $region68: #{tpu_custom_call.1} parent=1 // pred_region
      _
    $region69: #{tpu_custom_call.1} parent=1 // pred_fallthru
      _
    // Predicated region
    $region70: #{tpu_custom_call.1} parent=1 // pred_check
      _
    $region71: #{tpu_custom_call.1} parent=1 // pred_check_branch
      %61 = sbr.rel (0) target = $region73
    $region72: #{tpu_custom_call.1} parent=1 // pred_region
      _
    $region73: #{tpu_custom_call.1} parent=1 // pred_fallthru
      _
    %v63 = vld [vmem:[%s1] sm:$0xff]
    %v64 = vld [vmem:[%s1 + $0x8] sm:$0xff]
    %v65 = vld [vmem:[%s0] sm:$0x1]
    %v66 = vld [vmem:[%s0 + $0x1] sm:$0x1]
    %v67 = vlaneseq
    %v68 = vshrl.u32 %v67, 7
    %v69 = vlaneseq
    %v70 = vand.u32 %v69, 127
    %vm71 = vcmp.le.s32.totalorder %v70, %v68
    %v72 = vsel %vm71, 0.0, -1e+09
    %v73 = vsub.f32 1.0, %v65
    %v74 = vsub.f32 1.0, %v66
    %v75 = vmul.f32 %v73, -1e+09
    %v76 = vmul.f32 %v74, -1e+09
    %v79 = vlaneseq
    %v80 = vshrl.u32 %v79, 7
    %v81 = vsub.s32 0, %v80
    %v82 = vrot.slane %v75, %v81
    %v83 = vlaneseq
    %v84 = vshrl.u32 %v83, 7
    %v85 = vsub.s32 0, %v84
    %v86 = vrot.slane %v76, %v85
    %v89 = vadd.f32 %v72, %v82
    %v90 = vadd.f32 %v72, %v86
    %v91 = vld [vmem:[%s2] sm:$0x1]
    %v92 = vld [vmem:[%s3] sm:$0x1]
    %vm93 = vcmask 261120
    %v94 = vsel %vm93, %v63, 0.0
    %95 = vadd.xlane.f32.xlu0 %v94
    %v96 = vpop.xlane.xlu0 %95
    %v97 = vsel %vm93, %v64, 0.0
    %98 = vadd.xlane.f32.xlu0 %v97
    %v99 = vpop.xlane.xlu0 %98
    %v100 = vrcp.pop 32.0
    %v101 = vmul.f32 %v96, %v100
    %v102 = vmul.f32 %v99, %v100
    %v103 = vsub.f32 %v63, %v101
    %v104 = vsub.f32 %v64, %v102
    %v105 = vmul.f32 %v103, %v103
    %v106 = vmul.f32 %v104, %v104
    %v107 = vsel %vm93, %v105, 0.0
    %108 = vadd.xlane.f32.xlu0 %v107
    %v109 = vpop.xlane.xlu0 %108
    %v110 = vsel %vm93, %v106, 0.0
    %111 = vadd.xlane.f32.xlu0 %v110
    %v112 = vpop.xlane.xlu0 %111
    %v113 = vmul.f32 %v109, %v100
    %v114 = vmul.f32 %v112, %v100
    %v115 = vadd.f32 %v113, 1e-05
    %v116 = vadd.f32 %v114, 1e-05
    %v117 = vrsqrt.pop %v115
    %v118 = vrsqrt.pop %v116
    %v119 = vmul.f32 %v103, %v117
    %v120 = vmul.f32 %v104, %v118
    %v122 = vlaneseq
    %v123 = vshrl.u32 %v122, 7
    %v124 = vsub.s32 0, %v123
    %v125 = vrot.slane %v91, %v124
    %v127 = vmul.f32 %v119, %v125
    %v128 = vmul.f32 %v120, %v125
    %v130 = vlaneseq
    %v131 = vshrl.u32 %v130, 7
    %v132 = vsub.s32 0, %v131
    %v133 = vrot.slane %v92, %v132
    %v135 = vadd.f32 %v127, %v133
    %v136 = vadd.f32 %v128, %v133
    %v137 = vpack.c.bf16 %v136, %v135
    %v138 = vld [vmem:[%s4] sm:$0xf]
    %v139 = vld [vmem:[%s4 + $0x4] sm:$0xf]
    %v140 = vld [vmem:[%s4 + $0x8] sm:$0xf]
    %v141 = vld [vmem:[%s4 + $0xc] sm:$0xf]
    %v142 = vld [vmem:[%s5] sm:$0x1]
    %v144 = vlaneseq
    %v145 = vshrl.u32 %v144, 7
    %v146 = vsub.s32 0, %v145
    %v147 = vrot.slane %v142, %v146
    %v153 = vunpack.c.l.b16 %v138
    %v154 = vunpack.c.l.b16 %v139
    %v155 = vunpack.c.l.b16 %v140
    %v156 = vunpack.c.l.b16 %v141
    %v157 = vpack.c.b16 %v154, %v153
    %v158 = vpack.c.b16 %v156, %v155
    %v162 = vsel %vm93, %v137, 0
    %164 = vmatprep.subr.bf16.mxu0 0
    %165 = vmatpush1.bf16.msra.mxu0 %v157
    %166 = vmatprep.subr.bf16.mxu0 0
    %167 = vmatpush1.bf16.msra.mxu0 %v158
    %168 = vmatprep.subr.bf16.mxu0 0
    %169 = vmatpush1.bf16.msra.mxu0 0
    %170 = vmatprep.subr.bf16.mxu0 0
    %171 = vmatpush1.bf16.msra.mxu0 0
    %172 = vmatprep.subr.bf16.mxu0 0
    %173 = vmatpush1.bf16.msra.mxu0 0
    %174 = vmatprep.subr.bf16.mxu0 0
    %175 = vmatpush1.bf16.msra.mxu0 0
    %176 = vmatprep.subr.bf16.mxu0 0
    %177 = vmatpush1.bf16.msra.mxu0 0
    %178 = vmatprep.subr.bf16.mxu0 0
    %179 = vmatpush1.bf16.msra.mxu0 0
    %180 = vmatprep.subr.bf16.mxu0 0
    %181 = vmatpush1.bf16.msra.mxu0 0
    %182 = vmatprep.subr.bf16.mxu0 0
    %183 = vmatpush1.bf16.msra.mxu0 0
    %184 = vmatprep.subr.bf16.mxu0 0
    %185 = vmatpush1.bf16.msra.mxu0 0
    %186 = vmatprep.subr.bf16.mxu0 0
    %187 = vmatpush1.bf16.msra.mxu0 0
    %188 = vmatprep.subr.bf16.mxu0 0
    %189 = vmatpush1.bf16.msra.mxu0 0
    %190 = vmatprep.subr.bf16.mxu0 0
    %191 = vmatpush1.bf16.msra.mxu0 0
    %192 = vmatprep.subr.bf16.mxu0 0
    %193 = vmatpush1.bf16.msra.mxu0 0
    %194 = vmatprep.subr.bf16.mxu0 0
    %195 = vmatpush1.bf16.msra.mxu0 0
    %196 = vmatprep.mubr.bf16.mxu0 0
    %197 = vmatmul.mubr.bf16.gmra.mrb[0].mxu0 %v162
    %v198 = vpop.f32.mrb[0].mxu0
    %v199 = vadd.f32 %v147, %v198
    %v200 = vpop.f32.mrb[0].mxu0
    %v201 = vpop.f32.mrb[0].mxu0
    %v202 = vadd.f32 %v147, %v201
    %v203 = vpop.f32.mrb[0].mxu0
    %204 = vdwg.mxu0
    %v205 = vpack.c.bf16 %v199, %v199
    %v206 = vpack.c.bf16 %v202, %v202
    %208 = vrot.lane.b32.xlu0 %v205, 96
    %v209 = vpop.permute.xlu0 %208
    %vm210 = vcmask 64512
    %v212 = vsel %vm210, %v205, 0
    %v215 = vsel %vm210, %v209, 0
    %217 = vmatprep.subr.bf16.mxu0 0
    %218 = vmatpush1.bf16.xpose.msra.mxu0 %v215
    %219 = vmatprep.subr.bf16.mxu0 0
    %220 = vmatpush1.bf16.xpose.msra.mxu0 0
    %221 = vmatprep.subr.bf16.mxu0 0
    %222 = vmatpush1.bf16.xpose.msra.mxu0 0
    %223 = vmatprep.subr.bf16.mxu0 0
    %224 = vmatpush1.bf16.xpose.msra.mxu0 0
    %225 = vmatprep.subr.bf16.mxu0 0
    %226 = vmatpush1.bf16.xpose.msra.mxu0 0
    %227 = vmatprep.subr.bf16.mxu0 0
    %228 = vmatpush1.bf16.xpose.msra.mxu0 0
    %229 = vmatprep.subr.bf16.mxu0 0
    %230 = vmatpush1.bf16.xpose.msra.mxu0 0
    %231 = vmatprep.subr.bf16.mxu0 0
    %232 = vmatpush1.bf16.xpose.msra.mxu0 0
    %233 = vmatprep.subr.bf16.mxu0 0
    %234 = vmatpush1.bf16.xpose.msra.mxu0 0
    %235 = vmatprep.subr.bf16.mxu0 0
    %236 = vmatpush1.bf16.xpose.msra.mxu0 0
    %237 = vmatprep.subr.bf16.mxu0 0
    %238 = vmatpush1.bf16.xpose.msra.mxu0 0
    %239 = vmatprep.subr.bf16.mxu0 0
    %240 = vmatpush1.bf16.xpose.msra.mxu0 0
    %241 = vmatprep.subr.bf16.mxu0 0
    %242 = vmatpush1.bf16.xpose.msra.mxu0 0
    %243 = vmatprep.subr.bf16.mxu0 0
    %244 = vmatpush1.bf16.xpose.msra.mxu0 0
    %245 = vmatprep.subr.bf16.mxu0 0
    %246 = vmatpush1.bf16.xpose.msra.mxu0 0
    %247 = vmatprep.subr.bf16.mxu0 0
    %248 = vmatpush1.bf16.xpose.msra.mxu0 0
    %249 = vmatprep.mubr.bf16.mxu0 0
    %250 = vmatmul.mubr.bf16.gmra.mrb[0].mxu0 %v212
    %v251 = vpop.f32.mrb[0].mxu0
    %v252 = vadd.f32 0.0, %v251
    %v253 = vpop.f32.mrb[0].mxu0
    %v254 = vpop.f32.mrb[0].mxu0
    %v255 = vpop.f32.mrb[0].mxu0
    %256 = vdwg.mxu0
    %258 = vrot.lane.b32.xlu0 %v206, 96
    %v259 = vpop.permute.xlu0 %258
    %v261 = vsel %vm210, %v206, 0
    %v264 = vsel %vm210, %v259, 0
    %266 = vmatprep.subr.bf16.mxu0 0
    %267 = vmatpush1.bf16.xpose.msra.mxu0 %v264
    %268 = vmatprep.subr.bf16.mxu0 0
    %269 = vmatpush1.bf16.xpose.msra.mxu0 0
    %270 = vmatprep.subr.bf16.mxu0 0
    %271 = vmatpush1.bf16.xpose.msra.mxu0 0
    %272 = vmatprep.subr.bf16.mxu0 0
    %273 = vmatpush1.bf16.xpose.msra.mxu0 0
    %274 = vmatprep.subr.bf16.mxu0 0
    %275 = vmatpush1.bf16.xpose.msra.mxu0 0
    %276 = vmatprep.subr.bf16.mxu0 0
    %277 = vmatpush1.bf16.xpose.msra.mxu0 0
    %278 = vmatprep.subr.bf16.mxu0 0
    %279 = vmatpush1.bf16.xpose.msra.mxu0 0
    %280 = vmatprep.subr.bf16.mxu0 0
    %281 = vmatpush1.bf16.xpose.msra.mxu0 0
    %282 = vmatprep.subr.bf16.mxu0 0
    %283 = vmatpush1.bf16.xpose.msra.mxu0 0
    %284 = vmatprep.subr.bf16.mxu0 0
    %285 = vmatpush1.bf16.xpose.msra.mxu0 0
    %286 = vmatprep.subr.bf16.mxu0 0
    %287 = vmatpush1.bf16.xpose.msra.mxu0 0
    %288 = vmatprep.subr.bf16.mxu0 0
    %289 = vmatpush1.bf16.xpose.msra.mxu0 0
    %290 = vmatprep.subr.bf16.mxu0 0
    %291 = vmatpush1.bf16.xpose.msra.mxu0 0
    %292 = vmatprep.subr.bf16.mxu0 0
    %293 = vmatpush1.bf16.xpose.msra.mxu0 0
    %294 = vmatprep.subr.bf16.mxu0 0
    %295 = vmatpush1.bf16.xpose.msra.mxu0 0
    %296 = vmatprep.subr.bf16.mxu0 0
    %297 = vmatpush1.bf16.xpose.msra.mxu0 0
    %298 = vmatprep.mubr.bf16.mxu0 0
    %299 = vmatmul.mubr.bf16.gmra.mrb[0].mxu0 %v261
    %v300 = vpop.f32.mrb[0].mxu0
    %v301 = vadd.f32 0.0, %v300
    %v302 = vpop.f32.mrb[0].mxu0
    %v303 = vpop.f32.mrb[0].mxu0
    %v304 = vpop.f32.mrb[0].mxu0
    %305 = vdwg.mxu0
    %v306 = vmul.f32 %v252, 0.35355338
    %v307 = vmul.f32 %v301, 0.35355338
    %v308 = vadd.f32 %v306, %v89
    %v309 = vadd.f32 %v307, %v90
    %v310 = vsel %vm210, %v308, -inf
    %311 = vmax.xlane.f32.xlu0 %v310
    %v312 = vpop.xlane.xlu0 %311
    %v313 = vsel %vm210, %v309, -inf
    %314 = vmax.xlane.f32.xlu0 %v313
    %v315 = vpop.xlane.xlu0 %314
    %v316 = vsub.f32 %v308, %v312
    %v317 = vsub.f32 %v309, %v315
    %v318 = vmul.f32 %v316, 1.442695
    %v319 = vpow.pop %v318
    %v320 = vmul.f32 %v317, 1.442695
    %v321 = vpow.pop %v320
    %v322 = vsel %vm210, %v319, 0.0
    %323 = vadd.xlane.f32.xlu0 %v322
    %v324 = vpop.xlane.xlu0 %323
    %v325 = vsel %vm210, %v321, 0.0
    %326 = vadd.xlane.f32.xlu0 %v325
    %v327 = vpop.xlane.xlu0 %326
    %v328 = vrcp.pop %v324
    %v329 = vrcp.pop %v327
    %v330 = vmul.f32 %v319, %v328
    %v331 = vmul.f32 %v321, %v329
    %v332 = vpack.c.bf16 %v330, %v330
    %v333 = vpack.c.bf16 %v331, %v331
    %334 = vrot.lane.b32.xlu0 %v205, 64
    %v335 = vpop.permute.xlu0 %334
    %v337 = vsel %vm210, %v332, 0
    %vm339 = vcmask 1043456
    %v341 = vsel %vm339, %v335, 0
    %343 = vmatprep.subr.bf16.mxu0 0
    %344 = vmatpush1.bf16.msra.mxu0 %v341
    %345 = vmatprep.subr.bf16.mxu0 0
    %346 = vmatpush1.bf16.msra.mxu0 0
    %347 = vmatprep.subr.bf16.mxu0 0
    %348 = vmatpush1.bf16.msra.mxu0 0
    %349 = vmatprep.subr.bf16.mxu0 0
    %350 = vmatpush1.bf16.msra.mxu0 0
    %351 = vmatprep.subr.bf16.mxu0 0
    %352 = vmatpush1.bf16.msra.mxu0 0
    %353 = vmatprep.subr.bf16.mxu0 0
    %354 = vmatpush1.bf16.msra.mxu0 0
    %355 = vmatprep.subr.bf16.mxu0 0
    %356 = vmatpush1.bf16.msra.mxu0 0
    %357 = vmatprep.subr.bf16.mxu0 0
    %358 = vmatpush1.bf16.msra.mxu0 0
    %359 = vmatprep.subr.bf16.mxu0 0
    %360 = vmatpush1.bf16.msra.mxu0 0
    %361 = vmatprep.subr.bf16.mxu0 0
    %362 = vmatpush1.bf16.msra.mxu0 0
    %363 = vmatprep.subr.bf16.mxu0 0
    %364 = vmatpush1.bf16.msra.mxu0 0
    %365 = vmatprep.subr.bf16.mxu0 0
    %366 = vmatpush1.bf16.msra.mxu0 0
    %367 = vmatprep.subr.bf16.mxu0 0
    %368 = vmatpush1.bf16.msra.mxu0 0
    %369 = vmatprep.subr.bf16.mxu0 0
    %370 = vmatpush1.bf16.msra.mxu0 0
    %371 = vmatprep.subr.bf16.mxu0 0
    %372 = vmatpush1.bf16.msra.mxu0 0
    %373 = vmatprep.subr.bf16.mxu0 0
    %374 = vmatpush1.bf16.msra.mxu0 0
    %375 = vmatprep.mubr.bf16.mxu0 0
    %376 = vmatmul.mubr.bf16.gmra.mrb[0].mxu0 %v337
    %v377 = vpop.f32.mrb[0].mxu0
    %v378 = vadd.f32 0.0, %v377
    %v379 = vpop.f32.mrb[0].mxu0
    %v380 = vpop.f32.mrb[0].mxu0
    %v381 = vpop.f32.mrb[0].mxu0
    %382 = vdwg.mxu0
    %383 = vrot.lane.b32.xlu0 %v206, 64
    %v384 = vpop.permute.xlu0 %383
    %v386 = vsel %vm210, %v333, 0
    %v389 = vsel %vm339, %v384, 0
    %391 = vmatprep.subr.bf16.mxu0 0
    %392 = vmatpush1.bf16.msra.mxu0 %v389
    %393 = vmatprep.subr.bf16.mxu0 0
    %394 = vmatpush1.bf16.msra.mxu0 0
    %395 = vmatprep.subr.bf16.mxu0 0
    %396 = vmatpush1.bf16.msra.mxu0 0
    %397 = vmatprep.subr.bf16.mxu0 0
    %398 = vmatpush1.bf16.msra.mxu0 0
    %399 = vmatprep.subr.bf16.mxu0 0
    %400 = vmatpush1.bf16.msra.mxu0 0
    %401 = vmatprep.subr.bf16.mxu0 0
    %402 = vmatpush1.bf16.msra.mxu0 0
    %403 = vmatprep.subr.bf16.mxu0 0
    %404 = vmatpush1.bf16.msra.mxu0 0
    %405 = vmatprep.subr.bf16.mxu0 0
    %406 = vmatpush1.bf16.msra.mxu0 0
    %407 = vmatprep.subr.bf16.mxu0 0
    %408 = vmatpush1.bf16.msra.mxu0 0
    %409 = vmatprep.subr.bf16.mxu0 0
    %410 = vmatpush1.bf16.msra.mxu0 0
    %411 = vmatprep.subr.bf16.mxu0 0
    %412 = vmatpush1.bf16.msra.mxu0 0
    %413 = vmatprep.subr.bf16.mxu0 0
    %414 = vmatpush1.bf16.msra.mxu0 0
    %415 = vmatprep.subr.bf16.mxu0 0
    %416 = vmatpush1.bf16.msra.mxu0 0
    %417 = vmatprep.subr.bf16.mxu0 0
    %418 = vmatpush1.bf16.msra.mxu0 0
    %419 = vmatprep.subr.bf16.mxu0 0
    %420 = vmatpush1.bf16.msra.mxu0 0
    %421 = vmatprep.subr.bf16.mxu0 0
    %422 = vmatpush1.bf16.msra.mxu0 0
    %423 = vmatprep.mubr.bf16.mxu0 0
    %424 = vmatmul.mubr.bf16.gmra.mrb[0].mxu0 %v386
    %v425 = vpop.f32.mrb[0].mxu0
    %v426 = vadd.f32 0.0, %v425
    %v427 = vpop.f32.mrb[0].mxu0
    %v428 = vpop.f32.mrb[0].mxu0
    %v429 = vpop.f32.mrb[0].mxu0
    %430 = vdwg.mxu0
    %431 = vrot.lane.b32.xlu0 %v205, 120
    %v432 = vpop.permute.xlu0 %431
    %433 = vrot.lane.b32.xlu0 %v205, 88
    %v434 = vpop.permute.xlu0 %433
    %v436 = vsel %vm210, %v432, 0
    %v439 = vsel %vm210, %v434, 0
    %441 = vmatprep.subr.bf16.mxu0 0
    %442 = vmatpush1.bf16.xpose.msra.mxu0 %v439
    %443 = vmatprep.subr.bf16.mxu0 0
    %444 = vmatpush1.bf16.xpose.msra.mxu0 0
    %445 = vmatprep.subr.bf16.mxu0 0
    %446 = vmatpush1.bf16.xpose.msra.mxu0 0
    %447 = vmatprep.subr.bf16.mxu0 0
    %448 = vmatpush1.bf16.xpose.msra.mxu0 0
    %449 = vmatprep.subr.bf16.mxu0 0
    %450 = vmatpush1.bf16.xpose.msra.mxu0 0
    %451 = vmatprep.subr.bf16.mxu0 0
    %452 = vmatpush1.bf16.xpose.msra.mxu0 0
    %453 = vmatprep.subr.bf16.mxu0 0
    %454 = vmatpush1.bf16.xpose.msra.mxu0 0
    %455 = vmatprep.subr.bf16.mxu0 0
    %456 = vmatpush1.bf16.xpose.msra.mxu0 0
    %457 = vmatprep.subr.bf16.mxu0 0
    %458 = vmatpush1.bf16.xpose.msra.mxu0 0
    %459 = vmatprep.subr.bf16.mxu0 0
    %460 = vmatpush1.bf16.xpose.msra.mxu0 0
    %461 = vmatprep.subr.bf16.mxu0 0
    %462 = vmatpush1.bf16.xpose.msra.mxu0 0
    %463 = vmatprep.subr.bf16.mxu0 0
    %464 = vmatpush1.bf16.xpose.msra.mxu0 0
    %465 = vmatprep.subr.bf16.mxu0 0
    %466 = vmatpush1.bf16.xpose.msra.mxu0 0
    %467 = vmatprep.subr.bf16.mxu0 0
    %468 = vmatpush1.bf16.xpose.msra.mxu0 0
    %469 = vmatprep.subr.bf16.mxu0 0
    %470 = vmatpush1.bf16.xpose.msra.mxu0 0
    %471 = vmatprep.subr.bf16.mxu0 0
    %472 = vmatpush1.bf16.xpose.msra.mxu0 0
    %473 = vmatprep.mubr.bf16.mxu0 0
    %474 = vmatmul.mubr.bf16.gmra.mrb[0].mxu0 %v436
    %v475 = vpop.f32.mrb[0].mxu0
    %v476 = vadd.f32 0.0, %v475
    %v477 = vpop.f32.mrb[0].mxu0
    %v478 = vpop.f32.mrb[0].mxu0
    %v479 = vpop.f32.mrb[0].mxu0
    %480 = vdwg.mxu0
    %481 = vrot.lane.b32.xlu0 %v206, 120
    %v482 = vpop.permute.xlu0 %481
    %483 = vrot.lane.b32.xlu0 %v206, 88
    %v484 = vpop.permute.xlu0 %483
    %v486 = vsel %vm210, %v482, 0
    %v489 = vsel %vm210, %v484, 0
    %491 = vmatprep.subr.bf16.mxu0 0
    %492 = vmatpush1.bf16.xpose.msra.mxu0 %v489
    %493 = vmatprep.subr.bf16.mxu0 0
    %494 = vmatpush1.bf16.xpose.msra.mxu0 0
    %495 = vmatprep.subr.bf16.mxu0 0
    %496 = vmatpush1.bf16.xpose.msra.mxu0 0
    %497 = vmatprep.subr.bf16.mxu0 0
    %498 = vmatpush1.bf16.xpose.msra.mxu0 0
    %499 = vmatprep.subr.bf16.mxu0 0
    %500 = vmatpush1.bf16.xpose.msra.mxu0 0
    %501 = vmatprep.subr.bf16.mxu0 0
    %502 = vmatpush1.bf16.xpose.msra.mxu0 0
    %503 = vmatprep.subr.bf16.mxu0 0
    %504 = vmatpush1.bf16.xpose.msra.mxu0 0
    %505 = vmatprep.subr.bf16.mxu0 0
    %506 = vmatpush1.bf16.xpose.msra.mxu0 0
    %507 = vmatprep.subr.bf16.mxu0 0
    %508 = vmatpush1.bf16.xpose.msra.mxu0 0
    %509 = vmatprep.subr.bf16.mxu0 0
    %510 = vmatpush1.bf16.xpose.msra.mxu0 0
    %511 = vmatprep.subr.bf16.mxu0 0
    %512 = vmatpush1.bf16.xpose.msra.mxu0 0
    %513 = vmatprep.subr.bf16.mxu0 0
    %514 = vmatpush1.bf16.xpose.msra.mxu0 0
    %515 = vmatprep.subr.bf16.mxu0 0
    %516 = vmatpush1.bf16.xpose.msra.mxu0 0
    %517 = vmatprep.subr.bf16.mxu0 0
    %518 = vmatpush1.bf16.xpose.msra.mxu0 0
    %519 = vmatprep.subr.bf16.mxu0 0
    %520 = vmatpush1.bf16.xpose.msra.mxu0 0
    %521 = vmatprep.subr.bf16.mxu0 0
    %522 = vmatpush1.bf16.xpose.msra.mxu0 0
    %523 = vmatprep.mubr.bf16.mxu0 0
    %524 = vmatmul.mubr.bf16.gmra.mrb[0].mxu0 %v486
    %v525 = vpop.f32.mrb[0].mxu0
    %v526 = vadd.f32 0.0, %v525
    %v527 = vpop.f32.mrb[0].mxu0
    %v528 = vpop.f32.mrb[0].mxu0
    %v529 = vpop.f32.mrb[0].mxu0
    %530 = vdwg.mxu0
    %v531 = vmul.f32 %v476, 0.35355338
    %v532 = vmul.f32 %v526, 0.35355338
    %v533 = vadd.f32 %v531, %v89
    %v534 = vadd.f32 %v532, %v90
    %v535 = vsel %vm210, %v533, -inf
    %536 = vmax.xlane.f32.xlu0 %v535
    %v537 = vpop.xlane.xlu0 %536
    %v538 = vsel %vm210, %v534, -inf
    %539 = vmax.xlane.f32.xlu0 %v538
    %v540 = vpop.xlane.xlu0 %539
    %v541 = vsub.f32 %v533, %v537
    %v542 = vsub.f32 %v534, %v540
    %v543 = vmul.f32 %v541, 1.442695
    %v544 = vpow.pop %v543
    %v545 = vmul.f32 %v542, 1.442695
    %v546 = vpow.pop %v545
    %v547 = vsel %vm210, %v544, 0.0
    %548 = vadd.xlane.f32.xlu0 %v547
    %v549 = vpop.xlane.xlu0 %548
    %v550 = vsel %vm210, %v546, 0.0
    %551 = vadd.xlane.f32.xlu0 %v550
    %v552 = vpop.xlane.xlu0 %551
    %v553 = vrcp.pop %v549
    %v554 = vrcp.pop %v552
    %v555 = vmul.f32 %v544, %v553
    %v556 = vmul.f32 %v546, %v554
    %v557 = vpack.c.bf16 %v555, %v555
    %v558 = vpack.c.bf16 %v556, %v556
    %559 = vrot.lane.b32.xlu0 %v205, 56
    %v560 = vpop.permute.xlu0 %559
    %v562 = vsel %vm210, %v557, 0
    %v565 = vsel %vm339, %v560, 0
    %567 = vmatprep.subr.bf16.mxu0 0
    %568 = vmatpush1.bf16.msra.mxu0 %v565
    %569 = vmatprep.subr.bf16.mxu0 0
    %570 = vmatpush1.bf16.msra.mxu0 0
    %571 = vmatprep.subr.bf16.mxu0 0
    %572 = vmatpush1.bf16.msra.mxu0 0
    %573 = vmatprep.subr.bf16.mxu0 0
    %574 = vmatpush1.bf16.msra.mxu0 0
    %575 = vmatprep.subr.bf16.mxu0 0
    %576 = vmatpush1.bf16.msra.mxu0 0
    %577 = vmatprep.subr.bf16.mxu0 0
    %578 = vmatpush1.bf16.msra.mxu0 0
    %579 = vmatprep.subr.bf16.mxu0 0
    %580 = vmatpush1.bf16.msra.mxu0 0
    %581 = vmatprep.subr.bf16.mxu0 0
    %582 = vmatpush1.bf16.msra.mxu0 0
    %583 = vmatprep.subr.bf16.mxu0 0
    %584 = vmatpush1.bf16.msra.mxu0 0
    %585 = vmatprep.subr.bf16.mxu0 0
    %586 = vmatpush1.bf16.msra.mxu0 0
    %587 = vmatprep.subr.bf16.mxu0 0
    %588 = vmatpush1.bf16.msra.mxu0 0
    %589 = vmatprep.subr.bf16.mxu0 0
    %590 = vmatpush1.bf16.msra.mxu0 0
    %591 = vmatprep.subr.bf16.mxu0 0
    %592 = vmatpush1.bf16.msra.mxu0 0
    %593 = vmatprep.subr.bf16.mxu0 0
    %594 = vmatpush1.bf16.msra.mxu0 0
    %595 = vmatprep.subr.bf16.mxu0 0
    %596 = vmatpush1.bf16.msra.mxu0 0
    %597 = vmatprep.subr.bf16.mxu0 0
    %598 = vmatpush1.bf16.msra.mxu0 0
    %599 = vmatprep.mubr.bf16.mxu0 0
    %600 = vmatmul.mubr.bf16.gmra.mrb[0].mxu0 %v562
    %v601 = vpop.f32.mrb[0].mxu0
    %v602 = vadd.f32 0.0, %v601
    %v603 = vpop.f32.mrb[0].mxu0
    %v604 = vpop.f32.mrb[0].mxu0
    %v605 = vpop.f32.mrb[0].mxu0
    %606 = vdwg.mxu0
    %607 = vrot.lane.b32.xlu0 %v206, 56
    %v608 = vpop.permute.xlu0 %607
    %v610 = vsel %vm210, %v558, 0
    %v613 = vsel %vm339, %v608, 0
    %615 = vmatprep.subr.bf16.mxu0 0
    %616 = vmatpush1.bf16.msra.mxu0 %v613
    %617 = vmatprep.subr.bf16.mxu0 0
    %618 = vmatpush1.bf16.msra.mxu0 0
    %619 = vmatprep.subr.bf16.mxu0 0
    %620 = vmatpush1.bf16.msra.mxu0 0
    %621 = vmatprep.subr.bf16.mxu0 0
    %622 = vmatpush1.bf16.msra.mxu0 0
    %623 = vmatprep.subr.bf16.mxu0 0
    %624 = vmatpush1.bf16.msra.mxu0 0
    %625 = vmatprep.subr.bf16.mxu0 0
    %626 = vmatpush1.bf16.msra.mxu0 0
    %627 = vmatprep.subr.bf16.mxu0 0
    %628 = vmatpush1.bf16.msra.mxu0 0
    %629 = vmatprep.subr.bf16.mxu0 0
    %630 = vmatpush1.bf16.msra.mxu0 0
    %631 = vmatprep.subr.bf16.mxu0 0
    %632 = vmatpush1.bf16.msra.mxu0 0
    %633 = vmatprep.subr.bf16.mxu0 0
    %634 = vmatpush1.bf16.msra.mxu0 0
    %635 = vmatprep.subr.bf16.mxu0 0
    %636 = vmatpush1.bf16.msra.mxu0 0
    %637 = vmatprep.subr.bf16.mxu0 0
    %638 = vmatpush1.bf16.msra.mxu0 0
    %639 = vmatprep.subr.bf16.mxu0 0
    %640 = vmatpush1.bf16.msra.mxu0 0
    %641 = vmatprep.subr.bf16.mxu0 0
    %642 = vmatpush1.bf16.msra.mxu0 0
    %643 = vmatprep.subr.bf16.mxu0 0
    %644 = vmatpush1.bf16.msra.mxu0 0
    %645 = vmatprep.subr.bf16.mxu0 0
    %646 = vmatpush1.bf16.msra.mxu0 0
    %647 = vmatprep.mubr.bf16.mxu0 0
    %648 = vmatmul.mubr.bf16.gmra.mrb[0].mxu0 %v610
    %v649 = vpop.f32.mrb[0].mxu0
    %v650 = vadd.f32 0.0, %v649
    %v651 = vpop.f32.mrb[0].mxu0
    %v652 = vpop.f32.mrb[0].mxu0
    %v653 = vpop.f32.mrb[0].mxu0
    %654 = vdwg.mxu0
    %655 = vrot.lane.b32.xlu0 %v205, 112
    %v656 = vpop.permute.xlu0 %655
    %657 = vrot.lane.b32.xlu0 %v205, 80
    %v658 = vpop.permute.xlu0 %657
    %v660 = vsel %vm210, %v656, 0
    %v663 = vsel %vm210, %v658, 0
    %665 = vmatprep.subr.bf16.mxu0 0
    %666 = vmatpush1.bf16.xpose.msra.mxu0 %v663
    %667 = vmatprep.subr.bf16.mxu0 0
    %668 = vmatpush1.bf16.xpose.msra.mxu0 0
    %669 = vmatprep.subr.bf16.mxu0 0
    %670 = vmatpush1.bf16.xpose.msra.mxu0 0
    %671 = vmatprep.subr.bf16.mxu0 0
    %672 = vmatpush1.bf16.xpose.msra.mxu0 0
    %673 = vmatprep.subr.bf16.mxu0 0
    %674 = vmatpush1.bf16.xpose.msra.mxu0 0
    %675 = vmatprep.subr.bf16.mxu0 0
    %676 = vmatpush1.bf16.xpose.msra.mxu0 0
    %677 = vmatprep.subr.bf16.mxu0 0
    %678 = vmatpush1.bf16.xpose.msra.mxu0 0
    %679 = vmatprep.subr.bf16.mxu0 0
    %680 = vmatpush1.bf16.xpose.msra.mxu0 0
    %681 = vmatprep.subr.bf16.mxu0 0
    %682 = vmatpush1.bf16.xpose.msra.mxu0 0
    %683 = vmatprep.subr.bf16.mxu0 0
    %684 = vmatpush1.bf16.xpose.msra.mxu0 0
    %685 = vmatprep.subr.bf16.mxu0 0
    %686 = vmatpush1.bf16.xpose.msra.mxu0 0
    %687 = vmatprep.subr.bf16.mxu0 0
    %688 = vmatpush1.bf16.xpose.msra.mxu0 0
    %689 = vmatprep.subr.bf16.mxu0 0
    %690 = vmatpush1.bf16.xpose.msra.mxu0 0
    %691 = vmatprep.subr.bf16.mxu0 0
    %692 = vmatpush1.bf16.xpose.msra.mxu0 0
    %693 = vmatprep.subr.bf16.mxu0 0
    %694 = vmatpush1.bf16.xpose.msra.mxu0 0
    %695 = vmatprep.subr.bf16.mxu0 0
    %696 = vmatpush1.bf16.xpose.msra.mxu0 0
    %697 = vmatprep.mubr.bf16.mxu0 0
    %698 = vmatmul.mubr.bf16.gmra.mrb[0].mxu0 %v660
    %v699 = vpop.f32.mrb[0].mxu0
    %v700 = vadd.f32 0.0, %v699
    %v701 = vpop.f32.mrb[0].mxu0
    %v702 = vpop.f32.mrb[0].mxu0
    %v703 = vpop.f32.mrb[0].mxu0
    %704 = vdwg.mxu0
    %705 = vrot.lane.b32.xlu0 %v206, 112
    %v706 = vpop.permute.xlu0 %705
    %707 = vrot.lane.b32.xlu0 %v206, 80
    %v708 = vpop.permute.xlu0 %707
    %v710 = vsel %vm210, %v706, 0
    %v713 = vsel %vm210, %v708, 0
    %715 = vmatprep.subr.bf16.mxu0 0
    %716 = vmatpush1.bf16.xpose.msra.mxu0 %v713
    %717 = vmatprep.subr.bf16.mxu0 0
    %718 = vmatpush1.bf16.xpose.msra.mxu0 0
    %719 = vmatprep.subr.bf16.mxu0 0
    %720 = vmatpush1.bf16.xpose.msra.mxu0 0
    %721 = vmatprep.subr.bf16.mxu0 0
    %722 = vmatpush1.bf16.xpose.msra.mxu0 0
    %723 = vmatprep.subr.bf16.mxu0 0
    %724 = vmatpush1.bf16.xpose.msra.mxu0 0
    %725 = vmatprep.subr.bf16.mxu0 0
    %726 = vmatpush1.bf16.xpose.msra.mxu0 0
    %727 = vmatprep.subr.bf16.mxu0 0
    %728 = vmatpush1.bf16.xpose.msra.mxu0 0
    %729 = vmatprep.subr.bf16.mxu0 0
    %730 = vmatpush1.bf16.xpose.msra.mxu0 0
    %731 = vmatprep.subr.bf16.mxu0 0
    %732 = vmatpush1.bf16.xpose.msra.mxu0 0
    %733 = vmatprep.subr.bf16.mxu0 0
    %734 = vmatpush1.bf16.xpose.msra.mxu0 0
    %735 = vmatprep.subr.bf16.mxu0 0
    %736 = vmatpush1.bf16.xpose.msra.mxu0 0
    %737 = vmatprep.subr.bf16.mxu0 0
    %738 = vmatpush1.bf16.xpose.msra.mxu0 0
    %739 = vmatprep.subr.bf16.mxu0 0
    %740 = vmatpush1.bf16.xpose.msra.mxu0 0
    %741 = vmatprep.subr.bf16.mxu0 0
    %742 = vmatpush1.bf16.xpose.msra.mxu0 0
    %743 = vmatprep.subr.bf16.mxu0 0
    %744 = vmatpush1.bf16.xpose.msra.mxu0 0
    %745 = vmatprep.subr.bf16.mxu0 0
    %746 = vmatpush1.bf16.xpose.msra.mxu0 0
    %747 = vmatprep.mubr.bf16.mxu0 0
    %748 = vmatmul.mubr.bf16.gmra.mrb[0].mxu0 %v710
    %v749 = vpop.f32.mrb[0].mxu0
    %v750 = vadd.f32 0.0, %v749
    %v751 = vpop.f32.mrb[0].mxu0
    %v752 = vpop.f32.mrb[0].mxu0
    %v753 = vpop.f32.mrb[0].mxu0
    %754 = vdwg.mxu0
    %v755 = vmul.f32 %v700, 0.35355338
    %v756 = vmul.f32 %v750, 0.35355338
    %v757 = vadd.f32 %v755, %v89
    %v758 = vadd.f32 %v756, %v90
    %v759 = vsel %vm210, %v757, -inf
    %760 = vmax.xlane.f32.xlu0 %v759
    %v761 = vpop.xlane.xlu0 %760
    %v762 = vsel %vm210, %v758, -inf
    %763 = vmax.xlane.f32.xlu0 %v762
    %v764 = vpop.xlane.xlu0 %763
    %v765 = vsub.f32 %v757, %v761
    %v766 = vsub.f32 %v758, %v764
    %v767 = vmul.f32 %v765, 1.442695
    %v768 = vpow.pop %v767
    %v769 = vmul.f32 %v766, 1.442695
    %v770 = vpow.pop %v769
    %v771 = vsel %vm210, %v768, 0.0
    %772 = vadd.xlane.f32.xlu0 %v771
    %v773 = vpop.xlane.xlu0 %772
    %v774 = vsel %vm210, %v770, 0.0
    %775 = vadd.xlane.f32.xlu0 %v774
    %v776 = vpop.xlane.xlu0 %775
    %v777 = vrcp.pop %v773
    %v778 = vrcp.pop %v776
    %v779 = vmul.f32 %v768, %v777
    %v780 = vmul.f32 %v770, %v778
    %v781 = vpack.c.bf16 %v779, %v779
    %v782 = vpack.c.bf16 %v780, %v780
    %783 = vrot.lane.b32.xlu0 %v205, 48
    %v784 = vpop.permute.xlu0 %783
    %v786 = vsel %vm210, %v781, 0
    %v789 = vsel %vm339, %v784, 0
    %791 = vmatprep.subr.bf16.mxu0 0
    %792 = vmatpush1.bf16.msra.mxu0 %v789
    %793 = vmatprep.subr.bf16.mxu0 0
    %794 = vmatpush1.bf16.msra.mxu0 0
    %795 = vmatprep.subr.bf16.mxu0 0
    %796 = vmatpush1.bf16.msra.mxu0 0
    %797 = vmatprep.subr.bf16.mxu0 0
    %798 = vmatpush1.bf16.msra.mxu0 0
    %799 = vmatprep.subr.bf16.mxu0 0
    %800 = vmatpush1.bf16.msra.mxu0 0
    %801 = vmatprep.subr.bf16.mxu0 0
    %802 = vmatpush1.bf16.msra.mxu0 0
    %803 = vmatprep.subr.bf16.mxu0 0
    %804 = vmatpush1.bf16.msra.mxu0 0
    %805 = vmatprep.subr.bf16.mxu0 0
    %806 = vmatpush1.bf16.msra.mxu0 0
    %807 = vmatprep.subr.bf16.mxu0 0
    %808 = vmatpush1.bf16.msra.mxu0 0
    %809 = vmatprep.subr.bf16.mxu0 0
    %810 = vmatpush1.bf16.msra.mxu0 0
    %811 = vmatprep.subr.bf16.mxu0 0
    %812 = vmatpush1.bf16.msra.mxu0 0
    %813 = vmatprep.subr.bf16.mxu0 0
    %814 = vmatpush1.bf16.msra.mxu0 0
    %815 = vmatprep.subr.bf16.mxu0 0
    %816 = vmatpush1.bf16.msra.mxu0 0
    %817 = vmatprep.subr.bf16.mxu0 0
    %818 = vmatpush1.bf16.msra.mxu0 0
    %819 = vmatprep.subr.bf16.mxu0 0
    %820 = vmatpush1.bf16.msra.mxu0 0
    %821 = vmatprep.subr.bf16.mxu0 0
    %822 = vmatpush1.bf16.msra.mxu0 0
    %823 = vmatprep.mubr.bf16.mxu0 0
    %824 = vmatmul.mubr.bf16.gmra.mrb[0].mxu0 %v786
    %v825 = vpop.f32.mrb[0].mxu0
    %v826 = vadd.f32 0.0, %v825
    %v827 = vpop.f32.mrb[0].mxu0
    %v828 = vpop.f32.mrb[0].mxu0
    %v829 = vpop.f32.mrb[0].mxu0
    %830 = vdwg.mxu0
    %831 = vrot.lane.b32.xlu0 %v206, 48
    %v832 = vpop.permute.xlu0 %831
    %v834 = vsel %vm210, %v782, 0
    %v837 = vsel %vm339, %v832, 0
    %839 = vmatprep.subr.bf16.mxu0 0
    %840 = vmatpush1.bf16.msra.mxu0 %v837
    %841 = vmatprep.subr.bf16.mxu0 0
    %842 = vmatpush1.bf16.msra.mxu0 0
    %843 = vmatprep.subr.bf16.mxu0 0
    %844 = vmatpush1.bf16.msra.mxu0 0
    %845 = vmatprep.subr.bf16.mxu0 0
    %846 = vmatpush1.bf16.msra.mxu0 0
    %847 = vmatprep.subr.bf16.mxu0 0
    %848 = vmatpush1.bf16.msra.mxu0 0
    %849 = vmatprep.subr.bf16.mxu0 0
    %850 = vmatpush1.bf16.msra.mxu0 0
    %851 = vmatprep.subr.bf16.mxu0 0
    %852 = vmatpush1.bf16.msra.mxu0 0
    %853 = vmatprep.subr.bf16.mxu0 0
    %854 = vmatpush1.bf16.msra.mxu0 0
    %855 = vmatprep.subr.bf16.mxu0 0
    %856 = vmatpush1.bf16.msra.mxu0 0
    %857 = vmatprep.subr.bf16.mxu0 0
    %858 = vmatpush1.bf16.msra.mxu0 0
    %859 = vmatprep.subr.bf16.mxu0 0
    %860 = vmatpush1.bf16.msra.mxu0 0
    %861 = vmatprep.subr.bf16.mxu0 0
    %862 = vmatpush1.bf16.msra.mxu0 0
    %863 = vmatprep.subr.bf16.mxu0 0
    %864 = vmatpush1.bf16.msra.mxu0 0
    %865 = vmatprep.subr.bf16.mxu0 0
    %866 = vmatpush1.bf16.msra.mxu0 0
    %867 = vmatprep.subr.bf16.mxu0 0
    %868 = vmatpush1.bf16.msra.mxu0 0
    %869 = vmatprep.subr.bf16.mxu0 0
    %870 = vmatpush1.bf16.msra.mxu0 0
    %871 = vmatprep.mubr.bf16.mxu0 0
    %872 = vmatmul.mubr.bf16.gmra.mrb[0].mxu0 %v834
    %v873 = vpop.f32.mrb[0].mxu0
    %v874 = vadd.f32 0.0, %v873
    %v875 = vpop.f32.mrb[0].mxu0
    %v876 = vpop.f32.mrb[0].mxu0
    %v877 = vpop.f32.mrb[0].mxu0
    %878 = vdwg.mxu0
    %879 = vrot.lane.b32.xlu0 %v205, 104
    %v880 = vpop.permute.xlu0 %879
    %881 = vrot.lane.b32.xlu0 %v205, 72
    %v882 = vpop.permute.xlu0 %881
    %v884 = vsel %vm210, %v880, 0
    %v887 = vsel %vm210, %v882, 0
    %889 = vmatprep.subr.bf16.mxu0 0
    %890 = vmatpush1.bf16.xpose.msra.mxu0 %v887
    %891 = vmatprep.subr.bf16.mxu0 0
    %892 = vmatpush1.bf16.xpose.msra.mxu0 0
    %893 = vmatprep.subr.bf16.mxu0 0
    %894 = vmatpush1.bf16.xpose.msra.mxu0 0
    %895 = vmatprep.subr.bf16.mxu0 0
    %896 = vmatpush1.bf16.xpose.msra.mxu0 0
    %897 = vmatprep.subr.bf16.mxu0 0
    %898 = vmatpush1.bf16.xpose.msra.mxu0 0
    %899 = vmatprep.subr.bf16.mxu0 0
    %900 = vmatpush1.bf16.xpose.msra.mxu0 0
    %901 = vmatprep.subr.bf16.mxu0 0
    %902 = vmatpush1.bf16.xpose.msra.mxu0 0
    %903 = vmatprep.subr.bf16.mxu0 0
    %904 = vmatpush1.bf16.xpose.msra.mxu0 0
    %905 = vmatprep.subr.bf16.mxu0 0
    %906 = vmatpush1.bf16.xpose.msra.mxu0 0
    %907 = vmatprep.subr.bf16.mxu0 0
    %908 = vmatpush1.bf16.xpose.msra.mxu0 0
    %909 = vmatprep.subr.bf16.mxu0 0
    %910 = vmatpush1.bf16.xpose.msra.mxu0 0
    %911 = vmatprep.subr.bf16.mxu0 0
    %912 = vmatpush1.bf16.xpose.msra.mxu0 0
    %913 = vmatprep.subr.bf16.mxu0 0
    %914 = vmatpush1.bf16.xpose.msra.mxu0 0
    %915 = vmatprep.subr.bf16.mxu0 0
    %916 = vmatpush1.bf16.xpose.msra.mxu0 0
    %917 = vmatprep.subr.bf16.mxu0 0
    %918 = vmatpush1.bf16.xpose.msra.mxu0 0
    %919 = vmatprep.subr.bf16.mxu0 0
    %920 = vmatpush1.bf16.xpose.msra.mxu0 0
    %921 = vmatprep.mubr.bf16.mxu0 0
    %922 = vmatmul.mubr.bf16.gmra.mrb[0].mxu0 %v884
    %v923 = vpop.f32.mrb[0].mxu0
    %v924 = vadd.f32 0.0, %v923
    %v925 = vpop.f32.mrb[0].mxu0
    %v926 = vpop.f32.mrb[0].mxu0
    %v927 = vpop.f32.mrb[0].mxu0
    %928 = vdwg.mxu0
    %929 = vrot.lane.b32.xlu0 %v206, 104
    %v930 = vpop.permute.xlu0 %929
    %931 = vrot.lane.b32.xlu0 %v206, 72
    %v932 = vpop.permute.xlu0 %931
    %v934 = vsel %vm210, %v930, 0
    %v937 = vsel %vm210, %v932, 0
    %939 = vmatprep.subr.bf16.mxu0 0
    %940 = vmatpush1.bf16.xpose.msra.mxu0 %v937
    %941 = vmatprep.subr.bf16.mxu0 0
    %942 = vmatpush1.bf16.xpose.msra.mxu0 0
    %943 = vmatprep.subr.bf16.mxu0 0
    %944 = vmatpush1.bf16.xpose.msra.mxu0 0
    %945 = vmatprep.subr.bf16.mxu0 0
    %946 = vmatpush1.bf16.xpose.msra.mxu0 0
    %947 = vmatprep.subr.bf16.mxu0 0
    %948 = vmatpush1.bf16.xpose.msra.mxu0 0
    %949 = vmatprep.subr.bf16.mxu0 0
    %950 = vmatpush1.bf16.xpose.msra.mxu0 0
    %951 = vmatprep.subr.bf16.mxu0 0
    %952 = vmatpush1.bf16.xpose.msra.mxu0 0
    %953 = vmatprep.subr.bf16.mxu0 0
    %954 = vmatpush1.bf16.xpose.msra.mxu0 0
    %955 = vmatprep.subr.bf16.mxu0 0
    %956 = vmatpush1.bf16.xpose.msra.mxu0 0
    %957 = vmatprep.subr.bf16.mxu0 0
    %958 = vmatpush1.bf16.xpose.msra.mxu0 0
    %959 = vmatprep.subr.bf16.mxu0 0
    %960 = vmatpush1.bf16.xpose.msra.mxu0 0
    %961 = vmatprep.subr.bf16.mxu0 0
    %962 = vmatpush1.bf16.xpose.msra.mxu0 0
    %963 = vmatprep.subr.bf16.mxu0 0
    %964 = vmatpush1.bf16.xpose.msra.mxu0 0
    %965 = vmatprep.subr.bf16.mxu0 0
    %966 = vmatpush1.bf16.xpose.msra.mxu0 0
    %967 = vmatprep.subr.bf16.mxu0 0
    %968 = vmatpush1.bf16.xpose.msra.mxu0 0
    %969 = vmatprep.subr.bf16.mxu0 0
    %970 = vmatpush1.bf16.xpose.msra.mxu0 0
    %971 = vmatprep.mubr.bf16.mxu0 0
    %972 = vmatmul.mubr.bf16.gmra.mrb[0].mxu0 %v934
    %v973 = vpop.f32.mrb[0].mxu0
    %v974 = vadd.f32 0.0, %v973
    %v975 = vpop.f32.mrb[0].mxu0
    %v976 = vpop.f32.mrb[0].mxu0
    %v977 = vpop.f32.mrb[0].mxu0
    %978 = vdwg.mxu0
    %v979 = vmul.f32 %v924, 0.35355338
    %v980 = vmul.f32 %v974, 0.35355338
    %v981 = vadd.f32 %v979, %v89
    %v982 = vadd.f32 %v980, %v90
    %v983 = vsel %vm210, %v981, -inf
    %984 = vmax.xlane.f32.xlu0 %v983
    %v985 = vpop.xlane.xlu0 %984
    %v986 = vsel %vm210, %v982, -inf
    %987 = vmax.xlane.f32.xlu0 %v986
    %v988 = vpop.xlane.xlu0 %987
    %v989 = vsub.f32 %v981, %v985
    %v990 = vsub.f32 %v982, %v988
    %v991 = vmul.f32 %v989, 1.442695
    %v992 = vpow.pop %v991
    %v993 = vmul.f32 %v990, 1.442695
    %v994 = vpow.pop %v993
    %v995 = vsel %vm210, %v992, 0.0
    %996 = vadd.xlane.f32.xlu0 %v995
    %v997 = vpop.xlane.xlu0 %996
    %v998 = vsel %vm210, %v994, 0.0
    %999 = vadd.xlane.f32.xlu0 %v998
    %v1000 = vpop.xlane.xlu0 %999
    %v1001 = vrcp.pop %v997
    %v1002 = vrcp.pop %v1000
    %v1003 = vmul.f32 %v992, %v1001
    %v1004 = vmul.f32 %v994, %v1002
    %v1005 = vpack.c.bf16 %v1003, %v1003
    %v1006 = vpack.c.bf16 %v1004, %v1004
    %1007 = vrot.lane.b32.xlu0 %v205, 40
    %v1008 = vpop.permute.xlu0 %1007
    %v1010 = vsel %vm210, %v1005, 0
    %v1013 = vsel %vm339, %v1008, 0
    %1015 = vmatprep.subr.bf16.mxu0 0
    %1016 = vmatpush1.bf16.msra.mxu0 %v1013
    %1017 = vmatprep.subr.bf16.mxu0 0
    %1018 = vmatpush1.bf16.msra.mxu0 0
    %1019 = vmatprep.subr.bf16.mxu0 0
    %1020 = vmatpush1.bf16.msra.mxu0 0
    %1021 = vmatprep.subr.bf16.mxu0 0
    %1022 = vmatpush1.bf16.msra.mxu0 0
    %1023 = vmatprep.subr.bf16.mxu0 0
    %1024 = vmatpush1.bf16.msra.mxu0 0
    %1025 = vmatprep.subr.bf16.mxu0 0
    %1026 = vmatpush1.bf16.msra.mxu0 0
    %1027 = vmatprep.subr.bf16.mxu0 0
    %1028 = vmatpush1.bf16.msra.mxu0 0
    %1029 = vmatprep.subr.bf16.mxu0 0
    %1030 = vmatpush1.bf16.msra.mxu0 0
    %1031 = vmatprep.subr.bf16.mxu0 0
    %1032 = vmatpush1.bf16.msra.mxu0 0
    %1033 = vmatprep.subr.bf16.mxu0 0
    %1034 = vmatpush1.bf16.msra.mxu0 0
    %1035 = vmatprep.subr.bf16.mxu0 0
    %1036 = vmatpush1.bf16.msra.mxu0 0
    %1037 = vmatprep.subr.bf16.mxu0 0
    %1038 = vmatpush1.bf16.msra.mxu0 0
    %1039 = vmatprep.subr.bf16.mxu0 0
    %1040 = vmatpush1.bf16.msra.mxu0 0
    %1041 = vmatprep.subr.bf16.mxu0 0
    %1042 = vmatpush1.bf16.msra.mxu0 0
    %1043 = vmatprep.subr.bf16.mxu0 0
    %1044 = vmatpush1.bf16.msra.mxu0 0
    %1045 = vmatprep.subr.bf16.mxu0 0
    %1046 = vmatpush1.bf16.msra.mxu0 0
    %1047 = vmatprep.mubr.bf16.mxu0 0
    %1048 = vmatmul.mubr.bf16.gmra.mrb[0].mxu0 %v1010
    %v1049 = vpop.f32.mrb[0].mxu0
    %v1050 = vadd.f32 0.0, %v1049
    %v1051 = vpop.f32.mrb[0].mxu0
    %v1052 = vpop.f32.mrb[0].mxu0
    %v1053 = vpop.f32.mrb[0].mxu0
    %1054 = vdwg.mxu0
    %1055 = vrot.lane.b32.xlu0 %v206, 40
    %v1056 = vpop.permute.xlu0 %1055
    %v1058 = vsel %vm210, %v1006, 0
    %v1061 = vsel %vm339, %v1056, 0
    %1063 = vmatprep.subr.bf16.mxu0 0
    %1064 = vmatpush1.bf16.msra.mxu0 %v1061
    %1065 = vmatprep.subr.bf16.mxu0 0
    %1066 = vmatpush1.bf16.msra.mxu0 0
    %1067 = vmatprep.subr.bf16.mxu0 0
    %1068 = vmatpush1.bf16.msra.mxu0 0
    %1069 = vmatprep.subr.bf16.mxu0 0
    %1070 = vmatpush1.bf16.msra.mxu0 0
    %1071 = vmatprep.subr.bf16.mxu0 0
    %1072 = vmatpush1.bf16.msra.mxu0 0
    %1073 = vmatprep.subr.bf16.mxu0 0
    %1074 = vmatpush1.bf16.msra.mxu0 0
    %1075 = vmatprep.subr.bf16.mxu0 0
    %1076 = vmatpush1.bf16.msra.mxu0 0
    %1077 = vmatprep.subr.bf16.mxu0 0
    %1078 = vmatpush1.bf16.msra.mxu0 0
    %1079 = vmatprep.subr.bf16.mxu0 0
    %1080 = vmatpush1.bf16.msra.mxu0 0
    %1081 = vmatprep.subr.bf16.mxu0 0
    %1082 = vmatpush1.bf16.msra.mxu0 0
    %1083 = vmatprep.subr.bf16.mxu0 0
    %1084 = vmatpush1.bf16.msra.mxu0 0
    %1085 = vmatprep.subr.bf16.mxu0 0
    %1086 = vmatpush1.bf16.msra.mxu0 0
    %1087 = vmatprep.subr.bf16.mxu0 0
    %1088 = vmatpush1.bf16.msra.mxu0 0
    %1089 = vmatprep.subr.bf16.mxu0 0
    %1090 = vmatpush1.bf16.msra.mxu0 0
    %1091 = vmatprep.subr.bf16.mxu0 0
    %1092 = vmatpush1.bf16.msra.mxu0 0
    %1093 = vmatprep.subr.bf16.mxu0 0
    %1094 = vmatpush1.bf16.msra.mxu0 0
    %1095 = vmatprep.mubr.bf16.mxu0 0
    %1096 = vmatmul.mubr.bf16.gmra.mrb[0].mxu0 %v1058
    %v1097 = vpop.f32.mrb[0].mxu0
    %v1098 = vadd.f32 0.0, %v1097
    %v1099 = vpop.f32.mrb[0].mxu0
    %v1100 = vpop.f32.mrb[0].mxu0
    %v1101 = vpop.f32.mrb[0].mxu0
    %1102 = vdwg.mxu0
    %1105 = vrot.lane.b32.xlu0 %v602, 8
    %v1106 = vpop.permute.xlu0 %1105
    %1107 = vrot.lane.b32.xlu0 %v650, 8
    %v1108 = vpop.permute.xlu0 %1107
    %1113 = vrot.lane.b32.xlu0 %v826, 16
    %v1114 = vpop.permute.xlu0 %1113
    %1115 = vrot.lane.b32.xlu0 %v874, 16
    %v1116 = vpop.permute.xlu0 %1115
    %1121 = vrot.lane.b32.xlu0 %v1050, 24
    %v1122 = vpop.permute.xlu0 %1121
    %1123 = vrot.lane.b32.xlu0 %v1098, 24
    %v1124 = vpop.permute.xlu0 %1123
    %v1127 = vsel %vm210, %v378, %v1106
    %v1128 = vsel %vm210, %v426, %v1108
    %vm1129 = vcmask 130048
    %v1130 = vsel %vm1129, %v1127, %v1114
    %v1131 = vsel %vm1129, %v1128, %v1116
    %vm1132 = vcmask 195584
    %v1133 = vsel %vm1132, %v1130, %v1122
    %v1134 = vsel %vm1132, %v1131, %v1124
    %v1135 = vpack.c.bf16 %v1134, %v1133
    %v1136 = vld [vmem:[%s6] sm:$0xf]
    %v1137 = vld [vmem:[%s6 + $0x4] sm:$0xf]
    %v1138 = vld [vmem:[%s6 + $0x8] sm:$0xf]
    %v1139 = vld [vmem:[%s6 + $0xc] sm:$0xf]
    %v1140 = vld [vmem:[%s7] sm:$0x1]
    %v1142 = vlaneseq
    %v1143 = vshrl.u32 %v1142, 7
    %v1144 = vsub.s32 0, %v1143
    %v1145 = vrot.slane %v1140, %v1144
    %v1151 = vunpack.c.l.b16 %v1136
    %v1152 = vunpack.c.l.b16 %v1137
    %v1153 = vunpack.c.l.b16 %v1138
    %v1154 = vunpack.c.l.b16 %v1139
    %v1155 = vpack.c.b16 %v1152, %v1151
    %v1156 = vpack.c.b16 %v1154, %v1153
    %v1160 = vsel %vm93, %v1135, 0
    %1162 = vmatprep.subr.bf16.mxu0 0
    %1163 = vmatpush1.bf16.msra.mxu0 %v1155
    %1164 = vmatprep.subr.bf16.mxu0 0
    %1165 = vmatpush1.bf16.msra.mxu0 %v1156
    %1166 = vmatprep.subr.bf16.mxu0 0
    %1167 = vmatpush1.bf16.msra.mxu0 0
    %1168 = vmatprep.subr.bf16.mxu0 0
    %1169 = vmatpush1.bf16.msra.mxu0 0
    %1170 = vmatprep.subr.bf16.mxu0 0
    %1171 = vmatpush1.bf16.msra.mxu0 0
    %1172 = vmatprep.subr.bf16.mxu0 0
    %1173 = vmatpush1.bf16.msra.mxu0 0
    %1174 = vmatprep.subr.bf16.mxu0 0
    %1175 = vmatpush1.bf16.msra.mxu0 0
    %1176 = vmatprep.subr.bf16.mxu0 0
    %1177 = vmatpush1.bf16.msra.mxu0 0
    %1178 = vmatprep.subr.bf16.mxu0 0
    %1179 = vmatpush1.bf16.msra.mxu0 0
    %1180 = vmatprep.subr.bf16.mxu0 0
    %1181 = vmatpush1.bf16.msra.mxu0 0
    %1182 = vmatprep.subr.bf16.mxu0 0
    %1183 = vmatpush1.bf16.msra.mxu0 0
    %1184 = vmatprep.subr.bf16.mxu0 0
    %1185 = vmatpush1.bf16.msra.mxu0 0
    %1186 = vmatprep.subr.bf16.mxu0 0
    %1187 = vmatpush1.bf16.msra.mxu0 0
    %1188 = vmatprep.subr.bf16.mxu0 0
    %1189 = vmatpush1.bf16.msra.mxu0 0
    %1190 = vmatprep.subr.bf16.mxu0 0
    %1191 = vmatpush1.bf16.msra.mxu0 0
    %1192 = vmatprep.subr.bf16.mxu0 0
    %1193 = vmatpush1.bf16.msra.mxu0 0
    %1194 = vmatprep.mubr.bf16.mxu0 0
    %1195 = vmatmul.mubr.bf16.gmra.mrb[0].mxu0 %v1160
    %v1196 = vpop.f32.mrb[0].mxu0
    %v1197 = vadd.f32 %v1145, %v1196
    %v1198 = vpop.f32.mrb[0].mxu0
    %v1199 = vpop.f32.mrb[0].mxu0
    %v1200 = vadd.f32 %v1145, %v1199
    %v1201 = vpop.f32.mrb[0].mxu0
    %1202 = vdwg.mxu0
    %v1203 = vadd.f32 %v63, %v1197
    %v1204 = vadd.f32 %v64, %v1200
    %v1205 = vld [vmem:[%s8] sm:$0x1]
    %v1206 = vld [vmem:[%s9] sm:$0x1]
    %v1207 = vsel %vm93, %v1203, 0.0
    %1208 = vadd.xlane.f32.xlu0 %v1207
    %v1209 = vpop.xlane.xlu0 %1208
    %v1210 = vsel %vm93, %v1204, 0.0
    %1211 = vadd.xlane.f32.xlu0 %v1210
    %v1212 = vpop.xlane.xlu0 %1211
    %v1213 = vmul.f32 %v1209, %v100
    %v1214 = vmul.f32 %v1212, %v100
    %v1215 = vsub.f32 %v1203, %v1213
    %v1216 = vsub.f32 %v1204, %v1214
    %v1217 = vmul.f32 %v1215, %v1215
    %v1218 = vmul.f32 %v1216, %v1216
    %v1219 = vsel %vm93, %v1217, 0.0
    %1220 = vadd.xlane.f32.xlu0 %v1219
    %v1221 = vpop.xlane.xlu0 %1220
    %v1222 = vsel %vm93, %v1218, 0.0
    %1223 = vadd.xlane.f32.xlu0 %v1222
    %v1224 = vpop.xlane.xlu0 %1223
    %v1225 = vmul.f32 %v1221, %v100
    %v1226 = vmul.f32 %v1224, %v100
    %v1227 = vadd.f32 %v1225, 1e-05
    %v1228 = vadd.f32 %v1226, 1e-05
    %v1229 = vrsqrt.pop %v1227
    %v1230 = vrsqrt.pop %v1228
    %v1231 = vmul.f32 %v1215, %v1229
    %v1232 = vmul.f32 %v1216, %v1230
    %v1234 = vlaneseq
    %v1235 = vshrl.u32 %v1234, 7
    %v1236 = vsub.s32 0, %v1235
    %v1237 = vrot.slane %v1205, %v1236
    %v1239 = vmul.f32 %v1231, %v1237
    %v1240 = vmul.f32 %v1232, %v1237
    %v1242 = vlaneseq
    %v1243 = vshrl.u32 %v1242, 7
    %v1244 = vsub.s32 0, %v1243
    %v1245 = vrot.slane %v1206, %v1244
    %v1247 = vadd.f32 %v1239, %v1245
    %v1248 = vadd.f32 %v1240, %v1245
    %v1249 = vpack.c.bf16 %v1248, %v1247
    %v1250 = vld [vmem:[%s10] sm:$0xf]
    %v1251 = vld [vmem:[%s10 + $0x4] sm:$0xf]
    %v1252 = vld [vmem:[%s10 + $0x8] sm:$0xf]
    %v1253 = vld [vmem:[%s10 + $0xc] sm:$0xf]
    %v1254 = vld [vmem:[%s11] sm:$0x1]
    %v1256 = vlaneseq
    %v1257 = vshrl.u32 %v1256, 7
    %v1258 = vsub.s32 0, %v1257
    %v1259 = vrot.slane %v1254, %v1258
    %v1265 = vunpack.c.l.b16 %v1250
    %v1266 = vunpack.c.l.b16 %v1251
    %v1267 = vunpack.c.l.b16 %v1252
    %v1268 = vunpack.c.l.b16 %v1253
    %v1269 = vpack.c.b16 %v1266, %v1265
    %v1270 = vpack.c.b16 %v1268, %v1267
    %v1274 = vsel %vm93, %v1249, 0
    %1276 = vmatprep.subr.bf16.mxu0 0
    %1277 = vmatpush1.bf16.msra.mxu0 %v1269
    %1278 = vmatprep.subr.bf16.mxu0 0
    %1279 = vmatpush1.bf16.msra.mxu0 %v1270
    %1280 = vmatprep.subr.bf16.mxu0 0
    %1281 = vmatpush1.bf16.msra.mxu0 0
    %1282 = vmatprep.subr.bf16.mxu0 0
    %1283 = vmatpush1.bf16.msra.mxu0 0
    %1284 = vmatprep.subr.bf16.mxu0 0
    %1285 = vmatpush1.bf16.msra.mxu0 0
    %1286 = vmatprep.subr.bf16.mxu0 0
    %1287 = vmatpush1.bf16.msra.mxu0 0
    %1288 = vmatprep.subr.bf16.mxu0 0
    %1289 = vmatpush1.bf16.msra.mxu0 0
    %1290 = vmatprep.subr.bf16.mxu0 0
    %1291 = vmatpush1.bf16.msra.mxu0 0
    %1292 = vmatprep.subr.bf16.mxu0 0
    %1293 = vmatpush1.bf16.msra.mxu0 0
    %1294 = vmatprep.subr.bf16.mxu0 0
    %1295 = vmatpush1.bf16.msra.mxu0 0
    %1296 = vmatprep.subr.bf16.mxu0 0
    %1297 = vmatpush1.bf16.msra.mxu0 0
    %1298 = vmatprep.subr.bf16.mxu0 0
    %1299 = vmatpush1.bf16.msra.mxu0 0
    %1300 = vmatprep.subr.bf16.mxu0 0
    %1301 = vmatpush1.bf16.msra.mxu0 0
    %1302 = vmatprep.subr.bf16.mxu0 0
    %1303 = vmatpush1.bf16.msra.mxu0 0
    %1304 = vmatprep.subr.bf16.mxu0 0
    %1305 = vmatpush1.bf16.msra.mxu0 0
    %1306 = vmatprep.subr.bf16.mxu0 0
    %1307 = vmatpush1.bf16.msra.mxu0 0
    %1308 = vmatprep.mubr.bf16.mxu0 0
    %1309 = vmatmul.mubr.bf16.gmra.mrb[0].mxu0 %v1274
    %v1310 = vpop.f32.mrb[0].mxu0
    %v1311 = vadd.f32 %v1259, %v1310
    %v1312 = vpop.f32.mrb[0].mxu0
    %v1313 = vpop.f32.mrb[0].mxu0
    %v1314 = vadd.f32 %v1259, %v1313
    %v1315 = vpop.f32.mrb[0].mxu0
    %1316 = vdwg.mxu0
    %v1317 = vmul.f32 %v1311, 0.5
    %v1318 = vmul.f32 %v1314, 0.5
    %v1319 = vmul.f32 %v1311, 0.044715
    %v1320 = vmul.f32 %v1314, 0.044715
    %v1321 = vmul.f32 %v1319, %v1311
    %v1322 = vmul.f32 %v1320, %v1314
    %v1323 = vmul.f32 %v1321, %v1311
    %v1324 = vmul.f32 %v1322, %v1314
    %v1325 = vadd.f32 %v1311, %v1323
    %v1326 = vadd.f32 %v1314, %v1324
    %v1327 = vmul.f32 %v1325, 0.7978846
    %v1328 = vmul.f32 %v1326, 0.7978846
    %v1329 = vtanh.pop %v1327
    %v1330 = vtanh.pop %v1328
    %v1331 = vadd.f32 %v1329, 1.0
    %v1332 = vadd.f32 %v1330, 1.0
    %v1333 = vmul.f32 %v1317, %v1331
    %v1334 = vmul.f32 %v1318, %v1332
    %v1335 = vpack.c.bf16 %v1334, %v1333
    %v1336 = vld [vmem:[%s12] sm:$0xf]
    %v1337 = vld [vmem:[%s12 + $0x4] sm:$0xf]
    %v1338 = vld [vmem:[%s12 + $0x8] sm:$0xf]
    %v1339 = vld [vmem:[%s12 + $0xc] sm:$0xf]
    %v1340 = vld [vmem:[%s12 + $0x10] sm:$0xf]
    %v1341 = vld [vmem:[%s12 + $0x14] sm:$0xf]
    %v1342 = vld [vmem:[%s12 + $0x18] sm:$0xf]
    %v1343 = vld [vmem:[%s12 + $0x1c] sm:$0xf]
    %v1344 = vld [vmem:[%s12 + $0x20] sm:$0xf]
    %v1345 = vld [vmem:[%s12 + $0x24] sm:$0xf]
    %v1346 = vld [vmem:[%s12 + $0x28] sm:$0xf]
    %v1347 = vld [vmem:[%s12 + $0x2c] sm:$0xf]
    %v1348 = vld [vmem:[%s12 + $0x30] sm:$0xf]
    %v1349 = vld [vmem:[%s12 + $0x34] sm:$0xf]
    %v1350 = vld [vmem:[%s12 + $0x38] sm:$0xf]
    %v1351 = vld [vmem:[%s12 + $0x3c] sm:$0xf]
    %v1352 = vld [vmem:[%s13] sm:$0x1]
    %v1354 = vlaneseq
    %v1355 = vshrl.u32 %v1354, 7
    %v1356 = vsub.s32 0, %v1355
    %v1357 = vrot.slane %v1352, %v1356
    %v1375 = vunpack.c.l.b16 %v1336
    %v1376 = vunpack.c.l.b16 %v1337
    %v1377 = vunpack.c.l.b16 %v1338
    %v1378 = vunpack.c.l.b16 %v1339
    %v1379 = vunpack.c.l.b16 %v1340
    %v1380 = vunpack.c.l.b16 %v1341
    %v1381 = vunpack.c.l.b16 %v1342
    %v1382 = vunpack.c.l.b16 %v1343
    %v1383 = vunpack.c.l.b16 %v1344
    %v1384 = vunpack.c.l.b16 %v1345
    %v1385 = vunpack.c.l.b16 %v1346
    %v1386 = vunpack.c.l.b16 %v1347
    %v1387 = vunpack.c.l.b16 %v1348
    %v1388 = vunpack.c.l.b16 %v1349
    %v1389 = vunpack.c.l.b16 %v1350
    %v1390 = vunpack.c.l.b16 %v1351
    %v1391 = vpack.c.b16 %v1376, %v1375
    %v1392 = vpack.c.b16 %v1378, %v1377
    %v1393 = vpack.c.b16 %v1380, %v1379
    %v1394 = vpack.c.b16 %v1382, %v1381
    %v1395 = vpack.c.b16 %v1384, %v1383
    %v1396 = vpack.c.b16 %v1386, %v1385
    %v1397 = vpack.c.b16 %v1388, %v1387
    %v1398 = vpack.c.b16 %v1390, %v1389
    %1407 = vmatprep.subr.bf16.mxu0 0
    %1408 = vmatpush1.bf16.msra.mxu0 %v1391
    %1409 = vmatprep.subr.bf16.mxu0 0
    %1410 = vmatpush1.bf16.msra.mxu0 %v1392
    %1411 = vmatprep.subr.bf16.mxu0 0
    %1412 = vmatpush1.bf16.msra.mxu0 %v1393
    %1413 = vmatprep.subr.bf16.mxu0 0
    %1414 = vmatpush1.bf16.msra.mxu0 %v1394
    %1415 = vmatprep.subr.bf16.mxu0 0
    %1416 = vmatpush1.bf16.msra.mxu0 %v1395
    %1417 = vmatprep.subr.bf16.mxu0 0
    %1418 = vmatpush1.bf16.msra.mxu0 %v1396
    %1419 = vmatprep.subr.bf16.mxu0 0
    %1420 = vmatpush1.bf16.msra.mxu0 %v1397
    %1421 = vmatprep.subr.bf16.mxu0 0
    %1422 = vmatpush1.bf16.msra.mxu0 %v1398
    %1423 = vmatprep.subr.bf16.mxu0 0
    %1424 = vmatpush1.bf16.msra.mxu0 0
    %1425 = vmatprep.subr.bf16.mxu0 0
    %1426 = vmatpush1.bf16.msra.mxu0 0
    %1427 = vmatprep.subr.bf16.mxu0 0
    %1428 = vmatpush1.bf16.msra.mxu0 0
    %1429 = vmatprep.subr.bf16.mxu0 0
    %1430 = vmatpush1.bf16.msra.mxu0 0
    %1431 = vmatprep.subr.bf16.mxu0 0
    %1432 = vmatpush1.bf16.msra.mxu0 0
    %1433 = vmatprep.subr.bf16.mxu0 0
    %1434 = vmatpush1.bf16.msra.mxu0 0
    %1435 = vmatprep.subr.bf16.mxu0 0
    %1436 = vmatpush1.bf16.msra.mxu0 0
    %1437 = vmatprep.subr.bf16.mxu0 0
    %1438 = vmatpush1.bf16.msra.mxu0 0
    %1439 = vmatprep.mubr.bf16.mxu0 0
    %1440 = vmatmul.mubr.bf16.gmra.mrb[0].mxu0 %v1335
    %v1441 = vpop.f32.mrb[0].mxu0
    %v1442 = vadd.f32 %v1357, %v1441
    %v1443 = vpop.f32.mrb[0].mxu0
    %v1444 = vpop.f32.mrb[0].mxu0
    %v1445 = vadd.f32 %v1357, %v1444
    %v1446 = vpop.f32.mrb[0].mxu0
    %1447 = vdwg.mxu0
    %v1448 = vadd.f32 %v1203, %v1442
    %v1449 = vadd.f32 %v1204, %v1445
    %s1450 = scalar_lea.vmem %s2, 1
    %v1451 = vld [vmem:[%s1450] sm:$0x1]
    %s1452 = scalar_lea.vmem %s3, 1
    %v1453 = vld [vmem:[%s1452] sm:$0x1]
    %v1454 = vsel %vm93, %v1448, 0.0
    %1455 = vadd.xlane.f32.xlu0 %v1454
    %v1456 = vpop.xlane.xlu0 %1455
    %v1457 = vsel %vm93, %v1449, 0.0
    %1458 = vadd.xlane.f32.xlu0 %v1457
    %v1459 = vpop.xlane.xlu0 %1458
    %v1460 = vmul.f32 %v1456, %v100
    %v1461 = vmul.f32 %v1459, %v100
    %v1462 = vsub.f32 %v1448, %v1460
    %v1463 = vsub.f32 %v1449, %v1461
    %v1464 = vmul.f32 %v1462, %v1462
    %v1465 = vmul.f32 %v1463, %v1463
    %v1466 = vsel %vm93, %v1464, 0.0
    %1467 = vadd.xlane.f32.xlu0 %v1466
    %v1468 = vpop.xlane.xlu0 %1467
    %v1469 = vsel %vm93, %v1465, 0.0
    %1470 = vadd.xlane.f32.xlu0 %v1469
    %v1471 = vpop.xlane.xlu0 %1470
    %v1472 = vmul.f32 %v1468, %v100
    %v1473 = vmul.f32 %v1471, %v100
    %v1474 = vadd.f32 %v1472, 1e-05
    %v1475 = vadd.f32 %v1473, 1e-05
    %v1476 = vrsqrt.pop %v1474
    %v1477 = vrsqrt.pop %v1475
    %v1478 = vmul.f32 %v1462, %v1476
    %v1479 = vmul.f32 %v1463, %v1477
    %v1481 = vlaneseq
    %v1482 = vshrl.u32 %v1481, 7
    %v1483 = vsub.s32 0, %v1482
    %v1484 = vrot.slane %v1451, %v1483
    %v1486 = vmul.f32 %v1478, %v1484
    %v1487 = vmul.f32 %v1479, %v1484
    %v1489 = vlaneseq
    %v1490 = vshrl.u32 %v1489, 7
    %v1491 = vsub.s32 0, %v1490
    %v1492 = vrot.slane %v1453, %v1491
    %v1494 = vadd.f32 %v1486, %v1492
    %v1495 = vadd.f32 %v1487, %v1492
    %v1496 = vpack.c.bf16 %v1495, %v1494
    %s1497 = scalar_lea.vmem %s4, 16
    %v1498 = vld [vmem:[%s1497] sm:$0xf]
    %v1499 = vld [vmem:[%s1497 + $0x4] sm:$0xf]
    %v1500 = vld [vmem:[%s1497 + $0x8] sm:$0xf]
    %v1501 = vld [vmem:[%s1497 + $0xc] sm:$0xf]
    %s1502 = scalar_lea.vmem %s5, 1
    %v1503 = vld [vmem:[%s1502] sm:$0x1]
    %v1505 = vlaneseq
    %v1506 = vshrl.u32 %v1505, 7
    %v1507 = vsub.s32 0, %v1506
    %v1508 = vrot.slane %v1503, %v1507
    %v1514 = vunpack.c.l.b16 %v1498
    %v1515 = vunpack.c.l.b16 %v1499
    %v1516 = vunpack.c.l.b16 %v1500
    %v1517 = vunpack.c.l.b16 %v1501
    %v1518 = vpack.c.b16 %v1515, %v1514
    %v1519 = vpack.c.b16 %v1517, %v1516
    %v1523 = vsel %vm93, %v1496, 0
    %1525 = vmatprep.subr.bf16.mxu0 0
    %1526 = vmatpush1.bf16.msra.mxu0 %v1518
    %1527 = vmatprep.subr.bf16.mxu0 0
    %1528 = vmatpush1.bf16.msra.mxu0 %v1519
    %1529 = vmatprep.subr.bf16.mxu0 0
    %1530 = vmatpush1.bf16.msra.mxu0 0
    %1531 = vmatprep.subr.bf16.mxu0 0
    %1532 = vmatpush1.bf16.msra.mxu0 0
    %1533 = vmatprep.subr.bf16.mxu0 0
    %1534 = vmatpush1.bf16.msra.mxu0 0
    %1535 = vmatprep.subr.bf16.mxu0 0
    %1536 = vmatpush1.bf16.msra.mxu0 0
    %1537 = vmatprep.subr.bf16.mxu0 0
    %1538 = vmatpush1.bf16.msra.mxu0 0
    %1539 = vmatprep.subr.bf16.mxu0 0
    %1540 = vmatpush1.bf16.msra.mxu0 0
    %1541 = vmatprep.subr.bf16.mxu0 0
    %1542 = vmatpush1.bf16.msra.mxu0 0
    %1543 = vmatprep.subr.bf16.mxu0 0
    %1544 = vmatpush1.bf16.msra.mxu0 0
    %1545 = vmatprep.subr.bf16.mxu0 0
    %1546 = vmatpush1.bf16.msra.mxu0 0
    %1547 = vmatprep.subr.bf16.mxu0 0
    %1548 = vmatpush1.bf16.msra.mxu0 0
    %1549 = vmatprep.subr.bf16.mxu0 0
    %1550 = vmatpush1.bf16.msra.mxu0 0
    %1551 = vmatprep.subr.bf16.mxu0 0
    %1552 = vmatpush1.bf16.msra.mxu0 0
    %1553 = vmatprep.subr.bf16.mxu0 0
    %1554 = vmatpush1.bf16.msra.mxu0 0
    %1555 = vmatprep.subr.bf16.mxu0 0
    %1556 = vmatpush1.bf16.msra.mxu0 0
    %1557 = vmatprep.mubr.bf16.mxu0 0
    %1558 = vmatmul.mubr.bf16.gmra.mrb[0].mxu0 %v1523
    %v1559 = vpop.f32.mrb[0].mxu0
    %v1560 = vadd.f32 %v1508, %v1559
    %v1561 = vpop.f32.mrb[0].mxu0
    %v1562 = vpop.f32.mrb[0].mxu0
    %v1563 = vadd.f32 %v1508, %v1562
    %v1564 = vpop.f32.mrb[0].mxu0
    %1565 = vdwg.mxu0
    %v1566 = vpack.c.bf16 %v1560, %v1560
    %v1567 = vpack.c.bf16 %v1563, %v1563
    %1569 = vrot.lane.b32.xlu0 %v1566, 96
    %v1570 = vpop.permute.xlu0 %1569
    %v1572 = vsel %vm210, %v1566, 0
    %v1575 = vsel %vm210, %v1570, 0
    %1577 = vmatprep.subr.bf16.mxu0 0
    %1578 = vmatpush1.bf16.xpose.msra.mxu0 %v1575
    %1579 = vmatprep.subr.bf16.mxu0 0
    %1580 = vmatpush1.bf16.xpose.msra.mxu0 0
    %1581 = vmatprep.subr.bf16.mxu0 0
    %1582 = vmatpush1.bf16.xpose.msra.mxu0 0
    %1583 = vmatprep.subr.bf16.mxu0 0
    %1584 = vmatpush1.bf16.xpose.msra.mxu0 0
    %1585 = vmatprep.subr.bf16.mxu0 0
    %1586 = vmatpush1.bf16.xpose.msra.mxu0 0
    %1587 = vmatprep.subr.bf16.mxu0 0
    %1588 = vmatpush1.bf16.xpose.msra.mxu0 0
    %1589 = vmatprep.subr.bf16.mxu0 0
    %1590 = vmatpush1.bf16.xpose.msra.mxu0 0
    %1591 = vmatprep.subr.bf16.mxu0 0
    %1592 = vmatpush1.bf16.xpose.msra.mxu0 0
    %1593 = vmatprep.subr.bf16.mxu0 0
    %1594 = vmatpush1.bf16.xpose.msra.mxu0 0
    %1595 = vmatprep.subr.bf16.mxu0 0
    %1596 = vmatpush1.bf16.xpose.msra.mxu0 0
    %1597 = vmatprep.subr.bf16.mxu0 0
    %1598 = vmatpush1.bf16.xpose.msra.mxu0 0
    %1599 = vmatprep.subr.bf16.mxu0 0
    %1600 = vmatpush1.bf16.xpose.msra.mxu0 0
    %1601 = vmatprep.subr.bf16.mxu0 0
    %1602 = vmatpush1.bf16.xpose.msra.mxu0 0
    %1603 = vmatprep.subr.bf16.mxu0 0
    %1604 = vmatpush1.bf16.xpose.msra.mxu0 0
    %1605 = vmatprep.subr.bf16.mxu0 0
    %1606 = vmatpush1.bf16.xpose.msra.mxu0 0
    %1607 = vmatprep.subr.bf16.mxu0 0
    %1608 = vmatpush1.bf16.xpose.msra.mxu0 0
    %1609 = vmatprep.mubr.bf16.mxu0 0
    %1610 = vmatmul.mubr.bf16.gmra.mrb[0].mxu0 %v1572
    %v1611 = vpop.f32.mrb[0].mxu0
    %v1612 = vadd.f32 0.0, %v1611
    %v1613 = vpop.f32.mrb[0].mxu0
    %v1614 = vpop.f32.mrb[0].mxu0
    %v1615 = vpop.f32.mrb[0].mxu0
    %1616 = vdwg.mxu0
    %1618 = vrot.lane.b32.xlu0 %v1567, 96
    %v1619 = vpop.permute.xlu0 %1618
    %v1621 = vsel %vm210, %v1567, 0
    %v1624 = vsel %vm210, %v1619, 0
    %1626 = vmatprep.subr.bf16.mxu0 0
    %1627 = vmatpush1.bf16.xpose.msra.mxu0 %v1624
    %1628 = vmatprep.subr.bf16.mxu0 0
    %1629 = vmatpush1.bf16.xpose.msra.mxu0 0
    %1630 = vmatprep.subr.bf16.mxu0 0
    %1631 = vmatpush1.bf16.xpose.msra.mxu0 0
    %1632 = vmatprep.subr.bf16.mxu0 0
    %1633 = vmatpush1.bf16.xpose.msra.mxu0 0
    %1634 = vmatprep.subr.bf16.mxu0 0
    %1635 = vmatpush1.bf16.xpose.msra.mxu0 0
    %1636 = vmatprep.subr.bf16.mxu0 0
    %1637 = vmatpush1.bf16.xpose.msra.mxu0 0
    %1638 = vmatprep.subr.bf16.mxu0 0
    %1639 = vmatpush1.bf16.xpose.msra.mxu0 0
    %1640 = vmatprep.subr.bf16.mxu0 0
    %1641 = vmatpush1.bf16.xpose.msra.mxu0 0
    %1642 = vmatprep.subr.bf16.mxu0 0
    %1643 = vmatpush1.bf16.xpose.msra.mxu0 0
    %1644 = vmatprep.subr.bf16.mxu0 0
    %1645 = vmatpush1.bf16.xpose.msra.mxu0 0
    %1646 = vmatprep.subr.bf16.mxu0 0
    %1647 = vmatpush1.bf16.xpose.msra.mxu0 0
    %1648 = vmatprep.subr.bf16.mxu0 0
    %1649 = vmatpush1.bf16.xpose.msra.mxu0 0
    %1650 = vmatprep.subr.bf16.mxu0 0
    %1651 = vmatpush1.bf16.xpose.msra.mxu0 0
    %1652 = vmatprep.subr.bf16.mxu0 0
    %1653 = vmatpush1.bf16.xpose.msra.mxu0 0
    %1654 = vmatprep.subr.bf16.mxu0 0
    %1655 = vmatpush1.bf16.xpose.msra.mxu0 0
    %1656 = vmatprep.subr.bf16.mxu0 0
    %1657 = vmatpush1.bf16.xpose.msra.mxu0 0
    %1658 = vmatprep.mubr.bf16.mxu0 0
    %1659 = vmatmul.mubr.bf16.gmra.mrb[0].mxu0 %v1621
    %v1660 = vpop.f32.mrb[0].mxu0
    %v1661 = vadd.f32 0.0, %v1660
    %v1662 = vpop.f32.mrb[0].mxu0
    %v1663 = vpop.f32.mrb[0].mxu0
    %v1664 = vpop.f32.mrb[0].mxu0
    %1665 = vdwg.mxu0
    %v1666 = vmul.f32 %v1612, 0.35355338
    %v1667 = vmul.f32 %v1661, 0.35355338
    %v1668 = vadd.f32 %v1666, %v89
    %v1669 = vadd.f32 %v1667, %v90
    %v1670 = vsel %vm210, %v1668, -inf
    %1671 = vmax.xlane.f32.xlu0 %v1670
    %v1672 = vpop.xlane.xlu0 %1671
    %v1673 = vsel %vm210, %v1669, -inf
    %1674 = vmax.xlane.f32.xlu0 %v1673
    %v1675 = vpop.xlane.xlu0 %1674
    %v1676 = vsub.f32 %v1668, %v1672
    %v1677 = vsub.f32 %v1669, %v1675
    %v1678 = vmul.f32 %v1676, 1.442695
    %v1679 = vpow.pop %v1678
    %v1680 = vmul.f32 %v1677, 1.442695
    %v1681 = vpow.pop %v1680
    %v1682 = vsel %vm210, %v1679, 0.0
    %1683 = vadd.xlane.f32.xlu0 %v1682
    %v1684 = vpop.xlane.xlu0 %1683
    %v1685 = vsel %vm210, %v1681, 0.0
    %1686 = vadd.xlane.f32.xlu0 %v1685
    %v1687 = vpop.xlane.xlu0 %1686
    %v1688 = vrcp.pop %v1684
    %v1689 = vrcp.pop %v1687
    %v1690 = vmul.f32 %v1679, %v1688
    %v1691 = vmul.f32 %v1681, %v1689
    %v1692 = vpack.c.bf16 %v1690, %v1690
    %v1693 = vpack.c.bf16 %v1691, %v1691
    %1694 = vrot.lane.b32.xlu0 %v1566, 64
    %v1695 = vpop.permute.xlu0 %1694
    %v1697 = vsel %vm210, %v1692, 0
    %v1700 = vsel %vm339, %v1695, 0
    %1702 = vmatprep.subr.bf16.mxu0 0
    %1703 = vmatpush1.bf16.msra.mxu0 %v1700
    %1704 = vmatprep.subr.bf16.mxu0 0
    %1705 = vmatpush1.bf16.msra.mxu0 0
    %1706 = vmatprep.subr.bf16.mxu0 0
    %1707 = vmatpush1.bf16.msra.mxu0 0
    %1708 = vmatprep.subr.bf16.mxu0 0
    %1709 = vmatpush1.bf16.msra.mxu0 0
    %1710 = vmatprep.subr.bf16.mxu0 0
    %1711 = vmatpush1.bf16.msra.mxu0 0
    %1712 = vmatprep.subr.bf16.mxu0 0
    %1713 = vmatpush1.bf16.msra.mxu0 0
    %1714 = vmatprep.subr.bf16.mxu0 0
    %1715 = vmatpush1.bf16.msra.mxu0 0
    %1716 = vmatprep.subr.bf16.mxu0 0
    %1717 = vmatpush1.bf16.msra.mxu0 0
    %1718 = vmatprep.subr.bf16.mxu0 0
    %1719 = vmatpush1.bf16.msra.mxu0 0
    %1720 = vmatprep.subr.bf16.mxu0 0
    %1721 = vmatpush1.bf16.msra.mxu0 0
    %1722 = vmatprep.subr.bf16.mxu0 0
    %1723 = vmatpush1.bf16.msra.mxu0 0
    %1724 = vmatprep.subr.bf16.mxu0 0
    %1725 = vmatpush1.bf16.msra.mxu0 0
    %1726 = vmatprep.subr.bf16.mxu0 0
    %1727 = vmatpush1.bf16.msra.mxu0 0
    %1728 = vmatprep.subr.bf16.mxu0 0
    %1729 = vmatpush1.bf16.msra.mxu0 0
    %1730 = vmatprep.subr.bf16.mxu0 0
    %1731 = vmatpush1.bf16.msra.mxu0 0
    %1732 = vmatprep.subr.bf16.mxu0 0
    %1733 = vmatpush1.bf16.msra.mxu0 0
    %1734 = vmatprep.mubr.bf16.mxu0 0
    %1735 = vmatmul.mubr.bf16.gmra.mrb[0].mxu0 %v1697
    %v1736 = vpop.f32.mrb[0].mxu0
    %v1737 = vadd.f32 0.0, %v1736
    %v1738 = vpop.f32.mrb[0].mxu0
    %v1739 = vpop.f32.mrb[0].mxu0
    %v1740 = vpop.f32.mrb[0].mxu0
    %1741 = vdwg.mxu0
    %1742 = vrot.lane.b32.xlu0 %v1567, 64
    %v1743 = vpop.permute.xlu0 %1742
    %v1745 = vsel %vm210, %v1693, 0
    %v1748 = vsel %vm339, %v1743, 0
    %1750 = vmatprep.subr.bf16.mxu0 0
    %1751 = vmatpush1.bf16.msra.mxu0 %v1748
    %1752 = vmatprep.subr.bf16.mxu0 0
    %1753 = vmatpush1.bf16.msra.mxu0 0
    %1754 = vmatprep.subr.bf16.mxu0 0
    %1755 = vmatpush1.bf16.msra.mxu0 0
    %1756 = vmatprep.subr.bf16.mxu0 0
    %1757 = vmatpush1.bf16.msra.mxu0 0
    %1758 = vmatprep.subr.bf16.mxu0 0
    %1759 = vmatpush1.bf16.msra.mxu0 0
    %1760 = vmatprep.subr.bf16.mxu0 0
    %1761 = vmatpush1.bf16.msra.mxu0 0
    %1762 = vmatprep.subr.bf16.mxu0 0
    %1763 = vmatpush1.bf16.msra.mxu0 0
    %1764 = vmatprep.subr.bf16.mxu0 0
    %1765 = vmatpush1.bf16.msra.mxu0 0
    %1766 = vmatprep.subr.bf16.mxu0 0
    %1767 = vmatpush1.bf16.msra.mxu0 0
    %1768 = vmatprep.subr.bf16.mxu0 0
    %1769 = vmatpush1.bf16.msra.mxu0 0
    %1770 = vmatprep.subr.bf16.mxu0 0
    %1771 = vmatpush1.bf16.msra.mxu0 0
    %1772 = vmatprep.subr.bf16.mxu0 0
    %1773 = vmatpush1.bf16.msra.mxu0 0
    %1774 = vmatprep.subr.bf16.mxu0 0
    %1775 = vmatpush1.bf16.msra.mxu0 0
    %1776 = vmatprep.subr.bf16.mxu0 0
    %1777 = vmatpush1.bf16.msra.mxu0 0
    %1778 = vmatprep.subr.bf16.mxu0 0
    %1779 = vmatpush1.bf16.msra.mxu0 0
    %1780 = vmatprep.subr.bf16.mxu0 0
    %1781 = vmatpush1.bf16.msra.mxu0 0
    %1782 = vmatprep.mubr.bf16.mxu0 0
    %1783 = vmatmul.mubr.bf16.gmra.mrb[0].mxu0 %v1745
    %v1784 = vpop.f32.mrb[0].mxu0
    %v1785 = vadd.f32 0.0, %v1784
    %v1786 = vpop.f32.mrb[0].mxu0
    %v1787 = vpop.f32.mrb[0].mxu0
    %v1788 = vpop.f32.mrb[0].mxu0
    %1789 = vdwg.mxu0
    %1790 = vrot.lane.b32.xlu0 %v1566, 120
    %v1791 = vpop.permute.xlu0 %1790
    %1792 = vrot.lane.b32.xlu0 %v1566, 88
    %v1793 = vpop.permute.xlu0 %1792
    %v1795 = vsel %vm210, %v1791, 0
    %v1798 = vsel %vm210, %v1793, 0
    %1800 = vmatprep.subr.bf16.mxu0 0
    %1801 = vmatpush1.bf16.xpose.msra.mxu0 %v1798
    %1802 = vmatprep.subr.bf16.mxu0 0
    %1803 = vmatpush1.bf16.xpose.msra.mxu0 0
    %1804 = vmatprep.subr.bf16.mxu0 0
    %1805 = vmatpush1.bf16.xpose.msra.mxu0 0
    %1806 = vmatprep.subr.bf16.mxu0 0
    %1807 = vmatpush1.bf16.xpose.msra.mxu0 0
    %1808 = vmatprep.subr.bf16.mxu0 0
    %1809 = vmatpush1.bf16.xpose.msra.mxu0 0
    %1810 = vmatprep.subr.bf16.mxu0 0
    %1811 = vmatpush1.bf16.xpose.msra.mxu0 0
    %1812 = vmatprep.subr.bf16.mxu0 0
    %1813 = vmatpush1.bf16.xpose.msra.mxu0 0
    %1814 = vmatprep.subr.bf16.mxu0 0
    %1815 = vmatpush1.bf16.xpose.msra.mxu0 0
    %1816 = vmatprep.subr.bf16.mxu0 0
    %1817 = vmatpush1.bf16.xpose.msra.mxu0 0
    %1818 = vmatprep.subr.bf16.mxu0 0
    %1819 = vmatpush1.bf16.xpose.msra.mxu0 0
    %1820 = vmatprep.subr.bf16.mxu0 0
    %1821 = vmatpush1.bf16.xpose.msra.mxu0 0
    %1822 = vmatprep.subr.bf16.mxu0 0
    %1823 = vmatpush1.bf16.xpose.msra.mxu0 0
    %1824 = vmatprep.subr.bf16.mxu0 0
    %1825 = vmatpush1.bf16.xpose.msra.mxu0 0
    %1826 = vmatprep.subr.bf16.mxu0 0
    %1827 = vmatpush1.bf16.xpose.msra.mxu0 0
    %1828 = vmatprep.subr.bf16.mxu0 0
    %1829 = vmatpush1.bf16.xpose.msra.mxu0 0
    %1830 = vmatprep.subr.bf16.mxu0 0
    %1831 = vmatpush1.bf16.xpose.msra.mxu0 0
    %1832 = vmatprep.mubr.bf16.mxu0 0
    %1833 = vmatmul.mubr.bf16.gmra.mrb[0].mxu0 %v1795
    %v1834 = vpop.f32.mrb[0].mxu0
    %v1835 = vadd.f32 0.0, %v1834
    %v1836 = vpop.f32.mrb[0].mxu0
    %v1837 = vpop.f32.mrb[0].mxu0
    %v1838 = vpop.f32.mrb[0].mxu0
    %1839 = vdwg.mxu0
    %1840 = vrot.lane.b32.xlu0 %v1567, 120
    %v1841 = vpop.permute.xlu0 %1840
    %1842 = vrot.lane.b32.xlu0 %v1567, 88
    %v1843 = vpop.permute.xlu0 %1842
    %v1845 = vsel %vm210, %v1841, 0
    %v1848 = vsel %vm210, %v1843, 0
    %1850 = vmatprep.subr.bf16.mxu0 0
    %1851 = vmatpush1.bf16.xpose.msra.mxu0 %v1848
    %1852 = vmatprep.subr.bf16.mxu0 0
    %1853 = vmatpush1.bf16.xpose.msra.mxu0 0
    %1854 = vmatprep.subr.bf16.mxu0 0
    %1855 = vmatpush1.bf16.xpose.msra.mxu0 0
    %1856 = vmatprep.subr.bf16.mxu0 0
    %1857 = vmatpush1.bf16.xpose.msra.mxu0 0
    %1858 = vmatprep.subr.bf16.mxu0 0
    %1859 = vmatpush1.bf16.xpose.msra.mxu0 0
    %1860 = vmatprep.subr.bf16.mxu0 0
    %1861 = vmatpush1.bf16.xpose.msra.mxu0 0
    %1862 = vmatprep.subr.bf16.mxu0 0
    %1863 = vmatpush1.bf16.xpose.msra.mxu0 0
    %1864 = vmatprep.subr.bf16.mxu0 0
    %1865 = vmatpush1.bf16.xpose.msra.mxu0 0
    %1866 = vmatprep.subr.bf16.mxu0 0
    %1867 = vmatpush1.bf16.xpose.msra.mxu0 0
    %1868 = vmatprep.subr.bf16.mxu0 0
    %1869 = vmatpush1.bf16.xpose.msra.mxu0 0
    %1870 = vmatprep.subr.bf16.mxu0 0
    %1871 = vmatpush1.bf16.xpose.msra.mxu0 0
    %1872 = vmatprep.subr.bf16.mxu0 0
    %1873 = vmatpush1.bf16.xpose.msra.mxu0 0
    %1874 = vmatprep.subr.bf16.mxu0 0
    %1875 = vmatpush1.bf16.xpose.msra.mxu0 0
    %1876 = vmatprep.subr.bf16.mxu0 0
    %1877 = vmatpush1.bf16.xpose.msra.mxu0 0
    %1878 = vmatprep.subr.bf16.mxu0 0
    %1879 = vmatpush1.bf16.xpose.msra.mxu0 0
    %1880 = vmatprep.subr.bf16.mxu0 0
    %1881 = vmatpush1.bf16.xpose.msra.mxu0 0
    %1882 = vmatprep.mubr.bf16.mxu0 0
    %1883 = vmatmul.mubr.bf16.gmra.mrb[0].mxu0 %v1845
    %v1884 = vpop.f32.mrb[0].mxu0
    %v1885 = vadd.f32 0.0, %v1884
    %v1886 = vpop.f32.mrb[0].mxu0
    %v1887 = vpop.f32.mrb[0].mxu0
    %v1888 = vpop.f32.mrb[0].mxu0
    %1889 = vdwg.mxu0
    %v1890 = vmul.f32 %v1835, 0.35355338
    %v1891 = vmul.f32 %v1885, 0.35355338
    %v1892 = vadd.f32 %v1890, %v89
    %v1893 = vadd.f32 %v1891, %v90
    %v1894 = vsel %vm210, %v1892, -inf
    %1895 = vmax.xlane.f32.xlu0 %v1894
    %v1896 = vpop.xlane.xlu0 %1895
    %v1897 = vsel %vm210, %v1893, -inf
    %1898 = vmax.xlane.f32.xlu0 %v1897
    %v1899 = vpop.xlane.xlu0 %1898
    %v1900 = vsub.f32 %v1892, %v1896
    %v1901 = vsub.f32 %v1893, %v1899
    %v1902 = vmul.f32 %v1900, 1.442695
    %v1903 = vpow.pop %v1902
    %v1904 = vmul.f32 %v1901, 1.442695
    %v1905 = vpow.pop %v1904
    %v1906 = vsel %vm210, %v1903, 0.0
    %1907 = vadd.xlane.f32.xlu0 %v1906
    %v1908 = vpop.xlane.xlu0 %1907
    %v1909 = vsel %vm210, %v1905, 0.0
    %1910 = vadd.xlane.f32.xlu0 %v1909
    %v1911 = vpop.xlane.xlu0 %1910
    %v1912 = vrcp.pop %v1908
    %v1913 = vrcp.pop %v1911
    %v1914 = vmul.f32 %v1903, %v1912
    %v1915 = vmul.f32 %v1905, %v1913
    %v1916 = vpack.c.bf16 %v1914, %v1914
    %v1917 = vpack.c.bf16 %v1915, %v1915
    %1918 = vrot.lane.b32.xlu0 %v1566, 56
    %v1919 = vpop.permute.xlu0 %1918
    %v1921 = vsel %vm210, %v1916, 0
    %v1924 = vsel %vm339, %v1919, 0
    %1926 = vmatprep.subr.bf16.mxu0 0
    %1927 = vmatpush1.bf16.msra.mxu0 %v1924
    %1928 = vmatprep.subr.bf16.mxu0 0
    %1929 = vmatpush1.bf16.msra.mxu0 0
    %1930 = vmatprep.subr.bf16.mxu0 0
    %1931 = vmatpush1.bf16.msra.mxu0 0
    %1932 = vmatprep.subr.bf16.mxu0 0
    %1933 = vmatpush1.bf16.msra.mxu0 0
    %1934 = vmatprep.subr.bf16.mxu0 0
    %1935 = vmatpush1.bf16.msra.mxu0 0
    %1936 = vmatprep.subr.bf16.mxu0 0
    %1937 = vmatpush1.bf16.msra.mxu0 0
    %1938 = vmatprep.subr.bf16.mxu0 0
    %1939 = vmatpush1.bf16.msra.mxu0 0
    %1940 = vmatprep.subr.bf16.mxu0 0
    %1941 = vmatpush1.bf16.msra.mxu0 0
    %1942 = vmatprep.subr.bf16.mxu0 0
    %1943 = vmatpush1.bf16.msra.mxu0 0
    %1944 = vmatprep.subr.bf16.mxu0 0
    %1945 = vmatpush1.bf16.msra.mxu0 0
    %1946 = vmatprep.subr.bf16.mxu0 0
    %1947 = vmatpush1.bf16.msra.mxu0 0
    %1948 = vmatprep.subr.bf16.mxu0 0
    %1949 = vmatpush1.bf16.msra.mxu0 0
    %1950 = vmatprep.subr.bf16.mxu0 0
    %1951 = vmatpush1.bf16.msra.mxu0 0
    %1952 = vmatprep.subr.bf16.mxu0 0
    %1953 = vmatpush1.bf16.msra.mxu0 0
    %1954 = vmatprep.subr.bf16.mxu0 0
    %1955 = vmatpush1.bf16.msra.mxu0 0
    %1956 = vmatprep.subr.bf16.mxu0 0
    %1957 = vmatpush1.bf16.msra.mxu0 0
    %1958 = vmatprep.mubr.bf16.mxu0 0
    %1959 = vmatmul.mubr.bf16.gmra.mrb[0].mxu0 %v1921
    %v1960 = vpop.f32.mrb[0].mxu0
    %v1961 = vadd.f32 0.0, %v1960
    %v1962 = vpop.f32.mrb[0].mxu0
    %v1963 = vpop.f32.mrb[0].mxu0
    %v1964 = vpop.f32.mrb[0].mxu0
    %1965 = vdwg.mxu0
    %1966 = vrot.lane.b32.xlu0 %v1567, 56
    %v1967 = vpop.permute.xlu0 %1966
    %v1969 = vsel %vm210, %v1917, 0
    %v1972 = vsel %vm339, %v1967, 0
    %1974 = vmatprep.subr.bf16.mxu0 0
    %1975 = vmatpush1.bf16.msra.mxu0 %v1972
    %1976 = vmatprep.subr.bf16.mxu0 0
    %1977 = vmatpush1.bf16.msra.mxu0 0
    %1978 = vmatprep.subr.bf16.mxu0 0
    %1979 = vmatpush1.bf16.msra.mxu0 0
    %1980 = vmatprep.subr.bf16.mxu0 0
    %1981 = vmatpush1.bf16.msra.mxu0 0
    %1982 = vmatprep.subr.bf16.mxu0 0
    %1983 = vmatpush1.bf16.msra.mxu0 0
    %1984 = vmatprep.subr.bf16.mxu0 0
    %1985 = vmatpush1.bf16.msra.mxu0 0
    %1986 = vmatprep.subr.bf16.mxu0 0
    %1987 = vmatpush1.bf16.msra.mxu0 0
    %1988 = vmatprep.subr.bf16.mxu0 0
    %1989 = vmatpush1.bf16.msra.mxu0 0
    %1990 = vmatprep.subr.bf16.mxu0 0
    %1991 = vmatpush1.bf16.msra.mxu0 0
    %1992 = vmatprep.subr.bf16.mxu0 0
    %1993 = vmatpush1.bf16.msra.mxu0 0
    %1994 = vmatprep.subr.bf16.mxu0 0
    %1995 = vmatpush1.bf16.msra.mxu0 0
    %1996 = vmatprep.subr.bf16.mxu0 0
    %1997 = vmatpush1.bf16.msra.mxu0 0
    %1998 = vmatprep.subr.bf16.mxu0 0
    %1999 = vmatpush1.bf16.msra.mxu0 0
    %2000 = vmatprep.subr.bf16.mxu0 0
    %2001 = vmatpush1.bf16.msra.mxu0 0
    %2002 = vmatprep.subr.bf16.mxu0 0
    %2003 = vmatpush1.bf16.msra.mxu0 0
    %2004 = vmatprep.subr.bf16.mxu0 0
    %2005 = vmatpush1.bf16.msra.mxu0 0
    %2006 = vmatprep.mubr.bf16.mxu0 0
    %2007 = vmatmul.mubr.bf16.gmra.mrb[0].mxu0 %v1969
    %v2008 = vpop.f32.mrb[0].mxu0
    %v2009 = vadd.f32 0.0, %v2008
    %v2010 = vpop.f32.mrb[0].mxu0
    %v2011 = vpop.f32.mrb[0].mxu0
    %v2012 = vpop.f32.mrb[0].mxu0
    %2013 = vdwg.mxu0
    %2014 = vrot.lane.b32.xlu0 %v1566, 112
    %v2015 = vpop.permute.xlu0 %2014
    %2016 = vrot.lane.b32.xlu0 %v1566, 80
    %v2017 = vpop.permute.xlu0 %2016
    %v2019 = vsel %vm210, %v2015, 0
    %v2022 = vsel %vm210, %v2017, 0
    %2024 = vmatprep.subr.bf16.mxu0 0
    %2025 = vmatpush1.bf16.xpose.msra.mxu0 %v2022
    %2026 = vmatprep.subr.bf16.mxu0 0
    %2027 = vmatpush1.bf16.xpose.msra.mxu0 0
    %2028 = vmatprep.subr.bf16.mxu0 0
    %2029 = vmatpush1.bf16.xpose.msra.mxu0 0
    %2030 = vmatprep.subr.bf16.mxu0 0
    %2031 = vmatpush1.bf16.xpose.msra.mxu0 0
    %2032 = vmatprep.subr.bf16.mxu0 0
    %2033 = vmatpush1.bf16.xpose.msra.mxu0 0
    %2034 = vmatprep.subr.bf16.mxu0 0
    %2035 = vmatpush1.bf16.xpose.msra.mxu0 0
    %2036 = vmatprep.subr.bf16.mxu0 0
    %2037 = vmatpush1.bf16.xpose.msra.mxu0 0
    %2038 = vmatprep.subr.bf16.mxu0 0
    %2039 = vmatpush1.bf16.xpose.msra.mxu0 0
    %2040 = vmatprep.subr.bf16.mxu0 0
    %2041 = vmatpush1.bf16.xpose.msra.mxu0 0
    %2042 = vmatprep.subr.bf16.mxu0 0
    %2043 = vmatpush1.bf16.xpose.msra.mxu0 0
    %2044 = vmatprep.subr.bf16.mxu0 0
    %2045 = vmatpush1.bf16.xpose.msra.mxu0 0
    %2046 = vmatprep.subr.bf16.mxu0 0
    %2047 = vmatpush1.bf16.xpose.msra.mxu0 0
    %2048 = vmatprep.subr.bf16.mxu0 0
    %2049 = vmatpush1.bf16.xpose.msra.mxu0 0
    %2050 = vmatprep.subr.bf16.mxu0 0
    %2051 = vmatpush1.bf16.xpose.msra.mxu0 0
    %2052 = vmatprep.subr.bf16.mxu0 0
    %2053 = vmatpush1.bf16.xpose.msra.mxu0 0
    %2054 = vmatprep.subr.bf16.mxu0 0
    %2055 = vmatpush1.bf16.xpose.msra.mxu0 0
    %2056 = vmatprep.mubr.bf16.mxu0 0
    %2057 = vmatmul.mubr.bf16.gmra.mrb[0].mxu0 %v2019
    %v2058 = vpop.f32.mrb[0].mxu0
    %v2059 = vadd.f32 0.0, %v2058
    %v2060 = vpop.f32.mrb[0].mxu0
    %v2061 = vpop.f32.mrb[0].mxu0
    %v2062 = vpop.f32.mrb[0].mxu0
    %2063 = vdwg.mxu0
    %2064 = vrot.lane.b32.xlu0 %v1567, 112
    %v2065 = vpop.permute.xlu0 %2064
    %2066 = vrot.lane.b32.xlu0 %v1567, 80
    %v2067 = vpop.permute.xlu0 %2066
    %v2069 = vsel %vm210, %v2065, 0
    %v2072 = vsel %vm210, %v2067, 0
    %2074 = vmatprep.subr.bf16.mxu0 0
    %2075 = vmatpush1.bf16.xpose.msra.mxu0 %v2072
    %2076 = vmatprep.subr.bf16.mxu0 0
    %2077 = vmatpush1.bf16.xpose.msra.mxu0 0
    %2078 = vmatprep.subr.bf16.mxu0 0
    %2079 = vmatpush1.bf16.xpose.msra.mxu0 0
    %2080 = vmatprep.subr.bf16.mxu0 0
    %2081 = vmatpush1.bf16.xpose.msra.mxu0 0
    %2082 = vmatprep.subr.bf16.mxu0 0
    %2083 = vmatpush1.bf16.xpose.msra.mxu0 0
    %2084 = vmatprep.subr.bf16.mxu0 0
    %2085 = vmatpush1.bf16.xpose.msra.mxu0 0
    %2086 = vmatprep.subr.bf16.mxu0 0
    %2087 = vmatpush1.bf16.xpose.msra.mxu0 0
    %2088 = vmatprep.subr.bf16.mxu0 0
    %2089 = vmatpush1.bf16.xpose.msra.mxu0 0
    %2090 = vmatprep.subr.bf16.mxu0 0
    %2091 = vmatpush1.bf16.xpose.msra.mxu0 0
    %2092 = vmatprep.subr.bf16.mxu0 0
    %2093 = vmatpush1.bf16.xpose.msra.mxu0 0
    %2094 = vmatprep.subr.bf16.mxu0 0
    %2095 = vmatpush1.bf16.xpose.msra.mxu0 0
    %2096 = vmatprep.subr.bf16.mxu0 0
    %2097 = vmatpush1.bf16.xpose.msra.mxu0 0
    %2098 = vmatprep.subr.bf16.mxu0 0
    %2099 = vmatpush1.bf16.xpose.msra.mxu0 0
    %2100 = vmatprep.subr.bf16.mxu0 0
    %2101 = vmatpush1.bf16.xpose.msra.mxu0 0
    %2102 = vmatprep.subr.bf16.mxu0 0
    %2103 = vmatpush1.bf16.xpose.msra.mxu0 0
    %2104 = vmatprep.subr.bf16.mxu0 0
    %2105 = vmatpush1.bf16.xpose.msra.mxu0 0
    %2106 = vmatprep.mubr.bf16.mxu0 0
    %2107 = vmatmul.mubr.bf16.gmra.mrb[0].mxu0 %v2069
    %v2108 = vpop.f32.mrb[0].mxu0
    %v2109 = vadd.f32 0.0, %v2108
    %v2110 = vpop.f32.mrb[0].mxu0
    %v2111 = vpop.f32.mrb[0].mxu0
    %v2112 = vpop.f32.mrb[0].mxu0
    %2113 = vdwg.mxu0
    %v2114 = vmul.f32 %v2059, 0.35355338
    %v2115 = vmul.f32 %v2109, 0.35355338
    %v2116 = vadd.f32 %v2114, %v89
    %v2117 = vadd.f32 %v2115, %v90
    %v2118 = vsel %vm210, %v2116, -inf
    %2119 = vmax.xlane.f32.xlu0 %v2118
    %v2120 = vpop.xlane.xlu0 %2119
    %v2121 = vsel %vm210, %v2117, -inf
    %2122 = vmax.xlane.f32.xlu0 %v2121
    %v2123 = vpop.xlane.xlu0 %2122
    %v2124 = vsub.f32 %v2116, %v2120
    %v2125 = vsub.f32 %v2117, %v2123
    %v2126 = vmul.f32 %v2124, 1.442695
    %v2127 = vpow.pop %v2126
    %v2128 = vmul.f32 %v2125, 1.442695
    %v2129 = vpow.pop %v2128
    %v2130 = vsel %vm210, %v2127, 0.0
    %2131 = vadd.xlane.f32.xlu0 %v2130
    %v2132 = vpop.xlane.xlu0 %2131
    %v2133 = vsel %vm210, %v2129, 0.0
    %2134 = vadd.xlane.f32.xlu0 %v2133
    %v2135 = vpop.xlane.xlu0 %2134
    %v2136 = vrcp.pop %v2132
    %v2137 = vrcp.pop %v2135
    %v2138 = vmul.f32 %v2127, %v2136
    %v2139 = vmul.f32 %v2129, %v2137
    %v2140 = vpack.c.bf16 %v2138, %v2138
    %v2141 = vpack.c.bf16 %v2139, %v2139
    %2142 = vrot.lane.b32.xlu0 %v1566, 48
    %v2143 = vpop.permute.xlu0 %2142
    %v2145 = vsel %vm210, %v2140, 0
    %v2148 = vsel %vm339, %v2143, 0
    %2150 = vmatprep.subr.bf16.mxu0 0
    %2151 = vmatpush1.bf16.msra.mxu0 %v2148
    %2152 = vmatprep.subr.bf16.mxu0 0
    %2153 = vmatpush1.bf16.msra.mxu0 0
    %2154 = vmatprep.subr.bf16.mxu0 0
    %2155 = vmatpush1.bf16.msra.mxu0 0
    %2156 = vmatprep.subr.bf16.mxu0 0
    %2157 = vmatpush1.bf16.msra.mxu0 0
    %2158 = vmatprep.subr.bf16.mxu0 0
    %2159 = vmatpush1.bf16.msra.mxu0 0
    %2160 = vmatprep.subr.bf16.mxu0 0
    %2161 = vmatpush1.bf16.msra.mxu0 0
    %2162 = vmatprep.subr.bf16.mxu0 0
    %2163 = vmatpush1.bf16.msra.mxu0 0
    %2164 = vmatprep.subr.bf16.mxu0 0
    %2165 = vmatpush1.bf16.msra.mxu0 0
    %2166 = vmatprep.subr.bf16.mxu0 0
    %2167 = vmatpush1.bf16.msra.mxu0 0
    %2168 = vmatprep.subr.bf16.mxu0 0
    %2169 = vmatpush1.bf16.msra.mxu0 0
    %2170 = vmatprep.subr.bf16.mxu0 0
    %2171 = vmatpush1.bf16.msra.mxu0 0
    %2172 = vmatprep.subr.bf16.mxu0 0
    %2173 = vmatpush1.bf16.msra.mxu0 0
    %2174 = vmatprep.subr.bf16.mxu0 0
    %2175 = vmatpush1.bf16.msra.mxu0 0
    %2176 = vmatprep.subr.bf16.mxu0 0
    %2177 = vmatpush1.bf16.msra.mxu0 0
    %2178 = vmatprep.subr.bf16.mxu0 0
    %2179 = vmatpush1.bf16.msra.mxu0 0
    %2180 = vmatprep.subr.bf16.mxu0 0
    %2181 = vmatpush1.bf16.msra.mxu0 0
    %2182 = vmatprep.mubr.bf16.mxu0 0
    %2183 = vmatmul.mubr.bf16.gmra.mrb[0].mxu0 %v2145
    %v2184 = vpop.f32.mrb[0].mxu0
    %v2185 = vadd.f32 0.0, %v2184
    %v2186 = vpop.f32.mrb[0].mxu0
    %v2187 = vpop.f32.mrb[0].mxu0
    %v2188 = vpop.f32.mrb[0].mxu0
    %2189 = vdwg.mxu0
    %2190 = vrot.lane.b32.xlu0 %v1567, 48
    %v2191 = vpop.permute.xlu0 %2190
    %v2193 = vsel %vm210, %v2141, 0
    %v2196 = vsel %vm339, %v2191, 0
    %2198 = vmatprep.subr.bf16.mxu0 0
    %2199 = vmatpush1.bf16.msra.mxu0 %v2196
    %2200 = vmatprep.subr.bf16.mxu0 0
    %2201 = vmatpush1.bf16.msra.mxu0 0
    %2202 = vmatprep.subr.bf16.mxu0 0
    %2203 = vmatpush1.bf16.msra.mxu0 0
    %2204 = vmatprep.subr.bf16.mxu0 0
    %2205 = vmatpush1.bf16.msra.mxu0 0
    %2206 = vmatprep.subr.bf16.mxu0 0
    %2207 = vmatpush1.bf16.msra.mxu0 0
    %2208 = vmatprep.subr.bf16.mxu0 0
    %2209 = vmatpush1.bf16.msra.mxu0 0
    %2210 = vmatprep.subr.bf16.mxu0 0
    %2211 = vmatpush1.bf16.msra.mxu0 0
    %2212 = vmatprep.subr.bf16.mxu0 0
    %2213 = vmatpush1.bf16.msra.mxu0 0
    %2214 = vmatprep.subr.bf16.mxu0 0
    %2215 = vmatpush1.bf16.msra.mxu0 0
    %2216 = vmatprep.subr.bf16.mxu0 0
    %2217 = vmatpush1.bf16.msra.mxu0 0
    %2218 = vmatprep.subr.bf16.mxu0 0
    %2219 = vmatpush1.bf16.msra.mxu0 0
    %2220 = vmatprep.subr.bf16.mxu0 0
    %2221 = vmatpush1.bf16.msra.mxu0 0
    %2222 = vmatprep.subr.bf16.mxu0 0
    %2223 = vmatpush1.bf16.msra.mxu0 0
    %2224 = vmatprep.subr.bf16.mxu0 0
    %2225 = vmatpush1.bf16.msra.mxu0 0
    %2226 = vmatprep.subr.bf16.mxu0 0
    %2227 = vmatpush1.bf16.msra.mxu0 0
    %2228 = vmatprep.subr.bf16.mxu0 0
    %2229 = vmatpush1.bf16.msra.mxu0 0
    %2230 = vmatprep.mubr.bf16.mxu0 0
    %2231 = vmatmul.mubr.bf16.gmra.mrb[0].mxu0 %v2193
    %v2232 = vpop.f32.mrb[0].mxu0
    %v2233 = vadd.f32 0.0, %v2232
    %v2234 = vpop.f32.mrb[0].mxu0
    %v2235 = vpop.f32.mrb[0].mxu0
    %v2236 = vpop.f32.mrb[0].mxu0
    %2237 = vdwg.mxu0
    %2238 = vrot.lane.b32.xlu0 %v1566, 104
    %v2239 = vpop.permute.xlu0 %2238
    %2240 = vrot.lane.b32.xlu0 %v1566, 72
    %v2241 = vpop.permute.xlu0 %2240
    %v2243 = vsel %vm210, %v2239, 0
    %v2246 = vsel %vm210, %v2241, 0
    %2248 = vmatprep.subr.bf16.mxu0 0
    %2249 = vmatpush1.bf16.xpose.msra.mxu0 %v2246
    %2250 = vmatprep.subr.bf16.mxu0 0
    %2251 = vmatpush1.bf16.xpose.msra.mxu0 0
    %2252 = vmatprep.subr.bf16.mxu0 0
    %2253 = vmatpush1.bf16.xpose.msra.mxu0 0
    %2254 = vmatprep.subr.bf16.mxu0 0
    %2255 = vmatpush1.bf16.xpose.msra.mxu0 0
    %2256 = vmatprep.subr.bf16.mxu0 0
    %2257 = vmatpush1.bf16.xpose.msra.mxu0 0
    %2258 = vmatprep.subr.bf16.mxu0 0
    %2259 = vmatpush1.bf16.xpose.msra.mxu0 0
    %2260 = vmatprep.subr.bf16.mxu0 0
    %2261 = vmatpush1.bf16.xpose.msra.mxu0 0
    %2262 = vmatprep.subr.bf16.mxu0 0
    %2263 = vmatpush1.bf16.xpose.msra.mxu0 0
    %2264 = vmatprep.subr.bf16.mxu0 0
    %2265 = vmatpush1.bf16.xpose.msra.mxu0 0
    %2266 = vmatprep.subr.bf16.mxu0 0
    %2267 = vmatpush1.bf16.xpose.msra.mxu0 0
    %2268 = vmatprep.subr.bf16.mxu0 0
    %2269 = vmatpush1.bf16.xpose.msra.mxu0 0
    %2270 = vmatprep.subr.bf16.mxu0 0
    %2271 = vmatpush1.bf16.xpose.msra.mxu0 0
    %2272 = vmatprep.subr.bf16.mxu0 0
    %2273 = vmatpush1.bf16.xpose.msra.mxu0 0
    %2274 = vmatprep.subr.bf16.mxu0 0
    %2275 = vmatpush1.bf16.xpose.msra.mxu0 0
    %2276 = vmatprep.subr.bf16.mxu0 0
    %2277 = vmatpush1.bf16.xpose.msra.mxu0 0
    %2278 = vmatprep.subr.bf16.mxu0 0
    %2279 = vmatpush1.bf16.xpose.msra.mxu0 0
    %2280 = vmatprep.mubr.bf16.mxu0 0
    %2281 = vmatmul.mubr.bf16.gmra.mrb[0].mxu0 %v2243
    %v2282 = vpop.f32.mrb[0].mxu0
    %v2283 = vadd.f32 0.0, %v2282
    %v2284 = vpop.f32.mrb[0].mxu0
    %v2285 = vpop.f32.mrb[0].mxu0
    %v2286 = vpop.f32.mrb[0].mxu0
    %2287 = vdwg.mxu0
    %2288 = vrot.lane.b32.xlu0 %v1567, 104
    %v2289 = vpop.permute.xlu0 %2288
    %2290 = vrot.lane.b32.xlu0 %v1567, 72
    %v2291 = vpop.permute.xlu0 %2290
    %v2293 = vsel %vm210, %v2289, 0
    %v2296 = vsel %vm210, %v2291, 0
    %2298 = vmatprep.subr.bf16.mxu0 0
    %2299 = vmatpush1.bf16.xpose.msra.mxu0 %v2296
    %2300 = vmatprep.subr.bf16.mxu0 0
    %2301 = vmatpush1.bf16.xpose.msra.mxu0 0
    %2302 = vmatprep.subr.bf16.mxu0 0
    %2303 = vmatpush1.bf16.xpose.msra.mxu0 0
    %2304 = vmatprep.subr.bf16.mxu0 0
    %2305 = vmatpush1.bf16.xpose.msra.mxu0 0
    %2306 = vmatprep.subr.bf16.mxu0 0
    %2307 = vmatpush1.bf16.xpose.msra.mxu0 0
    %2308 = vmatprep.subr.bf16.mxu0 0
    %2309 = vmatpush1.bf16.xpose.msra.mxu0 0
    %2310 = vmatprep.subr.bf16.mxu0 0
    %2311 = vmatpush1.bf16.xpose.msra.mxu0 0
    %2312 = vmatprep.subr.bf16.mxu0 0
    %2313 = vmatpush1.bf16.xpose.msra.mxu0 0
    %2314 = vmatprep.subr.bf16.mxu0 0
    %2315 = vmatpush1.bf16.xpose.msra.mxu0 0
    %2316 = vmatprep.subr.bf16.mxu0 0
    %2317 = vmatpush1.bf16.xpose.msra.mxu0 0
    %2318 = vmatprep.subr.bf16.mxu0 0
    %2319 = vmatpush1.bf16.xpose.msra.mxu0 0
    %2320 = vmatprep.subr.bf16.mxu0 0
    %2321 = vmatpush1.bf16.xpose.msra.mxu0 0
    %2322 = vmatprep.subr.bf16.mxu0 0
    %2323 = vmatpush1.bf16.xpose.msra.mxu0 0
    %2324 = vmatprep.subr.bf16.mxu0 0
    %2325 = vmatpush1.bf16.xpose.msra.mxu0 0
    %2326 = vmatprep.subr.bf16.mxu0 0
    %2327 = vmatpush1.bf16.xpose.msra.mxu0 0
    %2328 = vmatprep.subr.bf16.mxu0 0
    %2329 = vmatpush1.bf16.xpose.msra.mxu0 0
    %2330 = vmatprep.mubr.bf16.mxu0 0
    %2331 = vmatmul.mubr.bf16.gmra.mrb[0].mxu0 %v2293
    %v2332 = vpop.f32.mrb[0].mxu0
    %v2333 = vadd.f32 0.0, %v2332
    %v2334 = vpop.f32.mrb[0].mxu0
    %v2335 = vpop.f32.mrb[0].mxu0
    %v2336 = vpop.f32.mrb[0].mxu0
    %2337 = vdwg.mxu0
    %v2338 = vmul.f32 %v2283, 0.35355338
    %v2339 = vmul.f32 %v2333, 0.35355338
    %v2340 = vadd.f32 %v2338, %v89
    %v2341 = vadd.f32 %v2339, %v90
    %v2342 = vsel %vm210, %v2340, -inf
    %2343 = vmax.xlane.f32.xlu0 %v2342
    %v2344 = vpop.xlane.xlu0 %2343
    %v2345 = vsel %vm210, %v2341, -inf
    %2346 = vmax.xlane.f32.xlu0 %v2345
    %v2347 = vpop.xlane.xlu0 %2346
    %v2348 = vsub.f32 %v2340, %v2344
    %v2349 = vsub.f32 %v2341, %v2347
    %v2350 = vmul.f32 %v2348, 1.442695
    %v2351 = vpow.pop %v2350
    %v2352 = vmul.f32 %v2349, 1.442695
    %v2353 = vpow.pop %v2352
    %v2354 = vsel %vm210, %v2351, 0.0
    %2355 = vadd.xlane.f32.xlu0 %v2354
    %v2356 = vpop.xlane.xlu0 %2355
    %v2357 = vsel %vm210, %v2353, 0.0
    %2358 = vadd.xlane.f32.xlu0 %v2357
    %v2359 = vpop.xlane.xlu0 %2358
    %v2360 = vrcp.pop %v2356
    %v2361 = vrcp.pop %v2359
    %v2362 = vmul.f32 %v2351, %v2360
    %v2363 = vmul.f32 %v2353, %v2361
    %v2364 = vpack.c.bf16 %v2362, %v2362
    %v2365 = vpack.c.bf16 %v2363, %v2363
    %2366 = vrot.lane.b32.xlu0 %v1566, 40
    %v2367 = vpop.permute.xlu0 %2366
    %v2369 = vsel %vm210, %v2364, 0
    %v2372 = vsel %vm339, %v2367, 0
    %2374 = vmatprep.subr.bf16.mxu0 0
    %2375 = vmatpush1.bf16.msra.mxu0 %v2372
    %2376 = vmatprep.subr.bf16.mxu0 0
    %2377 = vmatpush1.bf16.msra.mxu0 0
    %2378 = vmatprep.subr.bf16.mxu0 0
    %2379 = vmatpush1.bf16.msra.mxu0 0
    %2380 = vmatprep.subr.bf16.mxu0 0
    %2381 = vmatpush1.bf16.msra.mxu0 0
    %2382 = vmatprep.subr.bf16.mxu0 0
    %2383 = vmatpush1.bf16.msra.mxu0 0
    %2384 = vmatprep.subr.bf16.mxu0 0
    %2385 = vmatpush1.bf16.msra.mxu0 0
    %2386 = vmatprep.subr.bf16.mxu0 0
    %2387 = vmatpush1.bf16.msra.mxu0 0
    %2388 = vmatprep.subr.bf16.mxu0 0
    %2389 = vmatpush1.bf16.msra.mxu0 0
    %2390 = vmatprep.subr.bf16.mxu0 0
    %2391 = vmatpush1.bf16.msra.mxu0 0
    %2392 = vmatprep.subr.bf16.mxu0 0
    %2393 = vmatpush1.bf16.msra.mxu0 0
    %2394 = vmatprep.subr.bf16.mxu0 0
    %2395 = vmatpush1.bf16.msra.mxu0 0
    %2396 = vmatprep.subr.bf16.mxu0 0
    %2397 = vmatpush1.bf16.msra.mxu0 0
    %2398 = vmatprep.subr.bf16.mxu0 0
    %2399 = vmatpush1.bf16.msra.mxu0 0
    %2400 = vmatprep.subr.bf16.mxu0 0
    %2401 = vmatpush1.bf16.msra.mxu0 0
    %2402 = vmatprep.subr.bf16.mxu0 0
    %2403 = vmatpush1.bf16.msra.mxu0 0
    %2404 = vmatprep.subr.bf16.mxu0 0
    %2405 = vmatpush1.bf16.msra.mxu0 0
    %2406 = vmatprep.mubr.bf16.mxu0 0
    %2407 = vmatmul.mubr.bf16.gmra.mrb[0].mxu0 %v2369
    %v2408 = vpop.f32.mrb[0].mxu0
    %v2409 = vadd.f32 0.0, %v2408
    %v2410 = vpop.f32.mrb[0].mxu0
    %v2411 = vpop.f32.mrb[0].mxu0
    %v2412 = vpop.f32.mrb[0].mxu0
    %2413 = vdwg.mxu0
    %2414 = vrot.lane.b32.xlu0 %v1567, 40
    %v2415 = vpop.permute.xlu0 %2414
    %v2417 = vsel %vm210, %v2365, 0
    %v2420 = vsel %vm339, %v2415, 0
    %2422 = vmatprep.subr.bf16.mxu0 0
    %2423 = vmatpush1.bf16.msra.mxu0 %v2420
    %2424 = vmatprep.subr.bf16.mxu0 0
    %2425 = vmatpush1.bf16.msra.mxu0 0
    %2426 = vmatprep.subr.bf16.mxu0 0
    %2427 = vmatpush1.bf16.msra.mxu0 0
    %2428 = vmatprep.subr.bf16.mxu0 0
    %2429 = vmatpush1.bf16.msra.mxu0 0
    %2430 = vmatprep.subr.bf16.mxu0 0
    %2431 = vmatpush1.bf16.msra.mxu0 0
    %2432 = vmatprep.subr.bf16.mxu0 0
    %2433 = vmatpush1.bf16.msra.mxu0 0
    %2434 = vmatprep.subr.bf16.mxu0 0
    %2435 = vmatpush1.bf16.msra.mxu0 0
    %2436 = vmatprep.subr.bf16.mxu0 0
    %2437 = vmatpush1.bf16.msra.mxu0 0
    %2438 = vmatprep.subr.bf16.mxu0 0
    %2439 = vmatpush1.bf16.msra.mxu0 0
    %2440 = vmatprep.subr.bf16.mxu0 0
    %2441 = vmatpush1.bf16.msra.mxu0 0
    %2442 = vmatprep.subr.bf16.mxu0 0
    %2443 = vmatpush1.bf16.msra.mxu0 0
    %2444 = vmatprep.subr.bf16.mxu0 0
    %2445 = vmatpush1.bf16.msra.mxu0 0
    %2446 = vmatprep.subr.bf16.mxu0 0
    %2447 = vmatpush1.bf16.msra.mxu0 0
    %2448 = vmatprep.subr.bf16.mxu0 0
    %2449 = vmatpush1.bf16.msra.mxu0 0
    %2450 = vmatprep.subr.bf16.mxu0 0
    %2451 = vmatpush1.bf16.msra.mxu0 0
    %2452 = vmatprep.subr.bf16.mxu0 0
    %2453 = vmatpush1.bf16.msra.mxu0 0
    %2454 = vmatprep.mubr.bf16.mxu0 0
    %2455 = vmatmul.mubr.bf16.gmra.mrb[0].mxu0 %v2417
    %v2456 = vpop.f32.mrb[0].mxu0
    %v2457 = vadd.f32 0.0, %v2456
    %v2458 = vpop.f32.mrb[0].mxu0
    %v2459 = vpop.f32.mrb[0].mxu0
    %v2460 = vpop.f32.mrb[0].mxu0
    %2461 = vdwg.mxu0
    %2464 = vrot.lane.b32.xlu0 %v1961, 8
    %v2465 = vpop.permute.xlu0 %2464
    %2466 = vrot.lane.b32.xlu0 %v2009, 8
    %v2467 = vpop.permute.xlu0 %2466
    %2472 = vrot.lane.b32.xlu0 %v2185, 16
    %v2473 = vpop.permute.xlu0 %2472
    %2474 = vrot.lane.b32.xlu0 %v2233, 16
    %v2475 = vpop.permute.xlu0 %2474
    %2480 = vrot.lane.b32.xlu0 %v2409, 24
    %v2481 = vpop.permute.xlu0 %2480
    %2482 = vrot.lane.b32.xlu0 %v2457, 24
    %v2483 = vpop.permute.xlu0 %2482
    %v2486 = vsel %vm210, %v1737, %v2465
    %v2487 = vsel %vm210, %v1785, %v2467
    %v2488 = vsel %vm1129, %v2486, %v2473
    %v2489 = vsel %vm1129, %v2487, %v2475
    %v2490 = vsel %vm1132, %v2488, %v2481
    %v2491 = vsel %vm1132, %v2489, %v2483
    %v2492 = vpack.c.bf16 %v2491, %v2490
    %s2493 = scalar_lea.vmem %s6, 16
    %v2494 = vld [vmem:[%s2493] sm:$0xf]
    %v2495 = vld [vmem:[%s2493 + $0x4] sm:$0xf]
    %v2496 = vld [vmem:[%s2493 + $0x8] sm:$0xf]
    %v2497 = vld [vmem:[%s2493 + $0xc] sm:$0xf]
    %s2498 = scalar_lea.vmem %s7, 1
    %v2499 = vld [vmem:[%s2498] sm:$0x1]
    %v2501 = vlaneseq
    %v2502 = vshrl.u32 %v2501, 7
    %v2503 = vsub.s32 0, %v2502
    %v2504 = vrot.slane %v2499, %v2503
    %v2510 = vunpack.c.l.b16 %v2494
    %v2511 = vunpack.c.l.b16 %v2495
    %v2512 = vunpack.c.l.b16 %v2496
    %v2513 = vunpack.c.l.b16 %v2497
    %v2514 = vpack.c.b16 %v2511, %v2510
    %v2515 = vpack.c.b16 %v2513, %v2512
    %v2519 = vsel %vm93, %v2492, 0
    %2521 = vmatprep.subr.bf16.mxu0 0
    %2522 = vmatpush1.bf16.msra.mxu0 %v2514
    %2523 = vmatprep.subr.bf16.mxu0 0
    %2524 = vmatpush1.bf16.msra.mxu0 %v2515
    %2525 = vmatprep.subr.bf16.mxu0 0
    %2526 = vmatpush1.bf16.msra.mxu0 0
    %2527 = vmatprep.subr.bf16.mxu0 0
    %2528 = vmatpush1.bf16.msra.mxu0 0
    %2529 = vmatprep.subr.bf16.mxu0 0
    %2530 = vmatpush1.bf16.msra.mxu0 0
    %2531 = vmatprep.subr.bf16.mxu0 0
    %2532 = vmatpush1.bf16.msra.mxu0 0
    %2533 = vmatprep.subr.bf16.mxu0 0
    %2534 = vmatpush1.bf16.msra.mxu0 0
    %2535 = vmatprep.subr.bf16.mxu0 0
    %2536 = vmatpush1.bf16.msra.mxu0 0
    %2537 = vmatprep.subr.bf16.mxu0 0
    %2538 = vmatpush1.bf16.msra.mxu0 0
    %2539 = vmatprep.subr.bf16.mxu0 0
    %2540 = vmatpush1.bf16.msra.mxu0 0
    %2541 = vmatprep.subr.bf16.mxu0 0
    %2542 = vmatpush1.bf16.msra.mxu0 0
    %2543 = vmatprep.subr.bf16.mxu0 0
    %2544 = vmatpush1.bf16.msra.mxu0 0
    %2545 = vmatprep.subr.bf16.mxu0 0
    %2546 = vmatpush1.bf16.msra.mxu0 0
    %2547 = vmatprep.subr.bf16.mxu0 0
    %2548 = vmatpush1.bf16.msra.mxu0 0
    %2549 = vmatprep.subr.bf16.mxu0 0
    %2550 = vmatpush1.bf16.msra.mxu0 0
    %2551 = vmatprep.subr.bf16.mxu0 0
    %2552 = vmatpush1.bf16.msra.mxu0 0
    %2553 = vmatprep.mubr.bf16.mxu0 0
    %2554 = vmatmul.mubr.bf16.gmra.mrb[0].mxu0 %v2519
    %v2555 = vpop.f32.mrb[0].mxu0
    %v2556 = vadd.f32 %v2504, %v2555
    %v2557 = vpop.f32.mrb[0].mxu0
    %v2558 = vpop.f32.mrb[0].mxu0
    %v2559 = vadd.f32 %v2504, %v2558
    %v2560 = vpop.f32.mrb[0].mxu0
    %2561 = vdwg.mxu0
    %v2562 = vadd.f32 %v1448, %v2556
    %v2563 = vadd.f32 %v1449, %v2559
    %s2564 = scalar_lea.vmem %s8, 1
    %v2565 = vld [vmem:[%s2564] sm:$0x1]
    %s2566 = scalar_lea.vmem %s9, 1
    %v2567 = vld [vmem:[%s2566] sm:$0x1]
    %v2568 = vsel %vm93, %v2562, 0.0
    %2569 = vadd.xlane.f32.xlu0 %v2568
    %v2570 = vpop.xlane.xlu0 %2569
    %v2571 = vsel %vm93, %v2563, 0.0
    %2572 = vadd.xlane.f32.xlu0 %v2571
    %v2573 = vpop.xlane.xlu0 %2572
    %v2574 = vmul.f32 %v2570, %v100
    %v2575 = vmul.f32 %v2573, %v100
    %v2576 = vsub.f32 %v2562, %v2574
    %v2577 = vsub.f32 %v2563, %v2575
    %v2578 = vmul.f32 %v2576, %v2576
    %v2579 = vmul.f32 %v2577, %v2577
    %v2580 = vsel %vm93, %v2578, 0.0
    %2581 = vadd.xlane.f32.xlu0 %v2580
    %v2582 = vpop.xlane.xlu0 %2581
    %v2583 = vsel %vm93, %v2579, 0.0
    %2584 = vadd.xlane.f32.xlu0 %v2583
    %v2585 = vpop.xlane.xlu0 %2584
    %v2586 = vmul.f32 %v2582, %v100
    %v2587 = vmul.f32 %v2585, %v100
    %v2588 = vadd.f32 %v2586, 1e-05
    %v2589 = vadd.f32 %v2587, 1e-05
    %v2590 = vrsqrt.pop %v2588
    %v2591 = vrsqrt.pop %v2589
    %v2592 = vmul.f32 %v2576, %v2590
    %v2593 = vmul.f32 %v2577, %v2591
    %v2595 = vlaneseq
    %v2596 = vshrl.u32 %v2595, 7
    %v2597 = vsub.s32 0, %v2596
    %v2598 = vrot.slane %v2565, %v2597
    %v2600 = vmul.f32 %v2592, %v2598
    %v2601 = vmul.f32 %v2593, %v2598
    %v2603 = vlaneseq
    %v2604 = vshrl.u32 %v2603, 7
    %v2605 = vsub.s32 0, %v2604
    %v2606 = vrot.slane %v2567, %v2605
    %v2608 = vadd.f32 %v2600, %v2606
    %v2609 = vadd.f32 %v2601, %v2606
    %v2610 = vpack.c.bf16 %v2609, %v2608
    %s2611 = scalar_lea.vmem %s10, 16
    %v2612 = vld [vmem:[%s2611] sm:$0xf]
    %v2613 = vld [vmem:[%s2611 + $0x4] sm:$0xf]
    %v2614 = vld [vmem:[%s2611 + $0x8] sm:$0xf]
    %v2615 = vld [vmem:[%s2611 + $0xc] sm:$0xf]
    %s2616 = scalar_lea.vmem %s11, 1
    %v2617 = vld [vmem:[%s2616] sm:$0x1]
    %v2619 = vlaneseq
    %v2620 = vshrl.u32 %v2619, 7
    %v2621 = vsub.s32 0, %v2620
    %v2622 = vrot.slane %v2617, %v2621
    %v2628 = vunpack.c.l.b16 %v2612
    %v2629 = vunpack.c.l.b16 %v2613
    %v2630 = vunpack.c.l.b16 %v2614
    %v2631 = vunpack.c.l.b16 %v2615
    %v2632 = vpack.c.b16 %v2629, %v2628
    %v2633 = vpack.c.b16 %v2631, %v2630
    %v2637 = vsel %vm93, %v2610, 0
    %2639 = vmatprep.subr.bf16.mxu0 0
    %2640 = vmatpush1.bf16.msra.mxu0 %v2632
    %2641 = vmatprep.subr.bf16.mxu0 0
    %2642 = vmatpush1.bf16.msra.mxu0 %v2633
    %2643 = vmatprep.subr.bf16.mxu0 0
    %2644 = vmatpush1.bf16.msra.mxu0 0
    %2645 = vmatprep.subr.bf16.mxu0 0
    %2646 = vmatpush1.bf16.msra.mxu0 0
    %2647 = vmatprep.subr.bf16.mxu0 0
    %2648 = vmatpush1.bf16.msra.mxu0 0
    %2649 = vmatprep.subr.bf16.mxu0 0
    %2650 = vmatpush1.bf16.msra.mxu0 0
    %2651 = vmatprep.subr.bf16.mxu0 0
    %2652 = vmatpush1.bf16.msra.mxu0 0
    %2653 = vmatprep.subr.bf16.mxu0 0
    %2654 = vmatpush1.bf16.msra.mxu0 0
    %2655 = vmatprep.subr.bf16.mxu0 0
    %2656 = vmatpush1.bf16.msra.mxu0 0
    %2657 = vmatprep.subr.bf16.mxu0 0
    %2658 = vmatpush1.bf16.msra.mxu0 0
    %2659 = vmatprep.subr.bf16.mxu0 0
    %2660 = vmatpush1.bf16.msra.mxu0 0
    %2661 = vmatprep.subr.bf16.mxu0 0
    %2662 = vmatpush1.bf16.msra.mxu0 0
    %2663 = vmatprep.subr.bf16.mxu0 0
    %2664 = vmatpush1.bf16.msra.mxu0 0
    %2665 = vmatprep.subr.bf16.mxu0 0
    %2666 = vmatpush1.bf16.msra.mxu0 0
    %2667 = vmatprep.subr.bf16.mxu0 0
    %2668 = vmatpush1.bf16.msra.mxu0 0
    %2669 = vmatprep.subr.bf16.mxu0 0
    %2670 = vmatpush1.bf16.msra.mxu0 0
    %2671 = vmatprep.mubr.bf16.mxu0 0
    %2672 = vmatmul.mubr.bf16.gmra.mrb[0].mxu0 %v2637
    %v2673 = vpop.f32.mrb[0].mxu0
    %v2674 = vadd.f32 %v2622, %v2673
    %v2675 = vpop.f32.mrb[0].mxu0
    %v2676 = vpop.f32.mrb[0].mxu0
    %v2677 = vadd.f32 %v2622, %v2676
    %v2678 = vpop.f32.mrb[0].mxu0
    %2679 = vdwg.mxu0
    %v2680 = vmul.f32 %v2674, 0.5
    %v2681 = vmul.f32 %v2677, 0.5
    %v2682 = vmul.f32 %v2674, 0.044715
    %v2683 = vmul.f32 %v2677, 0.044715
    %v2684 = vmul.f32 %v2682, %v2674
    %v2685 = vmul.f32 %v2683, %v2677
    %v2686 = vmul.f32 %v2684, %v2674
    %v2687 = vmul.f32 %v2685, %v2677
    %v2688 = vadd.f32 %v2674, %v2686
    %v2689 = vadd.f32 %v2677, %v2687
    %v2690 = vmul.f32 %v2688, 0.7978846
    %v2691 = vmul.f32 %v2689, 0.7978846
    %v2692 = vtanh.pop %v2690
    %v2693 = vtanh.pop %v2691
    %v2694 = vadd.f32 %v2692, 1.0
    %v2695 = vadd.f32 %v2693, 1.0
    %v2696 = vmul.f32 %v2680, %v2694
    %v2697 = vmul.f32 %v2681, %v2695
    %v2698 = vpack.c.bf16 %v2697, %v2696
    %s2699 = scalar_lea.vmem %s12, 64
    %v2700 = vld [vmem:[%s2699] sm:$0xf]
    %v2701 = vld [vmem:[%s2699 + $0x4] sm:$0xf]
    %v2702 = vld [vmem:[%s2699 + $0x8] sm:$0xf]
    %v2703 = vld [vmem:[%s2699 + $0xc] sm:$0xf]
    %v2704 = vld [vmem:[%s2699 + $0x10] sm:$0xf]
    %v2705 = vld [vmem:[%s2699 + $0x14] sm:$0xf]
    %v2706 = vld [vmem:[%s2699 + $0x18] sm:$0xf]
    %v2707 = vld [vmem:[%s2699 + $0x1c] sm:$0xf]
    %v2708 = vld [vmem:[%s2699 + $0x20] sm:$0xf]
    %v2709 = vld [vmem:[%s2699 + $0x24] sm:$0xf]
    %v2710 = vld [vmem:[%s2699 + $0x28] sm:$0xf]
    %v2711 = vld [vmem:[%s2699 + $0x2c] sm:$0xf]
    %v2712 = vld [vmem:[%s2699 + $0x30] sm:$0xf]
    %v2713 = vld [vmem:[%s2699 + $0x34] sm:$0xf]
    %v2714 = vld [vmem:[%s2699 + $0x38] sm:$0xf]
    %v2715 = vld [vmem:[%s2699 + $0x3c] sm:$0xf]
    %s2716 = scalar_lea.vmem %s13, 1
    %v2717 = vld [vmem:[%s2716] sm:$0x1]
    %v2719 = vlaneseq
    %v2720 = vshrl.u32 %v2719, 7
    %v2721 = vsub.s32 0, %v2720
    %v2722 = vrot.slane %v2717, %v2721
    %v2740 = vunpack.c.l.b16 %v2700
    %v2741 = vunpack.c.l.b16 %v2701
    %v2742 = vunpack.c.l.b16 %v2702
    %v2743 = vunpack.c.l.b16 %v2703
    %v2744 = vunpack.c.l.b16 %v2704
    %v2745 = vunpack.c.l.b16 %v2705
    %v2746 = vunpack.c.l.b16 %v2706
    %v2747 = vunpack.c.l.b16 %v2707
    %v2748 = vunpack.c.l.b16 %v2708
    %v2749 = vunpack.c.l.b16 %v2709
    %v2750 = vunpack.c.l.b16 %v2710
    %v2751 = vunpack.c.l.b16 %v2711
    %v2752 = vunpack.c.l.b16 %v2712
    %v2753 = vunpack.c.l.b16 %v2713
    %v2754 = vunpack.c.l.b16 %v2714
    %v2755 = vunpack.c.l.b16 %v2715
    %v2756 = vpack.c.b16 %v2741, %v2740
    %v2757 = vpack.c.b16 %v2743, %v2742
    %v2758 = vpack.c.b16 %v2745, %v2744
    %v2759 = vpack.c.b16 %v2747, %v2746
    %v2760 = vpack.c.b16 %v2749, %v2748
    %v2761 = vpack.c.b16 %v2751, %v2750
    %v2762 = vpack.c.b16 %v2753, %v2752
    %v2763 = vpack.c.b16 %v2755, %v2754
    %2772 = vmatprep.subr.bf16.mxu0 0
    %2773 = vmatpush1.bf16.msra.mxu0 %v2756
    %2774 = vmatprep.subr.bf16.mxu0 0
    %2775 = vmatpush1.bf16.msra.mxu0 %v2757
    %2776 = vmatprep.subr.bf16.mxu0 0
    %2777 = vmatpush1.bf16.msra.mxu0 %v2758
    %2778 = vmatprep.subr.bf16.mxu0 0
    %2779 = vmatpush1.bf16.msra.mxu0 %v2759
    %2780 = vmatprep.subr.bf16.mxu0 0
    %2781 = vmatpush1.bf16.msra.mxu0 %v2760
    %2782 = vmatprep.subr.bf16.mxu0 0
    %2783 = vmatpush1.bf16.msra.mxu0 %v2761
    %2784 = vmatprep.subr.bf16.mxu0 0
    %2785 = vmatpush1.bf16.msra.mxu0 %v2762
    %2786 = vmatprep.subr.bf16.mxu0 0
    %2787 = vmatpush1.bf16.msra.mxu0 %v2763
    %2788 = vmatprep.subr.bf16.mxu0 0
    %2789 = vmatpush1.bf16.msra.mxu0 0
    %2790 = vmatprep.subr.bf16.mxu0 0
    %2791 = vmatpush1.bf16.msra.mxu0 0
    %2792 = vmatprep.subr.bf16.mxu0 0
    %2793 = vmatpush1.bf16.msra.mxu0 0
    %2794 = vmatprep.subr.bf16.mxu0 0
    %2795 = vmatpush1.bf16.msra.mxu0 0
    %2796 = vmatprep.subr.bf16.mxu0 0
    %2797 = vmatpush1.bf16.msra.mxu0 0
    %2798 = vmatprep.subr.bf16.mxu0 0
    %2799 = vmatpush1.bf16.msra.mxu0 0
    %2800 = vmatprep.subr.bf16.mxu0 0
    %2801 = vmatpush1.bf16.msra.mxu0 0
    %2802 = vmatprep.subr.bf16.mxu0 0
    %2803 = vmatpush1.bf16.msra.mxu0 0
    %2804 = vmatprep.mubr.bf16.mxu0 0
    %2805 = vmatmul.mubr.bf16.gmra.mrb[0].mxu0 %v2698
    %v2806 = vpop.f32.mrb[0].mxu0
    %v2807 = vadd.f32 %v2722, %v2806
    %v2808 = vpop.f32.mrb[0].mxu0
    %v2809 = vpop.f32.mrb[0].mxu0
    %v2810 = vadd.f32 %v2722, %v2809
    %v2811 = vpop.f32.mrb[0].mxu0
    %2812 = vdwg.mxu0
    %v2813 = vadd.f32 %v2562, %v2807
    %v2814 = vadd.f32 %v2563, %v2810
    %v2815 = vld [vmem:[%s14] sm:$0x1]
    %v2816 = vld [vmem:[%s15] sm:$0x1]
    %v2817 = vsel %vm93, %v2813, 0.0
    %2818 = vadd.xlane.f32.xlu0 %v2817
    %v2819 = vpop.xlane.xlu0 %2818
    %v2820 = vsel %vm93, %v2814, 0.0
    %2821 = vadd.xlane.f32.xlu0 %v2820
    %v2822 = vpop.xlane.xlu0 %2821
    %v2823 = vmul.f32 %v2819, %v100
    %v2824 = vmul.f32 %v2822, %v100
    %v2825 = vsub.f32 %v2813, %v2823
    %v2826 = vsub.f32 %v2814, %v2824
    %v2827 = vmul.f32 %v2825, %v2825
    %v2828 = vmul.f32 %v2826, %v2826
    %v2829 = vsel %vm93, %v2827, 0.0
    %2830 = vadd.xlane.f32.xlu0 %v2829
    %v2831 = vpop.xlane.xlu0 %2830
    %v2832 = vsel %vm93, %v2828, 0.0
    %2833 = vadd.xlane.f32.xlu0 %v2832
    %v2834 = vpop.xlane.xlu0 %2833
    %v2835 = vmul.f32 %v2831, %v100
    %v2836 = vmul.f32 %v2834, %v100
    %v2837 = vadd.f32 %v2835, 1e-05
    %v2838 = vadd.f32 %v2836, 1e-05
    %v2839 = vrsqrt.pop %v2837
    %v2840 = vrsqrt.pop %v2838
    %v2841 = vmul.f32 %v2825, %v2839
    %v2842 = vmul.f32 %v2826, %v2840
    %v2844 = vlaneseq
    %v2845 = vshrl.u32 %v2844, 7
    %v2846 = vsub.s32 0, %v2845
    %v2847 = vrot.slane %v2815, %v2846
    %v2849 = vmul.f32 %v2841, %v2847
    %v2850 = vmul.f32 %v2842, %v2847
    %v2852 = vlaneseq
    %v2853 = vshrl.u32 %v2852, 7
    %v2854 = vsub.s32 0, %v2853
    %v2855 = vrot.slane %v2816, %v2854
    %v2857 = vadd.f32 %v2849, %v2855
    %v2858 = vadd.f32 %v2850, %v2855
    %v2859 = vsel %vm93, %v2857, 0.0
    %v2860 = vrot.slane %v2859, 4
    %v2861 = vadd.f32 %v2859, %v2860
    %v2862 = vrot.slane %v2861, 2
    %v2863 = vadd.f32 %v2861, %v2862
    %v2864 = vrot.slane %v2863, 1
    %v2865 = vadd.f32 %v2863, %v2864
    %v2866 = vsel %vm93, %v2858, 0.0
    %v2867 = vrot.slane %v2866, 4
    %v2868 = vadd.f32 %v2866, %v2867
    %v2869 = vrot.slane %v2868, 2
    %v2870 = vadd.f32 %v2868, %v2869
    %v2871 = vrot.slane %v2870, 1
    %v2872 = vadd.f32 %v2870, %v2871
    %v2873 = vrcp.pop 8.0
    %v2874 = vmul.f32 %v2865, %v2873
    %v2875 = vmul.f32 %v2872, %v2873
    %v2876 = vld [vmem:[%s16] sm:$0xff]
    %v2877 = vld [vmem:[%s16 + $0x8] sm:$0xff]
    %v2878 = vld [vmem:[%s16 + $0x10] sm:$0xff]
    %v2879 = vld [vmem:[%s16 + $0x18] sm:$0xff]
    %v2880 = vld [vmem:[#allocation2] sm:$0x1]
    %v2882 = vlaneseq
    %v2883 = vshrl.u32 %v2882, 7
    %v2884 = vsub.s32 0, %v2883
    %v2885 = vrot.slane %v2880, %v2884
    %vm2889 = vcmask 1041409
    %v2890 = vsel %vm2889, %v2875, %v2874
    %v2891 = vsel %vm93, %v2890, 0
    %2893 = vmatprep.subr.mxu0 0.0
    %2894 = vmatpush1.msra.mxu0 %v2876
    %2895 = vmatprep.subr.mxu0 0.0
    %2896 = vmatpush1.msra.mxu0 %v2877
    %2897 = vmatprep.subr.mxu0 0.0
    %2898 = vmatpush1.msra.mxu0 %v2878
    %2899 = vmatprep.subr.mxu0 0.0
    %2900 = vmatpush1.msra.mxu0 %v2879
    %2901 = vmatprep.subr.mxu0 0.0
    %2902 = vmatpush1.msra.mxu0 0.0
    %2903 = vmatprep.subr.mxu0 0.0
    %2904 = vmatpush1.msra.mxu0 0.0
    %2905 = vmatprep.subr.mxu0 0.0
    %2906 = vmatpush1.msra.mxu0 0.0
    %2907 = vmatprep.subr.mxu0 0.0
    %2908 = vmatpush1.msra.mxu0 0.0
    %2909 = vmatprep.subr.mxu0 0.0
    %2910 = vmatpush1.msra.mxu0 0.0
    %2911 = vmatprep.subr.mxu0 0.0
    %2912 = vmatpush1.msra.mxu0 0.0
    %2913 = vmatprep.subr.mxu0 0.0
    %2914 = vmatpush1.msra.mxu0 0.0
    %2915 = vmatprep.subr.mxu0 0.0
    %2916 = vmatpush1.msra.mxu0 0.0
    %2917 = vmatprep.subr.mxu0 0.0
    %2918 = vmatpush1.msra.mxu0 0.0
    %2919 = vmatprep.subr.mxu0 0.0
    %2920 = vmatpush1.msra.mxu0 0.0
    %2921 = vmatprep.subr.mxu0 0.0
    %2922 = vmatpush1.msra.mxu0 0.0
    %2923 = vmatprep.subr.mxu0 0.0
    %2924 = vmatpush1.msra.mxu0 0.0
    %2925 = vmatprep.subr.mxu0 0.0
    %2926 = vmatpush1.msra.mxu0 0.0
    %2927 = vmatprep.subr.mxu0 0.0
    %2928 = vmatpush1.msra.mxu0 0.0
    %2929 = vmatprep.subr.mxu0 0.0
    %2930 = vmatpush1.msra.mxu0 0.0
    %2931 = vmatprep.subr.mxu0 0.0
    %2932 = vmatpush1.msra.mxu0 0.0
    %2933 = vmatprep.subr.mxu0 0.0
    %2934 = vmatpush1.msra.mxu0 0.0
    %2935 = vmatprep.subr.mxu0 0.0
    %2936 = vmatpush1.msra.mxu0 0.0
    %2937 = vmatprep.subr.mxu0 0.0
    %2938 = vmatpush1.msra.mxu0 0.0
    %2939 = vmatprep.subr.mxu0 0.0
    %2940 = vmatpush1.msra.mxu0 0.0
    %2941 = vmatprep.subr.mxu0 0.0
    %2942 = vmatpush1.msra.mxu0 0.0
    %2943 = vmatprep.subr.mxu0 0.0
    %2944 = vmatpush1.msra.mxu0 0.0
    %2945 = vmatprep.subr.mxu0 0.0
    %2946 = vmatpush1.msra.mxu0 0.0
    %2947 = vmatprep.subr.mxu0 0.0
    %2948 = vmatpush1.msra.mxu0 0.0
    %2949 = vmatprep.subr.mxu0 0.0
    %2950 = vmatpush1.msra.mxu0 0.0
    %2951 = vmatprep.subr.mxu0 0.0
    %2952 = vmatpush1.msra.mxu0 0.0
    %2953 = vmatprep.subr.mxu0 0.0
    %2954 = vmatpush1.msra.mxu0 0.0
    %2955 = vmatprep.subr.mxu0 0.0
    %2956 = vmatpush1.msra.mxu0 0.0
    %2957 = vmatprep.mubr.f32.mxu0 0.0
    %2958 = vmatmul.mubr.f32.gmra.mrb[0].mxu0 %v2891
    %v2959 = vpop.f32.mrb[0].mxu0
    %v2960 = vadd.f32 %v2885, %v2959
    %v2961 = vpop.f32.mrb[0].mxu0
    %2962 = vdwg.mxu0
    %2963 = vxpose.xlu0.b32.start [1/16] %v2960, 128
    %2964 = vxpose.xlu0.b32.cont [2/16] 0.0, 128
    %2965 = vxpose.xlu0.b32.cont [3/16] 0.0, 128
    %2966 = vxpose.xlu0.b32.cont [4/16] 0.0, 128
    %2967 = vxpose.xlu0.b32.cont [5/16] 0.0, 128
    %2968 = vxpose.xlu0.b32.cont [6/16] 0.0, 128
    %2969 = vxpose.xlu0.b32.cont [7/16] 0.0, 128
    %2970 = vxpose.xlu0.b32.cont [8/16] 0.0, 128
    %2971 = vxpose.xlu0.b32.cont [9/16] 0.0, 128
    %2972 = vxpose.xlu0.b32.cont [10/16] 0.0, 128
    %2973 = vxpose.xlu0.b32.cont [11/16] 0.0, 128
    %2974 = vxpose.xlu0.b32.cont [12/16] 0.0, 128
    %2975 = vxpose.xlu0.b32.cont [13/16] 0.0, 128
    %2976 = vxpose.xlu0.b32.cont [14/16] 0.0, 128
    %2977 = vxpose.xlu0.b32.cont [15/16] 0.0, 128
    %2978 = vxpose.xlu0.b32.end [16/16] 0.0, 128
    %v2979 = vpop.trf.xlu0
    %v2980 = vpop.trf.xlu0
    %v2981 = vpop.trf.xlu0
    %v2982 = vpop.trf.xlu0
    %v2983 = vpop.trf.xlu0
    %v2984 = vpop.trf.xlu0
    %v2985 = vpop.trf.xlu0
    %v2986 = vpop.trf.xlu0
    %v2987 = vpop.trf.xlu0
    %v2988 = vpop.trf.xlu0
    %v2989 = vpop.trf.xlu0
    %v2990 = vpop.trf.xlu0
    %v2991 = vpop.trf.xlu0
    %v2992 = vpop.trf.xlu0
    %v2993 = vpop.trf.xlu0
    %v2994 = vpop.trf.xlu0
    %vm2995 = vcmask 8192
    %2996 = vst.msk [vmem:[#allocation3] sm:$0x1] %vm2995, %v2979
    // Predicated region
    $region74: #{tpu_custom_call.1} parent=1 // pred_check
      _
    $region75: #{tpu_custom_call.1} parent=1 // pred_check_branch
      %2998 = sbr.rel (0) target = $region77
    $region76: #{tpu_custom_call.1} parent=1 // pred_region
      %s3000 = ssub.s32 16, 16
      %3001 = vsyncadd [#allocation4], %s3000
      %s3003 = sshll.u32 [#allocation3], 4
      %s3004 = int_to_ptr.vmem [resolvable:$true] %s3003
      %3006 = dma.vmem_to_hbm [thread:$0]  %s3004, 16, %s18, [#allocation4]
    $region77: #{tpu_custom_call.1} parent=1 // pred_fallthru
      _
    // Predicated region
    $region78: #{tpu_custom_call.1} parent=1 // pred_check
      _
    $region79: #{tpu_custom_call.1} parent=1 // pred_check_branch
      %3008 = sbr.rel (0) target = $region81
    $region80: #{tpu_custom_call.1} parent=1 // pred_region
      %3009 = dma.done [#allocation4], 16
    $region81: #{tpu_custom_call.1} parent=1 // pred_fallthru
      _
    %3010 = vsyncpa [#allocation4], 1

</llo_original>
